<compile_context>
chip_gen: v5e
topology: v5e:2x2
jax: 0.10.0
libtpu: 0.0.40
codegen_flags: <defaults>
</compile_context>

<pallas_src>
import functools

import jax
import jax.numpy as jnp
import numpy as np
from jax.experimental import pallas as pl
from jax.experimental.pallas import tpu as pltpu


def _cdiv(a, b):
    return -(-a // b)


def _round_up(a, b):
    return _cdiv(a, b) * b


# ----------------------------------------------------------------------------
# Fused Conv2d(valid, stride1) + bias + ReLU + MaxPool2d(2) + BatchNorm(eval).
# One grid step = one batch tile (Bt images).
# ----------------------------------------------------------------------------
def _conv_pool_bn_kernel(le_ref, lo_ref, band_ref, bias_ref, selw_ref,
                         scale_ref, shift_ref, o_ref, *, Bt, PH, KWC):
    # le_ref/lo_ref: (Bt, PH, KH*W*Cin)   im2row slabs for even / odd conv rows
    # band_ref:      (KH*W*Cin, OW*Cout)  banded conv weights (host-built)
    # bias_ref:      (1, OW*Cout)
    # selw_ref:      (2, OW*Cout, PWC_pad)  0/1 column-pair pool selectors
    # scale_ref/shift_ref: (1, PWC_pad)   eval-mode BN scale / shift (pad = 0)
    # o_ref:         (1, Bt*PH, PWC_pad)
    M = Bt * PH
    band = band_ref[...]
    bias = bias_ref[...]

    # Single large-K MXU matmul per row-parity; bias + ReLU on the VPU.
    ye = jnp.maximum(
        jnp.dot(le_ref[...].reshape(M, KWC), band,
                preferred_element_type=jnp.float32) + bias, 0.0)
    yo = jnp.maximum(
        jnp.dot(lo_ref[...].reshape(M, KWC), band,
                preferred_element_type=jnp.float32) + bias, 0.0)

    # Row-pair pool is just an elementwise max of the two parities.
    rm = jnp.maximum(ye, yo)                       # (M, OW*Cout)

    # Column-pair pool via two 0/1 selector matmuls (lane-dense padded width).
    c0 = jnp.dot(rm, selw_ref[0], preferred_element_type=jnp.float32)
    c1 = jnp.dot(rm, selw_ref[1], preferred_element_type=jnp.float32)
    pooled = jnp.maximum(c0, c1)                   # (M, PWC_pad)

    # Eval-mode BatchNorm + one lane-dense store of the whole slab.
    o_ref[0] = (pooled * scale_ref[...] + shift_ref[...]).astype(o_ref.dtype)


def _conv_batch_tile(B, PH, m_target=256):
    """Batch tile so M = Bt*PH ~ m_target, with >= 2 grid steps when B > 1
    (v7x has 2 TensorCores; the extra ~0.35us/step is negligible on v5e/v6e)."""
    bt = max(1, m_target // max(PH, 1))
    nb = _cdiv(B, bt)
    if nb == 1 and B > 1:
        nb = 2
    bt = _cdiv(B, nb)
    nb = _cdiv(B, bt)
    return bt, nb


def conv_block(x_nhwc, w_hwio, b, bn_scale, bn_shift):
    B, H, W, Cin = x_nhwc.shape
    KH, KW, Cin2, Cout = w_hwio.shape
    assert Cin == Cin2
    OH, OW = H - KH + 1, W - KW + 1
    PH, PW = OH // 2, OW // 2
    WC, KWC, OWC = W * Cin, KH * W * Cin, OW * Cout
    PWC = PW * Cout
    PWC_pad = _round_up(PWC, 128)                  # lane-dense output slab
    Bt, nb = _conv_batch_tile(B, PH)
    Bp = Bt * nb

    # ---- host-side constant prep (pure layout / weight folding) ----
    # Banded conv weights: band[kh*WC + w*Cin + ci, ow*Cout + co]
    #                        = w[kh, w-ow, ci, co]  for 0 <= w-ow < KW, else 0.
    P = np.zeros((KW, W, OW), np.float32)
    for kw in range(KW):
        for ow in range(OW):
            P[kw, ow + kw, ow] = 1.0
    band = jnp.einsum('awo,hacd->hwcod', jnp.asarray(P), w_hwio)
    band = band.reshape(KWC, OWC)

    # Column-pair pool selectors, padded to a 128-multiple output width.
    selw = np.zeros((2, OWC, PWC_pad), np.float32)
    for q in range(PW):
        for c in range(Cout):
            selw[0, (2 * q) * Cout + c, q * Cout + c] = 1.0
            selw[1, (2 * q + 1) * Cout + c, q * Cout + c] = 1.0

    bias_t = jnp.tile(b, OW).reshape(1, OWC)
    scale_t = jnp.zeros((1, PWC_pad), jnp.float32).at[0, :PWC].set(
        jnp.tile(bn_scale, PW))
    shift_t = jnp.zeros((1, PWC_pad), jnp.float32).at[0, :PWC].set(
        jnp.tile(bn_shift, PW))

    # Host-side im2row along H only (KH taps concatenated along K), split by
    # output-row parity so the row-pair pool is a plain elementwise max.
    x3 = x_nhwc.reshape(B, H, WC)
    lhs_e = jnp.concatenate(
        [x3[:, kh:kh + 2 * PH:2, :] for kh in range(KH)], axis=-1)
    lhs_o = jnp.concatenate(
        [x3[:, kh + 1:kh + 1 + 2 * PH:2, :] for kh in range(KH)], axis=-1)
    if Bp != B:
        pad = ((0, Bp - B), (0, 0), (0, 0))
        lhs_e = jnp.pad(lhs_e, pad)
        lhs_o = jnp.pad(lhs_o, pad)

    kernel = functools.partial(_conv_pool_bn_kernel, Bt=Bt, PH=PH, KWC=KWC)
    out = pl.pallas_call(
        kernel,
        out_shape=jax.ShapeDtypeStruct((nb, Bt * PH, PWC_pad), jnp.float32),
        grid=(nb,),
        in_specs=[
            pl.BlockSpec((Bt, PH, KWC), lambda i: (i, 0, 0)),
            pl.BlockSpec((Bt, PH, KWC), lambda i: (i, 0, 0)),
            pl.BlockSpec((KWC, OWC), lambda i: (0, 0)),
            pl.BlockSpec((1, OWC), lambda i: (0, 0)),
            pl.BlockSpec((2, OWC, PWC_pad), lambda i: (0, 0, 0)),
            pl.BlockSpec((1, PWC_pad), lambda i: (0, 0)),
            pl.BlockSpec((1, PWC_pad), lambda i: (0, 0)),
        ],
        out_specs=pl.BlockSpec((1, Bt * PH, PWC_pad), lambda i: (i, 0, 0)),
        compiler_params=pltpu.CompilerParams(
            dimension_semantics=("parallel",),
            vmem_limit_bytes=48 * 1024 * 1024),
    )(lhs_e, lhs_o, band, bias_t, jnp.asarray(selw), scale_t, shift_t)

    out = out.reshape(Bp, PH, PWC_pad)[:B, :, :PWC]
    return out.reshape(B, PH, PW, Cout)            # NHWC


# ----------------------------------------------------------------------------
# FC head: fc1 -> ReLU -> (drop=id) -> fc2 -> ReLU -> (drop=id) -> fc3 ->
# softmax.  Grid = (batch tiles, fc1 K tiles); fc1 accumulates into a VMEM
# scratch so the (87584, 512) weight streams through VMEM instead of having
# to fit.  fc3 output padded to 128 lanes (pad bias = -1e9 => softmax-inert).
# ----------------------------------------------------------------------------
def _mlp_kernel(x_ref, w1_ref, b1_ref, w2_ref, b2_ref, w3_ref, b3_ref,
                o_ref, acc_ref):
    @pl.when(pl.program_id(1) == 0)
    def _():
        acc_ref[...] = jnp.zeros_like(acc_ref)

    acc_ref[...] += jnp.dot(x_ref[...], w1_ref[...],
                            preferred_element_type=jnp.float32)

    @pl.when(pl.program_id(1) == pl.num_programs(1) - 1)
    def _():
        h = jnp.maximum(acc_ref[...] + b1_ref[...], 0.0)      # fc1+ReLU (drop=id)
        h = jnp.maximum(
            jnp.dot(h, w2_ref[...], preferred_element_type=jnp.float32)
            + b2_ref[...], 0.0)                               # fc2+ReLU (drop=id)
        logits = jnp.dot(h, w3_ref[...],
                         preferred_element_type=jnp.float32) + b3_ref[...]
        m = jnp.max(logits, axis=-1, keepdims=True)           # softmax(dim=1)
        e = jnp.exp(logits - m)
        denom = jnp.sum(e, axis=-1, keepdims=True)
        o_ref[...] = (e * pl.reciprocal(denom, approx=True)).astype(o_ref.dtype)


def _mlp_batch_tile(B):
    if B <= 128:
        return _round_up(B, 8), 1
    nb = _cdiv(B, 128)
    tm = _round_up(_cdiv(B, nb), 8)
    return tm, _cdiv(B, tm)


def mlp_head(x, w1, b1, w2, b2, w3, b3, tk_max=2048):
    B, F = x.shape
    H1, H2, NO = w1.shape[1], w2.shape[1], w3.shape[1]
    NOp = _round_up(NO, 128)
    tm, nb = _mlp_batch_tile(B)
    Bp = tm * nb

    if F <= tk_max:
        tk, nk, Fp = F, 1, F
    else:
        tk = tk_max
        nk = _cdiv(F, tk)
        Fp = nk * tk

    xp = x
    if Bp != B or Fp != F:
        xp = jnp.pad(x, ((0, Bp - B), (0, Fp - F)))
    w1p = w1 if Fp == F else jnp.pad(w1, ((0, Fp - F), (0, 0)))
    w3p = jnp.pad(w3, ((0, 0), (0, NOp - NO)))
    b3p = jnp.pad(b3, (0, NOp - NO), constant_values=-1e9)
    # TODO(synk): fc1/fc2 weights could be streamed as bf16 (f32 accumulation)
    #             to halve HBM traffic; kept f32 to match module numerics.

    out = pl.pallas_call(
        _mlp_kernel,
        out_shape=jax.ShapeDtypeStruct((Bp, NOp), jnp.float32),
        grid=(nb, nk),
        in_specs=[
            pl.BlockSpec((tm, tk), lambda i, k: (i, k)),
            pl.BlockSpec((tk, H1), lambda i, k: (k, 0)),
            pl.BlockSpec((1, H1), lambda i, k: (0, 0)),
            pl.BlockSpec((H1, H2), lambda i, k: (0, 0)),
            pl.BlockSpec((1, H2), lambda i, k: (0, 0)),
            pl.BlockSpec((H2, NOp), lambda i, k: (0, 0)),
            pl.BlockSpec((1, NOp), lambda i, k: (0, 0)),
        ],
        out_specs=pl.BlockSpec((tm, NOp), lambda i, k: (i, 0)),
        scratch_shapes=[pltpu.VMEM((tm, H1), jnp.float32)],
        compiler_params=pltpu.CompilerParams(
            dimension_semantics=("parallel", "arbitrary"),
            vmem_limit_bytes=48 * 1024 * 1024),
    )(xp, w1p, b1.reshape(1, -1), w2, b2.reshape(1, -1), w3p,
      b3p.reshape(1, -1))
    return out[:B, :NO]


# ----------------------------------------------------------------------------
# Full forward pass (wrapper glue: layout transposes, BN folding, flatten fold).
# ----------------------------------------------------------------------------
def dmsnet_forward(x_nchw, p):
    eps = 1e-5
    s1 = p["bn1_gamma"] / jnp.sqrt(p["bn1_var"] + eps)
    t1 = p["bn1_beta"] - p["bn1_mean"] * s1
    s2 = p["bn2_gamma"] / jnp.sqrt(p["bn2_var"] + eps)
    t2 = p["bn2_beta"] - p["bn2_mean"] * s2

    x = jnp.transpose(x_nchw, (0, 2, 3, 1))             # NCHW -> NHWC
    h = conv_block(x, p["conv1_w"], p["conv1_b"], s1, t1)
    h = conv_block(h, p["conv2_w"], p["conv2_b"], s2, t2)

    # PyTorch flattens in NCHW order; fold that permutation into fc1's weight
    # rows (host-side, one-time) so the NHWC activations flatten directly.
    B, PH2, PW2, C2 = h.shape
    feat = h.reshape(B, PH2 * PW2 * C2)
    w1 = p["fc1_w"].reshape(C2, PH2, PW2, -1).transpose(1, 2, 0, 3)
    w1 = w1.reshape(PH2 * PW2 * C2, -1)

    return mlp_head(feat, w1, p["fc1_b"],
                    p["fc2_w"], p["fc2_b"], p["fc3_w"], p["fc3_b"])


# ----------------------------------------------------------------------------
# Deterministic parameter init (synthetic; shapes follow the module, with fc1
# in_features derived from the chosen small input instead of 87584).
# ----------------------------------------------------------------------------
def init_params(key, H, W):
    oh1, ow1 = H - 3, W - 3
    ph1, pw1 = oh1 // 2, ow1 // 2
    oh2, ow2 = ph1 - 3, pw1 - 3
    ph2, pw2 = oh2 // 2, ow2 // 2
    n_feat = 16 * ph2 * pw2

    ks = jax.random.split(key, 18)
    n = lambda k, shape, s: s * jax.random.normal(k, shape, jnp.float32)
    p = {
        "conv1_w": n(ks[0], (4, 4, 3, 8), 0.05),        # HWIO
        "conv1_b": n(ks[1], (8,), 0.05),
        "conv2_w": n(ks[2], (4, 4, 8, 16), 0.05),
        "conv2_b": n(ks[3], (16,), 0.05),
        "bn1_gamma": 1.0 + n(ks[4], (8,), 0.1),
        "bn1_beta": n(ks[5], (8,), 0.1),
        "bn1_mean": n(ks[6], (8,), 0.1),
        "bn1_var": 1.0 + jnp.abs(n(ks[7], (8,), 0.1)),
        "bn2_gamma": 1.0 + n(ks[8], (16,), 0.1),
        "bn2_beta": n(ks[9], (16,), 0.1),
        "bn2_mean": n(ks[10], (16,), 0.1),
        "bn2_var": 1.0 + jnp.abs(n(ks[11], (16,), 0.1)),
        "fc1_w": n(ks[12], (n_feat, 512), 0.03),        # rows in NCHW-flatten order
        "fc1_b": n(ks[13], (512,), 0.01),
        "fc2_w": n(ks[14], (512, 256), 0.05),
        "fc2_b": n(ks[15], (256,), 0.01),
        "fc3_w": n(ks[16], (256, 2), 0.08),
        "fc3_b": n(ks[17], (2,), 0.01),
    }
    return p


# Pure-JAX reference (eval mode) for a sanity check.
def reference_forward(x_nchw, p):
    eps = 1e-5
    x = jnp.transpose(x_nchw, (0, 2, 3, 1))

    def conv(h, w, b):
        y = jax.lax.conv_general_dilated(
            h, w, window_strides=(1, 1), padding="VALID",
            dimension_numbers=("NHWC", "HWIO", "NHWC"))
        return y + b.reshape(1, 1, 1, -1)

    def pool(h):
        return jax.lax.reduce_window(h, -jnp.inf, jax.lax.max,
                                     (1, 2, 2, 1), (1, 2, 2, 1), "VALID")

    def bn(h, g, bta, m, v):
        return (h - m) / jnp.sqrt(v + eps) * g + bta

    h = bn(pool(jax.nn.relu(conv(x, p["conv1_w"], p["conv1_b"]))),
           p["bn1_gamma"], p["bn1_beta"], p["bn1_mean"], p["bn1_var"])
    h = bn(pool(jax.nn.relu(conv(h, p["conv2_w"], p["conv2_b"]))),
           p["bn2_gamma"], p["bn2_beta"], p["bn2_mean"], p["bn2_var"])
    B = h.shape[0]
    feat = jnp.transpose(h, (0, 3, 1, 2)).reshape(B, -1)
    h = jax.nn.relu(feat @ p["fc1_w"] + p["fc1_b"])
    h = jax.nn.relu(h @ p["fc2_w"] + p["fc2_b"])
    return jax.nn.softmax(h @ p["fc3_w"] + p["fc3_b"], axis=1)


if __name__ == "__main__":
    B, C, H, W = 2, 3, 32, 32                           # input is NCHW
    key = jax.random.PRNGKey(0)
    k_x, k_p = jax.random.split(key)
    x = jax.random.normal(k_x, (B, C, H, W), dtype=jnp.float32)
    params = init_params(k_p, H, W)

    fwd = jax.jit(dmsnet_forward)
    out = jax.block_until_ready(fwd(x, params))

    assert out.shape == (B, 2)
    ref = reference_forward(x, params)
    np.testing.assert_allclose(np.asarray(out), np.asarray(ref), atol=5e-2, rtol=0)
    print("KERNEL_OK")
</pallas_src>

<mosaic_0001>
module attributes {stable_mosaic.version = 11 : i64} {
  func.func @_conv_pool_bn_kernel(%arg0: i32, %arg1: memref<1x14x384xf32, #tpu.memory_space<vmem>>, %arg2: memref<1x14x384xf32, #tpu.memory_space<vmem>>, %arg3: memref<384x232xf32, #tpu.memory_space<vmem>>, %arg4: memref<1x232xf32, #tpu.memory_space<vmem>>, %arg5: memref<2x232x128xf32, #tpu.memory_space<vmem>>, %arg6: memref<1x128xf32, #tpu.memory_space<vmem>>, %arg7: memref<1x128xf32, #tpu.memory_space<vmem>>, %arg8: memref<1x14x128xf32, #tpu.memory_space<vmem>>) attributes {dimension_semantics = [#tpu.dimension_semantics<parallel>], iteration_bounds = array<i64: 2>, scalar_prefetch = 0 : i64, scratch_operands = 0 : i64, tpu.core_type = #tpu.core_type<tc>, window_params = [{transform_indices = @transform_0, window_bounds = array<i64: 1, 14, 384>}, {transform_indices = @transform_1, window_bounds = array<i64: 1, 14, 384>}, {pipeline_mode = #tpu.pipeline_mode<synchronous>, transform_indices = @transform_2, window_bounds = array<i64: 384, 232>}, {pipeline_mode = #tpu.pipeline_mode<synchronous>, transform_indices = @transform_3, window_bounds = array<i64: 1, 232>}, {pipeline_mode = #tpu.pipeline_mode<synchronous>, transform_indices = @transform_4, window_bounds = array<i64: 2, 232, 128>}, {pipeline_mode = #tpu.pipeline_mode<synchronous>, transform_indices = @transform_5, window_bounds = array<i64: 1, 128>}, {pipeline_mode = #tpu.pipeline_mode<synchronous>, transform_indices = @transform_6, window_bounds = array<i64: 1, 128>}, {transform_indices = @transform_7, window_bounds = array<i64: 1, 14, 128>}]} {
    %c0 = arith.constant 0 : index
    %c0_0 = arith.constant 0 : index
    %0 = vector.load %arg3[%c0, %c0_0] : memref<384x232xf32, #tpu.memory_space<vmem>>, vector<384x232xf32>
    %c0_1 = arith.constant 0 : index
    %c0_2 = arith.constant 0 : index
    %1 = vector.load %arg4[%c0_1, %c0_2] : memref<1x232xf32, #tpu.memory_space<vmem>>, vector<1x232xf32>
    %c0_3 = arith.constant 0 : index
    %c0_4 = arith.constant 0 : index
    %c0_5 = arith.constant 0 : index
    %2 = vector.load %arg1[%c0_3, %c0_4, %c0_5] : memref<1x14x384xf32, #tpu.memory_space<vmem>>, vector<1x14x384xf32>
    %3 = vector.shape_cast %2 : vector<1x14x384xf32> to vector<14x384xf32>
    %cst = arith.constant dense<0.000000e+00> : vector<14x232xf32>
    %4 = tpu.matmul %3, %0, %cst {dimension_numbers = #tpu.dot_dimension_numbers<[1], [0], [0], [1], [0, 0, 1, 1], [], []>} : vector<14x384xf32>, vector<384x232xf32>, vector<14x232xf32> -> vector<14x232xf32>
    %5 = vector.broadcast %1 : vector<1x232xf32> to vector<14x232xf32>
    %6 = arith.addf %4, %5 : vector<14x232xf32>
    %cst_6 = arith.constant 0.000000e+00 : f32
    %7 = vector.broadcast %cst_6 : f32 to vector<14x232xf32>
    %8 = arith.maximumf %6, %7 : vector<14x232xf32>
    %c0_7 = arith.constant 0 : index
    %c0_8 = arith.constant 0 : index
    %c0_9 = arith.constant 0 : index
    %9 = vector.load %arg2[%c0_7, %c0_8, %c0_9] : memref<1x14x384xf32, #tpu.memory_space<vmem>>, vector<1x14x384xf32>
    %10 = vector.shape_cast %9 : vector<1x14x384xf32> to vector<14x384xf32>
    %cst_10 = arith.constant dense<0.000000e+00> : vector<14x232xf32>
    %11 = tpu.matmul %10, %0, %cst_10 {dimension_numbers = #tpu.dot_dimension_numbers<[1], [0], [0], [1], [0, 0, 1, 1], [], []>} : vector<14x384xf32>, vector<384x232xf32>, vector<14x232xf32> -> vector<14x232xf32>
    %12 = vector.broadcast %1 : vector<1x232xf32> to vector<14x232xf32>
    %13 = arith.addf %11, %12 : vector<14x232xf32>
    %cst_11 = arith.constant 0.000000e+00 : f32
    %14 = vector.broadcast %cst_11 : f32 to vector<14x232xf32>
    %15 = arith.maximumf %13, %14 : vector<14x232xf32>
    %16 = arith.maximumf %8, %15 : vector<14x232xf32>
    %c0_12 = arith.constant 0 : index
    %c0_13 = arith.constant 0 : index
    %c0_14 = arith.constant 0 : index
    %17 = vector.load %arg5[%c0_12, %c0_13, %c0_14] : memref<2x232x128xf32, #tpu.memory_space<vmem>>, vector<1x232x128xf32>
    %18 = vector.shape_cast %17 : vector<1x232x128xf32> to vector<232x128xf32>
    %cst_15 = arith.constant dense<0.000000e+00> : vector<14x128xf32>
    %19 = tpu.matmul %16, %18, %cst_15 {dimension_numbers = #tpu.dot_dimension_numbers<[1], [0], [0], [1], [0, 0, 1, 1], [], []>} : vector<14x232xf32>, vector<232x128xf32>, vector<14x128xf32> -> vector<14x128xf32>
    %c1 = arith.constant 1 : index
    %c0_16 = arith.constant 0 : index
    %c0_17 = arith.constant 0 : index
    %20 = vector.load %arg5[%c1, %c0_16, %c0_17] : memref<2x232x128xf32, #tpu.memory_space<vmem>>, vector<1x232x128xf32>
    %21 = vector.shape_cast %20 : vector<1x232x128xf32> to vector<232x128xf32>
    %cst_18 = arith.constant dense<0.000000e+00> : vector<14x128xf32>
    %22 = tpu.matmul %16, %21, %cst_18 {dimension_numbers = #tpu.dot_dimension_numbers<[1], [0], [0], [1], [0, 0, 1, 1], [], []>} : vector<14x232xf32>, vector<232x128xf32>, vector<14x128xf32> -> vector<14x128xf32>
    %23 = arith.maximumf %19, %22 : vector<14x128xf32>
    %c0_19 = arith.constant 0 : index
    %c0_20 = arith.constant 0 : index
    %24 = vector.load %arg6[%c0_19, %c0_20] : memref<1x128xf32, #tpu.memory_space<vmem>>, vector<1x128xf32>
    %25 = vector.broadcast %24 : vector<1x128xf32> to vector<14x128xf32>
    %26 = arith.mulf %23, %25 : vector<14x128xf32>
    %c0_21 = arith.constant 0 : index
    %c0_22 = arith.constant 0 : index
    %27 = vector.load %arg7[%c0_21, %c0_22] : memref<1x128xf32, #tpu.memory_space<vmem>>, vector<1x128xf32>
    %28 = vector.broadcast %27 : vector<1x128xf32> to vector<14x128xf32>
    %29 = arith.addf %26, %28 : vector<14x128xf32>
    %c0_23 = arith.constant 0 : index
    %c0_24 = arith.constant 0 : index
    %c0_25 = arith.constant 0 : index
    %30 = vector.load %arg8[%c0_23, %c0_24, %c0_25] : memref<1x14x128xf32, #tpu.memory_space<vmem>>, vector<1x14x128xf32>
    %31 = vector.shape_cast %30 : vector<1x14x128xf32> to vector<14x128xf32>
    %32 = vector.shape_cast %29 : vector<14x128xf32> to vector<1x14x128xf32>
    tpu.vector_store %arg8[%c0_23, %c0_24, %c0_25], %32 {strides = array<i32>} : memref<1x14x128xf32, #tpu.memory_space<vmem>>, vector<1x14x128xf32>,
    return
  }
  func.func @transform_0(%arg0: i32) -> (i32, i32, i32) {
    %c0_i32 = arith.constant 0 : i32
    %c0_i32_0 = arith.constant 0 : i32
    %c0_i32_1 = arith.constant 0 : i32
    return %arg0, %c0_i32, %c0_i32_0 : i32, i32, i32
  }
  func.func @transform_1(%arg0: i32) -> (i32, i32, i32) {
    %c0_i32 = arith.constant 0 : i32
    %c0_i32_0 = arith.constant 0 : i32
    %c0_i32_1 = arith.constant 0 : i32
    return %arg0, %c0_i32, %c0_i32_0 : i32, i32, i32
  }
  func.func @transform_2(%arg0: i32) -> (i32, i32) {
    %c0_i32 = arith.constant 0 : i32
    %c0_i32_0 = arith.constant 0 : i32
    %c0_i32_1 = arith.constant 0 : i32
    return %c0_i32, %c0_i32_0 : i32, i32
  }
  func.func @transform_3(%arg0: i32) -> (i32, i32) {
    %c0_i32 = arith.constant 0 : i32
    %c0_i32_0 = arith.constant 0 : i32
    %c0_i32_1 = arith.constant 0 : i32
    return %c0_i32, %c0_i32_0 : i32, i32
  }
  func.func @transform_4(%arg0: i32) -> (i32, i32, i32) {
    %c0_i32 = arith.constant 0 : i32
    %c0_i32_0 = arith.constant 0 : i32
    %c0_i32_1 = arith.constant 0 : i32
    %c0_i32_2 = arith.constant 0 : i32
    return %c0_i32, %c0_i32_0, %c0_i32_1 : i32, i32, i32
  }
  func.func @transform_5(%arg0: i32) -> (i32, i32) {
    %c0_i32 = arith.constant 0 : i32
    %c0_i32_0 = arith.constant 0 : i32
    %c0_i32_1 = arith.constant 0 : i32
    return %c0_i32, %c0_i32_0 : i32, i32
  }
  func.func @transform_6(%arg0: i32) -> (i32, i32) {
    %c0_i32 = arith.constant 0 : i32
    %c0_i32_0 = arith.constant 0 : i32
    %c0_i32_1 = arith.constant 0 : i32
    return %c0_i32, %c0_i32_0 : i32, i32
  }
  func.func @transform_7(%arg0: i32) -> (i32, i32, i32) {
    %c0_i32 = arith.constant 0 : i32
    %c0_i32_0 = arith.constant 0 : i32
    %c0_i32_1 = arith.constant 0 : i32
    return %arg0, %c0_i32, %c0_i32_0 : i32, i32, i32
  }
}

module attributes {stable_mosaic.version = 11 : i64} {
  func.func @_conv_pool_bn_kernel(%arg0: i32, %arg1: memref<1x5x448xf32, #tpu.memory_space<vmem>>, %arg2: memref<1x5x448xf32, #tpu.memory_space<vmem>>, %arg3: memref<448x176xf32, #tpu.memory_space<vmem>>, %arg4: memref<1x176xf32, #tpu.memory_space<vmem>>, %arg5: memref<2x176x128xf32, #tpu.memory_space<vmem>>, %arg6: memref<1x128xf32, #tpu.memory_space<vmem>>, %arg7: memref<1x128xf32, #tpu.memory_space<vmem>>, %arg8: memref<1x5x128xf32, #tpu.memory_space<vmem>>) attributes {dimension_semantics = [#tpu.dimension_semantics<parallel>], iteration_bounds = array<i64: 2>, scalar_prefetch = 0 : i64, scratch_operands = 0 : i64, tpu.core_type = #tpu.core_type<tc>, window_params = [{transform_indices = @transform_0, window_bounds = array<i64: 1, 5, 448>}, {transform_indices = @transform_1, window_bounds = array<i64: 1, 5, 448>}, {pipeline_mode = #tpu.pipeline_mode<synchronous>, transform_indices = @transform_2, window_bounds = array<i64: 448, 176>}, {pipeline_mode = #tpu.pipeline_mode<synchronous>, transform_indices = @transform_3, window_bounds = array<i64: 1, 176>}, {pipeline_mode = #tpu.pipeline_mode<synchronous>, transform_indices = @transform_4, window_bounds = array<i64: 2, 176, 128>}, {pipeline_mode = #tpu.pipeline_mode<synchronous>, transform_indices = @transform_5, window_bounds = array<i64: 1, 128>}, {pipeline_mode = #tpu.pipeline_mode<synchronous>, transform_indices = @transform_6, window_bounds = array<i64: 1, 128>}, {transform_indices = @transform_7, window_bounds = array<i64: 1, 5, 128>}]} {
    %c0 = arith.constant 0 : index
    %c0_0 = arith.constant 0 : index
    %0 = vector.load %arg3[%c0, %c0_0] : memref<448x176xf32, #tpu.memory_space<vmem>>, vector<448x176xf32>
    %c0_1 = arith.constant 0 : index
    %c0_2 = arith.constant 0 : index
    %1 = vector.load %arg4[%c0_1, %c0_2] : memref<1x176xf32, #tpu.memory_space<vmem>>, vector<1x176xf32>
    %c0_3 = arith.constant 0 : index
    %c0_4 = arith.constant 0 : index
    %c0_5 = arith.constant 0 : index
    %2 = vector.load %arg1[%c0_3, %c0_4, %c0_5] : memref<1x5x448xf32, #tpu.memory_space<vmem>>, vector<1x5x448xf32>
    %3 = vector.shape_cast %2 : vector<1x5x448xf32> to vector<5x448xf32>
    %cst = arith.constant dense<0.000000e+00> : vector<5x176xf32>
    %4 = tpu.matmul %3, %0, %cst {dimension_numbers = #tpu.dot_dimension_numbers<[1], [0], [0], [1], [0, 0, 1, 1], [], []>} : vector<5x448xf32>, vector<448x176xf32>, vector<5x176xf32> -> vector<5x176xf32>
    %5 = vector.broadcast %1 : vector<1x176xf32> to vector<5x176xf32>
    %6 = arith.addf %4, %5 : vector<5x176xf32>
    %cst_6 = arith.constant 0.000000e+00 : f32
    %7 = vector.broadcast %cst_6 : f32 to vector<5x176xf32>
    %8 = arith.maximumf %6, %7 : vector<5x176xf32>
    %c0_7 = arith.constant 0 : index
    %c0_8 = arith.constant 0 : index
    %c0_9 = arith.constant 0 : index
    %9 = vector.load %arg2[%c0_7, %c0_8, %c0_9] : memref<1x5x448xf32, #tpu.memory_space<vmem>>, vector<1x5x448xf32>
    %10 = vector.shape_cast %9 : vector<1x5x448xf32> to vector<5x448xf32>
    %cst_10 = arith.constant dense<0.000000e+00> : vector<5x176xf32>
    %11 = tpu.matmul %10, %0, %cst_10 {dimension_numbers = #tpu.dot_dimension_numbers<[1], [0], [0], [1], [0, 0, 1, 1], [], []>} : vector<5x448xf32>, vector<448x176xf32>, vector<5x176xf32> -> vector<5x176xf32>
    %12 = vector.broadcast %1 : vector<1x176xf32> to vector<5x176xf32>
    %13 = arith.addf %11, %12 : vector<5x176xf32>
    %cst_11 = arith.constant 0.000000e+00 : f32
    %14 = vector.broadcast %cst_11 : f32 to vector<5x176xf32>
    %15 = arith.maximumf %13, %14 : vector<5x176xf32>
    %16 = arith.maximumf %8, %15 : vector<5x176xf32>
    %c0_12 = arith.constant 0 : index
    %c0_13 = arith.constant 0 : index
    %c0_14 = arith.constant 0 : index
    %17 = vector.load %arg5[%c0_12, %c0_13, %c0_14] : memref<2x176x128xf32, #tpu.memory_space<vmem>>, vector<1x176x128xf32>
    %18 = vector.shape_cast %17 : vector<1x176x128xf32> to vector<176x128xf32>
    %cst_15 = arith.constant dense<0.000000e+00> : vector<5x128xf32>
    %19 = tpu.matmul %16, %18, %cst_15 {dimension_numbers = #tpu.dot_dimension_numbers<[1], [0], [0], [1], [0, 0, 1, 1], [], []>} : vector<5x176xf32>, vector<176x128xf32>, vector<5x128xf32> -> vector<5x128xf32>
    %c1 = arith.constant 1 : index
    %c0_16 = arith.constant 0 : index
    %c0_17 = arith.constant 0 : index
    %20 = vector.load %arg5[%c1, %c0_16, %c0_17] : memref<2x176x128xf32, #tpu.memory_space<vmem>>, vector<1x176x128xf32>
    %21 = vector.shape_cast %20 : vector<1x176x128xf32> to vector<176x128xf32>
    %cst_18 = arith.constant dense<0.000000e+00> : vector<5x128xf32>
    %22 = tpu.matmul %16, %21, %cst_18 {dimension_numbers = #tpu.dot_dimension_numbers<[1], [0], [0], [1], [0, 0, 1, 1], [], []>} : vector<5x176xf32>, vector<176x128xf32>, vector<5x128xf32> -> vector<5x128xf32>
    %23 = arith.maximumf %19, %22 : vector<5x128xf32>
    %c0_19 = arith.constant 0 : index
    %c0_20 = arith.constant 0 : index
    %24 = vector.load %arg6[%c0_19, %c0_20] : memref<1x128xf32, #tpu.memory_space<vmem>>, vector<1x128xf32>
    %25 = vector.broadcast %24 : vector<1x128xf32> to vector<5x128xf32>
    %26 = arith.mulf %23, %25 : vector<5x128xf32>
    %c0_21 = arith.constant 0 : index
    %c0_22 = arith.constant 0 : index
    %27 = vector.load %arg7[%c0_21, %c0_22] : memref<1x128xf32, #tpu.memory_space<vmem>>, vector<1x128xf32>
    %28 = vector.broadcast %27 : vector<1x128xf32> to vector<5x128xf32>
    %29 = arith.addf %26, %28 : vector<5x128xf32>
    %c0_23 = arith.constant 0 : index
    %c0_24 = arith.constant 0 : index
    %c0_25 = arith.constant 0 : index
    %30 = vector.load %arg8[%c0_23, %c0_24, %c0_25] : memref<1x5x128xf32, #tpu.memory_space<vmem>>, vector<1x5x128xf32>
    %31 = vector.shape_cast %30 : vector<1x5x128xf32> to vector<5x128xf32>
    %32 = vector.shape_cast %29 : vector<5x128xf32> to vector<1x5x128xf32>
    tpu.vector_store %arg8[%c0_23, %c0_24, %c0_25], %32 {strides = array<i32>} : memref<1x5x128xf32, #tpu.memory_space<vmem>>, vector<1x5x128xf32>,
    return
  }
  func.func @transform_0(%arg0: i32) -> (i32, i32, i32) {
    %c0_i32 = arith.constant 0 : i32
    %c0_i32_0 = arith.constant 0 : i32
    %c0_i32_1 = arith.constant 0 : i32
    return %arg0, %c0_i32, %c0_i32_0 : i32, i32, i32
  }
  func.func @transform_1(%arg0: i32) -> (i32, i32, i32) {
    %c0_i32 = arith.constant 0 : i32
    %c0_i32_0 = arith.constant 0 : i32
    %c0_i32_1 = arith.constant 0 : i32
    return %arg0, %c0_i32, %c0_i32_0 : i32, i32, i32
  }
  func.func @transform_2(%arg0: i32) -> (i32, i32) {
    %c0_i32 = arith.constant 0 : i32
    %c0_i32_0 = arith.constant 0 : i32
    %c0_i32_1 = arith.constant 0 : i32
    return %c0_i32, %c0_i32_0 : i32, i32
  }
  func.func @transform_3(%arg0: i32) -> (i32, i32) {
    %c0_i32 = arith.constant 0 : i32
    %c0_i32_0 = arith.constant 0 : i32
    %c0_i32_1 = arith.constant 0 : i32
    return %c0_i32, %c0_i32_0 : i32, i32
  }
  func.func @transform_4(%arg0: i32) -> (i32, i32, i32) {
    %c0_i32 = arith.constant 0 : i32
    %c0_i32_0 = arith.constant 0 : i32
    %c0_i32_1 = arith.constant 0 : i32
    %c0_i32_2 = arith.constant 0 : i32
    return %c0_i32, %c0_i32_0, %c0_i32_1 : i32, i32, i32
  }
  func.func @transform_5(%arg0: i32) -> (i32, i32) {
    %c0_i32 = arith.constant 0 : i32
    %c0_i32_0 = arith.constant 0 : i32
    %c0_i32_1 = arith.constant 0 : i32
    return %c0_i32, %c0_i32_0 : i32, i32
  }
  func.func @transform_6(%arg0: i32) -> (i32, i32) {
    %c0_i32 = arith.constant 0 : i32
    %c0_i32_0 = arith.constant 0 : i32
    %c0_i32_1 = arith.constant 0 : i32
    return %c0_i32, %c0_i32_0 : i32, i32
  }
  func.func @transform_7(%arg0: i32) -> (i32, i32, i32) {
    %c0_i32 = arith.constant 0 : i32
    %c0_i32_0 = arith.constant 0 : i32
    %c0_i32_1 = arith.constant 0 : i32
    return %arg0, %c0_i32, %c0_i32_0 : i32, i32, i32
  }
}

module attributes {stable_mosaic.version = 11 : i64} {
  func.func @_mlp_kernel(%arg0: i32, %arg1: i32, %arg2: memref<8x400xf32, #tpu.memory_space<vmem>>, %arg3: memref<400x512xf32, #tpu.memory_space<vmem>>, %arg4: memref<1x512xf32, #tpu.memory_space<vmem>>, %arg5: memref<512x256xf32, #tpu.memory_space<vmem>>, %arg6: memref<1x256xf32, #tpu.memory_space<vmem>>, %arg7: memref<256x128xf32, #tpu.memory_space<vmem>>, %arg8: memref<1x128xf32, #tpu.memory_space<vmem>>, %arg9: memref<8x128xf32, #tpu.memory_space<vmem>>, %arg10: memref<8x512xf32, #tpu.memory_space<vmem>>) attributes {dimension_semantics = [#tpu.dimension_semantics<parallel>, #tpu.dimension_semantics<arbitrary>], iteration_bounds = array<i64: 1, 1>, scalar_prefetch = 0 : i64, scratch_operands = 1 : i64, tpu.core_type = #tpu.core_type<tc>, window_params = [{transform_indices = @transform_0, window_bounds = array<i64: 8, 400>}, {transform_indices = @transform_1, window_bounds = array<i64: 400, 512>}, {pipeline_mode = #tpu.pipeline_mode<synchronous>, transform_indices = @transform_2, window_bounds = array<i64: 1, 512>}, {pipeline_mode = #tpu.pipeline_mode<synchronous>, transform_indices = @transform_3, window_bounds = array<i64: 512, 256>}, {pipeline_mode = #tpu.pipeline_mode<synchronous>, transform_indices = @transform_4, window_bounds = array<i64: 1, 256>}, {pipeline_mode = #tpu.pipeline_mode<synchronous>, transform_indices = @transform_5, window_bounds = array<i64: 256, 128>}, {pipeline_mode = #tpu.pipeline_mode<synchronous>, transform_indices = @transform_6, window_bounds = array<i64: 1, 128>}, {transform_indices = @transform_7, window_bounds = array<i64: 8, 128>}]} {
    %c0_i32 = arith.constant 0 : i32
    %0 = arith.cmpi eq, %arg1, %c0_i32 : i32
    %1 = arith.extui %0 : i1 to i32
    %c0_i32_0 = arith.constant 0 : i32
    %2 = arith.cmpi ne, %1, %c0_i32_0 : i32
    scf.if %2 {
      %cst_10 = arith.constant 0.000000e+00 : f32
      %12 = vector.broadcast %cst_10 : f32 to vector<8x512xf32>
      %c0_11 = arith.constant 0 : index
      %c0_12 = arith.constant 0 : index
      %13 = vector.load %arg10[%c0_11, %c0_12] : memref<8x512xf32, #tpu.memory_space<vmem>>, vector<8x512xf32>
      tpu.vector_store %arg10[%c0_11, %c0_12], %12 {strides = array<i32>} : memref<8x512xf32, #tpu.memory_space<vmem>>, vector<8x512xf32>,
    } else {
    }
    %c0 = arith.constant 0 : index
    %c0_1 = arith.constant 0 : index
    %3 = vector.load %arg10[%c0, %c0_1] : memref<8x512xf32, #tpu.memory_space<vmem>>, vector<8x512xf32>
    %c0_2 = arith.constant 0 : index
    %c0_3 = arith.constant 0 : index
    %4 = vector.load %arg2[%c0_2, %c0_3] : memref<8x400xf32, #tpu.memory_space<vmem>>, vector<8x400xf32>
    %c0_4 = arith.constant 0 : index
    %c0_5 = arith.constant 0 : index
    %5 = vector.load %arg3[%c0_4, %c0_5] : memref<400x512xf32, #tpu.memory_space<vmem>>, vector<400x512xf32>
    %cst = arith.constant dense<0.000000e+00> : vector<8x512xf32>
    %6 = tpu.matmul %4, %5, %cst {dimension_numbers = #tpu.dot_dimension_numbers<[1], [0], [0], [1], [0, 0, 1, 1], [], []>} : vector<8x400xf32>, vector<400x512xf32>, vector<8x512xf32> -> vector<8x512xf32>
    %7 = arith.addf %3, %6 : vector<8x512xf32>
    %c0_6 = arith.constant 0 : index
    %c0_7 = arith.constant 0 : index
    %8 = vector.load %arg10[%c0_6, %c0_7] : memref<8x512xf32, #tpu.memory_space<vmem>>, vector<8x512xf32>
    tpu.vector_store %arg10[%c0_6, %c0_7], %7 {strides = array<i32>} : memref<8x512xf32, #tpu.memory_space<vmem>>, vector<8x512xf32>,
    %c0_i32_8 = arith.constant 0 : i32
    %9 = arith.cmpi eq, %arg1, %c0_i32_8 : i32
    %10 = arith.extui %9 : i1 to i32
    %c0_i32_9 = arith.constant 0 : i32
    %11 = arith.cmpi ne, %10, %c0_i32_9 : i32
    scf.if %11 {
      %c0_10 = arith.constant 0 : index
      %c0_11 = arith.constant 0 : index
      %12 = vector.load %arg10[%c0_10, %c0_11] : memref<8x512xf32, #tpu.memory_space<vmem>>, vector<8x512xf32>
      %c0_12 = arith.constant 0 : index
      %c0_13 = arith.constant 0 : index
      %13 = vector.load %arg4[%c0_12, %c0_13] : memref<1x512xf32, #tpu.memory_space<vmem>>, vector<1x512xf32>
      %14 = vector.broadcast %13 : vector<1x512xf32> to vector<8x512xf32>
      %15 = arith.addf %12, %14 : vector<8x512xf32>
      %cst_14 = arith.constant 0.000000e+00 : f32
      %16 = vector.broadcast %cst_14 : f32 to vector<8x512xf32>
      %17 = arith.maximumf %15, %16 : vector<8x512xf32>
      %c0_15 = arith.constant 0 : index
      %c0_16 = arith.constant 0 : index
      %18 = vector.load %arg5[%c0_15, %c0_16] : memref<512x256xf32, #tpu.memory_space<vmem>>, vector<512x256xf32>
      %cst_17 = arith.constant dense<0.000000e+00> : vector<8x256xf32>
      %19 = tpu.matmul %17, %18, %cst_17 {dimension_numbers = #tpu.dot_dimension_numbers<[1], [0], [0], [1], [0, 0, 1, 1], [], []>} : vector<8x512xf32>, vector<512x256xf32>, vector<8x256xf32> -> vector<8x256xf32>
      %c0_18 = arith.constant 0 : index
      %c0_19 = arith.constant 0 : index
      %20 = vector.load %arg6[%c0_18, %c0_19] : memref<1x256xf32, #tpu.memory_space<vmem>>, vector<1x256xf32>
      %21 = vector.broadcast %20 : vector<1x256xf32> to vector<8x256xf32>
      %22 = arith.addf %19, %21 : vector<8x256xf32>
      %cst_20 = arith.constant 0.000000e+00 : f32
      %23 = vector.broadcast %cst_20 : f32 to vector<8x256xf32>
      %24 = arith.maximumf %22, %23 : vector<8x256xf32>
      %c0_21 = arith.constant 0 : index
      %c0_22 = arith.constant 0 : index
      %25 = vector.load %arg7[%c0_21, %c0_22] : memref<256x128xf32, #tpu.memory_space<vmem>>, vector<256x128xf32>
      %cst_23 = arith.constant dense<0.000000e+00> : vector<8x128xf32>
      %26 = tpu.matmul %24, %25, %cst_23 {dimension_numbers = #tpu.dot_dimension_numbers<[1], [0], [0], [1], [0, 0, 1, 1], [], []>} : vector<8x256xf32>, vector<256x128xf32>, vector<8x128xf32> -> vector<8x128xf32>
      %c0_24 = arith.constant 0 : index
      %c0_25 = arith.constant 0 : index
      %27 = vector.load %arg8[%c0_24, %c0_25] : memref<1x128xf32, #tpu.memory_space<vmem>>, vector<1x128xf32>
      %28 = vector.broadcast %27 : vector<1x128xf32> to vector<8x128xf32>
      %29 = arith.addf %26, %28 : vector<8x128xf32>
      %cst_26 = arith.constant dense<0xFF800000> : vector<8xf32>
      %30 = vector.multi_reduction <maximumf>, %29, %cst_26 [1] : vector<8x128xf32> to vector<8xf32>
      %31 = vector.shape_cast %30 : vector<8xf32> to vector<8x1xf32>
      %32 = vector.broadcast %31 : vector<8x1xf32> to vector<8x128xf32>
      %33 = arith.subf %29, %32 : vector<8x128xf32>
      %34 = math.exp %33 : vector<8x128xf32>
      %cst_27 = arith.constant dense<0.000000e+00> : vector<8xf32>
      %35 = vector.multi_reduction <add>, %34, %cst_27 [1] : vector<8x128xf32> to vector<8xf32>
      %36 = vector.shape_cast %35 : vector<8xf32> to vector<8x1xf32>
      %37 = tpu.reciprocal %36 {approx = true} : vector<8x1xf32> -> vector<8x1xf32>
      %38 = vector.broadcast %37 : vector<8x1xf32> to vector<8x128xf32>
      %39 = arith.mulf %34, %38 : vector<8x128xf32>
      %c0_28 = arith.constant 0 : index
      %c0_29 = arith.constant 0 : index
      %40 = vector.load %arg9[%c0_28, %c0_29] : memref<8x128xf32, #tpu.memory_space<vmem>>, vector<8x128xf32>
      tpu.vector_store %arg9[%c0_28, %c0_29], %39 {strides = array<i32>} : memref<8x128xf32, #tpu.memory_space<vmem>>, vector<8x128xf32>,
    } else {
    }
    return
  }
  func.func @transform_0(%arg0: i32, %arg1: i32) -> (i32, i32) {
    %c0_i32 = arith.constant 0 : i32
    return %arg0, %arg1 : i32, i32
  }
  func.func @transform_1(%arg0: i32, %arg1: i32) -> (i32, i32) {
    %c0_i32 = arith.constant 0 : i32
    %c0_i32_0 = arith.constant 0 : i32
    return %arg1, %c0_i32 : i32, i32
  }
  func.func @transform_2(%arg0: i32, %arg1: i32) -> (i32, i32) {
    %c0_i32 = arith.constant 0 : i32
    %c0_i32_0 = arith.constant 0 : i32
    %c0_i32_1 = arith.constant 0 : i32
    return %c0_i32, %c0_i32_0 : i32, i32
  }
  func.func @transform_3(%arg0: i32, %arg1: i32) -> (i32, i32) {
    %c0_i32 = arith.constant 0 : i32
    %c0_i32_0 = arith.constant 0 : i32
    %c0_i32_1 = arith.constant 0 : i32
    return %c0_i32, %c0_i32_0 : i32, i32
  }
  func.func @transform_4(%arg0: i32, %arg1: i32) -> (i32, i32) {
    %c0_i32 = arith.constant 0 : i32
    %c0_i32_0 = arith.constant 0 : i32
    %c0_i32_1 = arith.constant 0 : i32
    return %c0_i32, %c0_i32_0 : i32, i32
  }
  func.func @transform_5(%arg0: i32, %arg1: i32) -> (i32, i32) {
    %c0_i32 = arith.constant 0 : i32
    %c0_i32_0 = arith.constant 0 : i32
    %c0_i32_1 = arith.constant 0 : i32
    return %c0_i32, %c0_i32_0 : i32, i32
  }
  func.func @transform_6(%arg0: i32, %arg1: i32) -> (i32, i32) {
    %c0_i32 = arith.constant 0 : i32
    %c0_i32_0 = arith.constant 0 : i32
    %c0_i32_1 = arith.constant 0 : i32
    return %c0_i32, %c0_i32_0 : i32, i32
  }
  func.func @transform_7(%arg0: i32, %arg1: i32) -> (i32, i32) {
    %c0_i32 = arith.constant 0 : i32
    %c0_i32_0 = arith.constant 0 : i32
    return %arg0, %c0_i32 : i32, i32
  }
}

</mosaic_0001>

<llo_original>
// kernel: tile.33
$region0: #{tile.33}
  #allocation0 [shape = 's32[1]{0}', space=sflag, size = 0x4, scoped, tag = 'scoped memory for tile.33']
  %s0 = inlined_call_operand.vmem [shape: f32[8], index: 0, kind: input, shape index: {}]
  %s1 = inlined_call_operand.vmem [shape: f32[29,8], index: 1, kind: output, shape index: {}]
  // Predicated region
  $region2: #{tile.33} parent=0 // pred_check
    _
  $region3: #{tile.33} parent=0 // pred_check_branch
    %3 = sbr.rel (0) target = $region5
  $region4: #{tile.33} parent=0 // pred_region
    _
  $region5: #{tile.33} parent=0 // pred_fallthru
    _
  %v4 = vld [vmem:[%s0] ss:$0 sm:$0xff]
  %5 = vst [vmem:[%s1] sm:$0xff] %v4
  %s6 = scalar_lea.vmem %s1, 8
  %7 = vst [vmem:[%s6] sm:$0xff] %v4
  %s8 = scalar_lea.vmem %s1, 16
  %9 = vst [vmem:[%s8] sm:$0xff] %v4
  %s10 = scalar_lea.vmem %s1, 24
  %11 = vst [vmem:[%s10] sm:$0xff] %v4

// kernel: tile.34
$region0: #{tile.34}
  %s0 = inlined_call_operand.vmem [shape: f32[29,8], index: 0, kind: input, shape index: {}]
  %s1 = inlined_call_operand.vmem [shape: f32[1,232], index: 1, kind: output, shape index: {}]
  $region1: #{tile.34} parent=0
    #allocation0 [shape = 'u8[8192]{0}', space=vmem, size = 0x2000, scoped, tag = 'scoped mem for output reshape']
    %s2 = smov 3
    %v3 = vld [vmem:[%s0] ss:$16 sm:%s2]
    %vm4 = vcmask 64512
    %5 = vst.msk [vmem:[#allocation0] ss:$8 sm:$0x3] %vm4, %v3
    %s6 = scalar_lea.vmem %s0, 15
    %v7 = vld [vmem:[%s6] sm:$0x1]
    %8 = vrot.lane.b32.xlu0 %v7, 120
    %v9 = vpop.permute.xlu0 %8
    %vm10 = vcmask 1048512
    %11 = vst.msk [vmem:[#allocation0] sm:$0x1] %vm10, %v9
    %s12 = scalar_lea.vmem %s0, 14
    %v13 = vld [vmem:[%s12] sm:$0x1]
    %14 = vrot.lane.b32.xlu0 %v13, 112
    %v15 = vpop.permute.xlu0 %14
    %vm16 = vcmask 982912
    %17 = vst.msk [vmem:[#allocation0] sm:$0x1] %vm16, %v15
    %s18 = scalar_lea.vmem %s0, 13
    %v19 = vld [vmem:[%s18] sm:$0x1]
    %20 = vrot.lane.b32.xlu0 %v19, 104
    %v21 = vpop.permute.xlu0 %20
    %vm22 = vcmask 917312
    %23 = vst.msk [vmem:[#allocation0] sm:$0x1] %vm22, %v21
    %s24 = scalar_lea.vmem %s0, 12
    %s25 = smov 3
    %v26 = vld [vmem:[%s24] ss:$16 sm:%s25]
    %27 = vrot.lane.b32.xlu0 %v26, 96
    %v28 = vpop.permute.xlu0 %27
    %vm29 = vcmask 851712
    %30 = vst.msk [vmem:[#allocation0] ss:$8 sm:$0x3] %vm29, %v28
    %s31 = scalar_lea.vmem %s0, 11
    %s32 = smov 3
    %v33 = vld [vmem:[%s31] ss:$16 sm:%s32]
    %34 = vrot.lane.b32.xlu0 %v33, 88
    %v35 = vpop.permute.xlu0 %34
    %vm36 = vcmask 786112
    %37 = vst.msk [vmem:[#allocation0] ss:$8 sm:$0x3] %vm36, %v35
    %s38 = scalar_lea.vmem %s0, 10
    %s39 = smov 3
    %v40 = vld [vmem:[%s38] ss:$16 sm:%s39]
    %41 = vrot.lane.b32.xlu0 %v40, 80
    %v42 = vpop.permute.xlu0 %41
    %vm43 = vcmask 720512
    %44 = vst.msk [vmem:[#allocation0] ss:$8 sm:$0x3] %vm43, %v42
    %s45 = scalar_lea.vmem %s0, 9
    %s46 = smov 3
    %v47 = vld [vmem:[%s45] ss:$16 sm:%s46]
    %48 = vrot.lane.b32.xlu0 %v47, 72
    %v49 = vpop.permute.xlu0 %48
    %vm50 = vcmask 654912
    %51 = vst.msk [vmem:[#allocation0] ss:$8 sm:$0x3] %vm50, %v49
    %s52 = scalar_lea.vmem %s0, 8
    %s53 = smov 3
    %v54 = vld [vmem:[%s52] ss:$16 sm:%s53]
    %55 = vrot.lane.b32.xlu0 %v54, 64
    %v56 = vpop.permute.xlu0 %55
    %vm57 = vcmask 589312
    %58 = vst.msk [vmem:[#allocation0] ss:$8 sm:$0x3] %vm57, %v56
    %s59 = scalar_lea.vmem %s0, 7
    %s60 = smov 3
    %v61 = vld [vmem:[%s59] ss:$16 sm:%s60]
    %62 = vrot.lane.b32.xlu0 %v61, 56
    %v63 = vpop.permute.xlu0 %62
    %vm64 = vcmask 523712
    %65 = vst.msk [vmem:[#allocation0] ss:$8 sm:$0x3] %vm64, %v63
    %s66 = scalar_lea.vmem %s0, 6
    %s67 = smov 3
    %v68 = vld [vmem:[%s66] ss:$16 sm:%s67]
    %69 = vrot.lane.b32.xlu0 %v68, 48
    %v70 = vpop.permute.xlu0 %69
    %vm71 = vcmask 458112
    %72 = vst.msk [vmem:[#allocation0] ss:$8 sm:$0x3] %vm71, %v70
    %s73 = scalar_lea.vmem %s0, 5
    %s74 = smov 3
    %v75 = vld [vmem:[%s73] ss:$16 sm:%s74]
    %76 = vrot.lane.b32.xlu0 %v75, 40
    %v77 = vpop.permute.xlu0 %76
    %vm78 = vcmask 392512
    %79 = vst.msk [vmem:[#allocation0] ss:$8 sm:$0x3] %vm78, %v77
    %s80 = scalar_lea.vmem %s0, 4
    %s81 = smov 3
    %v82 = vld [vmem:[%s80] ss:$16 sm:%s81]
    %83 = vrot.lane.b32.xlu0 %v82, 32
    %v84 = vpop.permute.xlu0 %83
    %vm85 = vcmask 326912
    %86 = vst.msk [vmem:[#allocation0] ss:$8 sm:$0x3] %vm85, %v84
    %s87 = scalar_lea.vmem %s0, 3
    %s88 = smov 3
    %v89 = vld [vmem:[%s87] ss:$16 sm:%s88]
    %90 = vrot.lane.b32.xlu0 %v89, 24
    %v91 = vpop.permute.xlu0 %90
    %vm92 = vcmask 261312
    %93 = vst.msk [vmem:[#allocation0] ss:$8 sm:$0x3] %vm92, %v91
    %s94 = scalar_lea.vmem %s0, 2
    %s95 = smov 3
    %v96 = vld [vmem:[%s94] ss:$16 sm:%s95]
    %97 = vrot.lane.b32.xlu0 %v96, 16
    %v98 = vpop.permute.xlu0 %97
    %vm99 = vcmask 195712
    %100 = vst.msk [vmem:[#allocation0] ss:$8 sm:$0x3] %vm99, %v98
    %s101 = scalar_lea.vmem %s0, 1
    %s102 = smov 3
    %v103 = vld [vmem:[%s101] ss:$16 sm:%s102]
    %104 = vrot.lane.b32.xlu0 %v103, 8
    %v105 = vpop.permute.xlu0 %104
    %vm106 = vcmask 130112
    %107 = vst.msk [vmem:[#allocation0] ss:$8 sm:$0x3] %vm106, %v105
    %s109 = ssub.s32 2, 1
    %v110 = vld [vmem:[#allocation0] sm:%s109]
    %s112 = ssub.s32 2, 1
    %113 = vst [vmem:[%s1] sm:%s112] %v110
    %s114 = scalar_lea.vmem [#allocation0], 8
    %v115 = vld [vmem:[%s114] sm:%s109]
    %s117 = ssub.s32 2, 1
    %s118 = scalar_lea.vmem %s1, 1
    %119 = vst [vmem:[%s118] sm:%s117] %v115

// kernel: dmsnet_forward.3
$region0: #{dmsnet_forward.3}
  #allocation0 [shape = 'u32[]', space=smem, size = 0x4, offset = 0x4, fixed_abs, tag = 'smem constant byte address 0x4 - core index']
  #allocation1 [shape = 'u32[72,128]{1,0:T(1,128)}', space=vmem, size = 0x9000, scoped, tag = 'internal scratch']
  %s0 = inlined_call_operand.vmem [shape: f32[2,14,384], index: 0, kind: input, shape index: {}]
  %s1 = inlined_call_operand.vmem [shape: f32[2,14,384], index: 1, kind: input, shape index: {}]
  %s2 = inlined_call_operand.vmem [shape: f32[384,232], index: 2, kind: input, shape index: {}]
  %s3 = inlined_call_operand.vmem [shape: f32[1,232], index: 3, kind: input, shape index: {}]
  %s4 = inlined_call_operand.vmem [shape: f32[2,232,128], index: 4, kind: input, shape index: {}]
  %s5 = inlined_call_operand.vmem [shape: f32[1,128], index: 5, kind: input, shape index: {}]
  %s6 = inlined_call_operand.vmem [shape: f32[1,128], index: 6, kind: input, shape index: {}]
  %s7 = inlined_call_operand.vmem [shape: f32[2,14,128], index: 7, kind: output, shape index: {}]
  %s8 = sld [smem:[#allocation0]]
  $region61: #{dmsnet_forward.3} parent=0
    _
  %s10 = ssub.s32 1, %s8
  %s11 = scalar_select 0, %s10, %s8
  loop: start=0, step=1, limit=4
  $region2: #{dmsnet_forward.3} parent=0 // loop_pre_header
    _
  $region3: #{dmsnet_forward.3} parent=0 // loop_header
    %s13 = sphi 0, %s17
    %p14 = scmp.ge.s32.totalorder %s13, 4
    %s23 = sphi 0, %s25
    %s26 = sphi 0, %s23
    %s27 = sphi 0, %s26
    %s43 = sphi 0, %s27
    %s49 = sphi 0, %s51
    %s52 = sphi 0, %s49
    %s53 = sphi 0, %s52
    %s69 = sphi 0, %s53
    %s73 = sphi 0, %s73
    %s75 = sphi 0, %s73
    %s76 = sphi 0, %s75
    %s90 = sphi 0, %s76
    %s94 = sphi 0, %s94
    %s96 = sphi 0, %s94
    %s97 = sphi 0, %s96
    %s111 = sphi 0, %s97
    %s115 = sphi 0, %s115
    %s117 = sphi 0, %s115
    %s118 = sphi 0, %s117
    %s132 = sphi 0, %s118
    %s136 = sphi 0, %s136
    %s138 = sphi 0, %s136
    %s139 = sphi 0, %s138
    %s153 = sphi 0, %s139
    %s157 = sphi 0, %s157
    %s159 = sphi 0, %s157
    %s160 = sphi 0, %s159
    %s174 = sphi 0, %s160
    %s180 = sphi 0, %s182
    %s183 = sphi 0, %s180
    %s184 = sphi 0, %s183
    %s200 = sphi 0, %s184
  $region4: #{dmsnet_forward.3} parent=0 // loop_header_branch
    %16 = sbr.rel (%p14) target = $region8
  $region5: #{dmsnet_forward.3} parent=0 // loop_body
    %s18 = ssub.s32 %s13, 1
    %s19 = ssub.s32 %s13, 2
    %s20 = sadd.s32 %s13, 1
    %s21 = ssub.s32 %s13, %s20
    %p22 = scmp.eq.s32.totalorder %s21, 0
    %s24 = sadd.s32 %s23, 1
    %s25 = scalar_select %p22, %s23, %s24
    %p28 = pneg %p22
    %p29 = scmp.eq.s32.totalorder %s13, 1
    %p30 = por %p28, %p29
    %p31 = scmp.ne.s32.totalorder %s23, %s26
    %p32 = scmp.eq.s32.totalorder %s13, 0
    %p33 = por %p31, %p32
    %p34 = scmp.ne.s32.totalorder %s23, %s26
    %p35 = scmp.eq.s32.totalorder %s18, 1
    %p36 = por %p34, %p35
    %p37 = scmp.ne.s32.totalorder %s26, %s27
    %p38 = scmp.eq.s32.totalorder %s18, 0
    %p39 = por %p37, %p38
    %p40 = scmp.ne.s32.totalorder %s26, %s27
    %p41 = scmp.eq.s32.totalorder %s19, 1
    %p42 = por %p40, %p41
    %p44 = scmp.ne.s32.totalorder %s27, %s43
    %p45 = scmp.eq.s32.totalorder %s19, 0
    %p46 = por %p44, %p45
    %s47 = ssub.s32 %s13, %s20
    %p48 = scmp.eq.s32.totalorder %s47, 0
    %s50 = sadd.s32 %s49, 1
    %s51 = scalar_select %p48, %s49, %s50
    %p54 = pneg %p48
    %p55 = scmp.eq.s32.totalorder %s13, 1
    %p56 = por %p54, %p55
    %p57 = scmp.ne.s32.totalorder %s49, %s52
    %p58 = scmp.eq.s32.totalorder %s13, 0
    %p59 = por %p57, %p58
    %p60 = scmp.ne.s32.totalorder %s49, %s52
    %p61 = scmp.eq.s32.totalorder %s18, 1
    %p62 = por %p60, %p61
    %p63 = scmp.ne.s32.totalorder %s52, %s53
    %p64 = scmp.eq.s32.totalorder %s18, 0
    %p65 = por %p63, %p64
    %p66 = scmp.ne.s32.totalorder %s52, %s53
    %p67 = scmp.eq.s32.totalorder %s19, 1
    %p68 = por %p66, %p67
    %p70 = scmp.ne.s32.totalorder %s53, %s69
    %p71 = scmp.eq.s32.totalorder %s19, 0
    %p72 = por %p70, %p71
    %s74 = sadd.s32 %s73, 1
    %p77 = scmp.eq.s32.totalorder %s13, 1
    %p78 = scmp.ne.s32.totalorder %s73, %s75
    %p79 = scmp.eq.s32.totalorder %s13, 0
    %p80 = por %p78, %p79
    %p81 = scmp.ne.s32.totalorder %s73, %s75
    %p82 = scmp.eq.s32.totalorder %s18, 1
    %p83 = por %p81, %p82
    %p84 = scmp.ne.s32.totalorder %s75, %s76
    %p85 = scmp.eq.s32.totalorder %s18, 0
    %p86 = por %p84, %p85
    %p87 = scmp.ne.s32.totalorder %s75, %s76
    %p88 = scmp.eq.s32.totalorder %s19, 1
    %p89 = por %p87, %p88
    %p91 = scmp.ne.s32.totalorder %s76, %s90
    %p92 = scmp.eq.s32.totalorder %s19, 0
    %p93 = por %p91, %p92
    %s95 = sadd.s32 %s94, 1
    %p98 = scmp.eq.s32.totalorder %s13, 1
    %p99 = scmp.ne.s32.totalorder %s94, %s96
    %p100 = scmp.eq.s32.totalorder %s13, 0
    %p101 = por %p99, %p100
    %p102 = scmp.ne.s32.totalorder %s94, %s96
    %p103 = scmp.eq.s32.totalorder %s18, 1
    %p104 = por %p102, %p103
    %p105 = scmp.ne.s32.totalorder %s96, %s97
    %p106 = scmp.eq.s32.totalorder %s18, 0
    %p107 = por %p105, %p106
    %p108 = scmp.ne.s32.totalorder %s96, %s97
    %p109 = scmp.eq.s32.totalorder %s19, 1
    %p110 = por %p108, %p109
    %p112 = scmp.ne.s32.totalorder %s97, %s111
    %p113 = scmp.eq.s32.totalorder %s19, 0
    %p114 = por %p112, %p113
    %s116 = sadd.s32 %s115, 1
    %p119 = scmp.eq.s32.totalorder %s13, 1
    %p120 = scmp.ne.s32.totalorder %s115, %s117
    %p121 = scmp.eq.s32.totalorder %s13, 0
    %p122 = por %p120, %p121
    %p123 = scmp.ne.s32.totalorder %s115, %s117
    %p124 = scmp.eq.s32.totalorder %s18, 1
    %p125 = por %p123, %p124
    %p126 = scmp.ne.s32.totalorder %s117, %s118
    %p127 = scmp.eq.s32.totalorder %s18, 0
    %p128 = por %p126, %p127
    %p129 = scmp.ne.s32.totalorder %s117, %s118
    %p130 = scmp.eq.s32.totalorder %s19, 1
    %p131 = por %p129, %p130
    %p133 = scmp.ne.s32.totalorder %s118, %s132
    %p134 = scmp.eq.s32.totalorder %s19, 0
    %p135 = por %p133, %p134
    %s137 = sadd.s32 %s136, 1
    %p140 = scmp.eq.s32.totalorder %s13, 1
    %p141 = scmp.ne.s32.totalorder %s136, %s138
    %p142 = scmp.eq.s32.totalorder %s13, 0
    %p143 = por %p141, %p142
    %p144 = scmp.ne.s32.totalorder %s136, %s138
    %p145 = scmp.eq.s32.totalorder %s18, 1
    %p146 = por %p144, %p145
    %p147 = scmp.ne.s32.totalorder %s138, %s139
    %p148 = scmp.eq.s32.totalorder %s18, 0
    %p149 = por %p147, %p148
    %p150 = scmp.ne.s32.totalorder %s138, %s139
    %p151 = scmp.eq.s32.totalorder %s19, 1
    %p152 = por %p150, %p151
    %p154 = scmp.ne.s32.totalorder %s139, %s153
    %p155 = scmp.eq.s32.totalorder %s19, 0
    %p156 = por %p154, %p155
    %s158 = sadd.s32 %s157, 1
    %p161 = scmp.eq.s32.totalorder %s13, 1
    %p162 = scmp.ne.s32.totalorder %s157, %s159
    %p163 = scmp.eq.s32.totalorder %s13, 0
    %p164 = por %p162, %p163
    %p165 = scmp.ne.s32.totalorder %s157, %s159
    %p166 = scmp.eq.s32.totalorder %s18, 1
    %p167 = por %p165, %p166
    %p168 = scmp.ne.s32.totalorder %s159, %s160
    %p169 = scmp.eq.s32.totalorder %s18, 0
    %p170 = por %p168, %p169
    %p171 = scmp.ne.s32.totalorder %s159, %s160
    %p172 = scmp.eq.s32.totalorder %s19, 1
    %p173 = por %p171, %p172
    %p175 = scmp.ne.s32.totalorder %s160, %s174
    %p176 = scmp.eq.s32.totalorder %s19, 0
    %p177 = por %p175, %p176
    %s178 = ssub.s32 %s13, %s20
    %p179 = scmp.eq.s32.totalorder %s178, 0
    %s181 = sadd.s32 %s180, 1
    %s182 = scalar_select %p179, %s180, %s181
    %p185 = pneg %p179
    %p186 = scmp.eq.s32.totalorder %s13, 1
    %p187 = por %p185, %p186
    %p188 = scmp.ne.s32.totalorder %s180, %s183
    %p189 = scmp.eq.s32.totalorder %s13, 0
    %p190 = por %p188, %p189
    %p191 = scmp.ne.s32.totalorder %s180, %s183
    %p192 = scmp.eq.s32.totalorder %s18, 1
    %p193 = por %p191, %p192
    %p194 = scmp.ne.s32.totalorder %s183, %s184
    %p195 = scmp.eq.s32.totalorder %s18, 0
    %p196 = por %p194, %p195
    %p197 = scmp.ne.s32.totalorder %s183, %s184
    %p198 = scmp.eq.s32.totalorder %s19, 1
    %p199 = por %p197, %p198
    %p201 = scmp.ne.s32.totalorder %s184, %s200
    %p202 = scmp.eq.s32.totalorder %s19, 0
    %p203 = por %p201, %p202
    %p204 = scmp.le.s32.totalorder 1, %s13
    %p205 = scmp.lt.s32.totalorder %s13, 3
    %p206 = pnand %p204, %p205
    %p207 = pneg %p206
    // Predicated region
    $region9: #{dmsnet_forward.3} parent=5 // pred_check
      _
    $region10: #{dmsnet_forward.3} parent=5 // pred_check_branch
      %209 = sbr.rel (%p206) target = $region12
    $region11: #{dmsnet_forward.3} parent=5 // pred_region
      %s210 = ssub.s32 %s13, 1
      // Predicated region
      $region13: #{dmsnet_forward.3} parent=11 // pred_check
        %p211 = pneg %p86
      $region14: #{dmsnet_forward.3} parent=11 // pred_check_branch
        %213 = sbr.rel (%p211) target = $region16
      $region15: #{dmsnet_forward.3} parent=11 // pred_region
        _
      $region16: #{dmsnet_forward.3} parent=11 // pred_fallthru
        _
      // Predicated region
      $region17: #{dmsnet_forward.3} parent=11 // pred_check
        %p214 = pneg %p107
      $region18: #{dmsnet_forward.3} parent=11 // pred_check_branch
        %216 = sbr.rel (%p214) target = $region20
      $region19: #{dmsnet_forward.3} parent=11 // pred_region
        _
      $region20: #{dmsnet_forward.3} parent=11 // pred_fallthru
        _
      // Predicated region
      $region21: #{dmsnet_forward.3} parent=11 // pred_check
        %p217 = pneg %p128
      $region22: #{dmsnet_forward.3} parent=11 // pred_check_branch
        %219 = sbr.rel (%p217) target = $region24
      $region23: #{dmsnet_forward.3} parent=11 // pred_region
        _
      $region24: #{dmsnet_forward.3} parent=11 // pred_fallthru
        _
      // Predicated region
      $region25: #{dmsnet_forward.3} parent=11 // pred_check
        %p220 = pneg %p149
      $region26: #{dmsnet_forward.3} parent=11 // pred_check_branch
        %222 = sbr.rel (%p220) target = $region28
      $region27: #{dmsnet_forward.3} parent=11 // pred_region
        _
      $region28: #{dmsnet_forward.3} parent=11 // pred_fallthru
        _
      // Predicated region
      $region29: #{dmsnet_forward.3} parent=11 // pred_check
        %p223 = pneg %p170
      $region30: #{dmsnet_forward.3} parent=11 // pred_check_branch
        %225 = sbr.rel (%p223) target = $region32
      $region31: #{dmsnet_forward.3} parent=11 // pred_region
        _
      $region32: #{dmsnet_forward.3} parent=11 // pred_fallthru
        _
    $region12: #{dmsnet_forward.3} parent=5 // pred_fallthru
      _
    %p226 = scmp.lt.s32.totalorder %s13, 2
    // Predicated region
    $region33: #{dmsnet_forward.3} parent=5 // pred_check
      %p227 = pneg %p226
    $region34: #{dmsnet_forward.3} parent=5 // pred_check_branch
      %229 = sbr.rel (%p227) target = $region36
    $region35: #{dmsnet_forward.3} parent=5 // pred_region
      // Predicated region
      $region37: #{dmsnet_forward.3} parent=35 // pred_check
        %p230 = pneg %p33
      $region38: #{dmsnet_forward.3} parent=35 // pred_check_branch
        %232 = sbr.rel (%p230) target = $region40
      $region39: #{dmsnet_forward.3} parent=35 // pred_region
        %p233 = scmp.lt.s32.totalorder %s13, 1
        %s234 = scalar_select %p233, %s13, 1
        %s235 = smul.addr %s234, 6
        %s236 = smul.addr %s235, 8
        %s237 = scalar_lea.vmem %s0, %s236
      $region40: #{dmsnet_forward.3} parent=35 // pred_fallthru
        _
      // Predicated region
      $region41: #{dmsnet_forward.3} parent=35 // pred_check
        %p238 = pneg %p59
      $region42: #{dmsnet_forward.3} parent=35 // pred_check_branch
        %240 = sbr.rel (%p238) target = $region44
      $region43: #{dmsnet_forward.3} parent=35 // pred_region
        %p241 = scmp.lt.s32.totalorder %s13, 1
        %s242 = scalar_select %p241, %s13, 1
        %s243 = smul.addr %s242, 6
        %s244 = smul.addr %s243, 8
        %s245 = scalar_lea.vmem %s1, %s244
      $region44: #{dmsnet_forward.3} parent=35 // pred_fallthru
        _
    $region36: #{dmsnet_forward.3} parent=5 // pred_fallthru
      _
    %p246 = scmp.le.s32.totalorder 1, %s13
    %p247 = scmp.lt.s32.totalorder %s13, 3
    %p248 = pnand %p246, %p247
    %p249 = pneg %p248
    // Predicated region
    $region45: #{dmsnet_forward.3} parent=5 // pred_check
      _
    $region46: #{dmsnet_forward.3} parent=5 // pred_check_branch
      %251 = sbr.rel (%p248) target = $region48
    $region47: #{dmsnet_forward.3} parent=5 // pred_region
      %s252 = ssub.s32 %s13, 1
      %p253 = scmp.lt.s32.totalorder %s18, 1
      %s254 = scalar_select %p253, %s18, 1
      %s255 = smul.addr %s254, 6
      %s256 = smul.addr %s255, 8
      %s257 = scalar_lea.vmem %s0, %s256
      %p258 = pneg %p39
      %p259 = pneg %p36
      %p260 = scmp.lt.s32.totalorder %s18, 1
      %s261 = scalar_select %p260, %s18, 1
      %s262 = smul.addr %s261, 6
      %s263 = smul.addr %s262, 8
      %s264 = scalar_lea.vmem %s1, %s263
      %p265 = pneg %p65
      %p266 = pneg %p62
      %p267 = pneg %p86
      %p268 = pneg %p83
      %p269 = pneg %p107
      %p270 = pneg %p104
      %p271 = pneg %p128
      %p272 = pneg %p125
      %p273 = pneg %p149
      %p274 = pneg %p146
      %p275 = pneg %p170
      %p276 = pneg %p167
      %p277 = pneg %p196
      %p278 = pneg %p193
      %p279 = scmp.lt.s32.totalorder %s18, 1
      %s280 = scalar_select %p279, %s18, 1
      %s281 = smul.addr %s280, 2
      %s282 = smul.addr %s281, 8
      %s283 = scalar_lea.vmem %s7, %s282
      %p284 = scmp.lt.s32.totalorder %s18, 1
      %s285 = scalar_select %p284, %s18, 1
      %s286 = smul.addr %s285, 6
      %s287 = smul.addr %s286, 8
      %s288 = scalar_lea.vmem %s0, %s287
      %p289 = scmp.lt.s32.totalorder %s18, 1
      %s290 = scalar_select %p289, %s18, 1
      %s291 = smul.addr %s290, 6
      %s292 = smul.addr %s291, 8
      %s293 = scalar_lea.vmem %s1, %s292
      %p294 = scmp.lt.s32.totalorder %s18, 1
      %s295 = scalar_select %p294, %s18, 1
      %s296 = smul.addr %s295, 2
      %s297 = smul.addr %s296, 8
      %s298 = scalar_lea.vmem %s7, %s297
      %v299 = vld [vmem:[%s2] sm:$0xff]
      %v300 = vld [vmem:[%s2 + $0x8] sm:$0xff]
      %v301 = vld [vmem:[%s2 + $0x10] sm:$0xff]
      %v302 = vld [vmem:[%s2 + $0x18] sm:$0xff]
      %v303 = vld [vmem:[%s2 + $0x20] sm:$0xff]
      %v304 = vld [vmem:[%s2 + $0x28] sm:$0xff]
      %v305 = vld [vmem:[%s2 + $0x30] sm:$0xff]
      %v306 = vld [vmem:[%s2 + $0x38] sm:$0xff]
      %v307 = vld [vmem:[%s2 + $0x40] sm:$0xff]
      %v308 = vld [vmem:[%s2 + $0x48] sm:$0xff]
      %v309 = vld [vmem:[%s2 + $0x50] sm:$0xff]
      %v310 = vld [vmem:[%s2 + $0x58] sm:$0xff]
      %v311 = vld [vmem:[%s2 + $0x60] sm:$0xff]
      %v312 = vld [vmem:[%s2 + $0x68] sm:$0xff]
      %v313 = vld [vmem:[%s2 + $0x70] sm:$0xff]
      %v314 = vld [vmem:[%s2 + $0x78] sm:$0xff]
      %v315 = vld [vmem:[%s2 + $0x80] sm:$0xff]
      %v316 = vld [vmem:[%s2 + $0x88] sm:$0xff]
      %v317 = vld [vmem:[%s2 + $0x90] sm:$0xff]
      %v318 = vld [vmem:[%s2 + $0x98] sm:$0xff]
      %v319 = vld [vmem:[%s2 + $0xa0] sm:$0xff]
      %v320 = vld [vmem:[%s2 + $0xa8] sm:$0xff]
      %v321 = vld [vmem:[%s2 + $0xb0] sm:$0xff]
      %v322 = vld [vmem:[%s2 + $0xb8] sm:$0xff]
      %v323 = vld [vmem:[%s2 + $0xc0] sm:$0xff]
      %v324 = vld [vmem:[%s2 + $0xc8] sm:$0xff]
      %v325 = vld [vmem:[%s2 + $0xd0] sm:$0xff]
      %v326 = vld [vmem:[%s2 + $0xd8] sm:$0xff]
      %v327 = vld [vmem:[%s2 + $0xe0] sm:$0xff]
      %v328 = vld [vmem:[%s2 + $0xe8] sm:$0xff]
      %v329 = vld [vmem:[%s2 + $0xf0] sm:$0xff]
      %v330 = vld [vmem:[%s2 + $0xf8] sm:$0xff]
      %v331 = vld [vmem:[%s2 + $0x100] sm:$0xff]
      %v332 = vld [vmem:[%s2 + $0x108] sm:$0xff]
      %v333 = vld [vmem:[%s2 + $0x110] sm:$0xff]
      %v334 = vld [vmem:[%s2 + $0x118] sm:$0xff]
      %v335 = vld [vmem:[%s2 + $0x120] sm:$0xff]
      %v336 = vld [vmem:[%s2 + $0x128] sm:$0xff]
      %v337 = vld [vmem:[%s2 + $0x130] sm:$0xff]
      %v338 = vld [vmem:[%s2 + $0x138] sm:$0xff]
      %v339 = vld [vmem:[%s2 + $0x140] sm:$0xff]
      %v340 = vld [vmem:[%s2 + $0x148] sm:$0xff]
      %v341 = vld [vmem:[%s2 + $0x150] sm:$0xff]
      %v342 = vld [vmem:[%s2 + $0x158] sm:$0xff]
      %v343 = vld [vmem:[%s2 + $0x160] sm:$0xff]
      %v344 = vld [vmem:[%s2 + $0x168] sm:$0xff]
      %v345 = vld [vmem:[%s2 + $0x170] sm:$0xff]
      %v346 = vld [vmem:[%s2 + $0x178] sm:$0xff]
      %v347 = vld [vmem:[%s2 + $0x180] sm:$0xff]
      %v348 = vld [vmem:[%s2 + $0x188] sm:$0xff]
      %v349 = vld [vmem:[%s2 + $0x190] sm:$0xff]
      %v350 = vld [vmem:[%s2 + $0x198] sm:$0xff]
      %v351 = vld [vmem:[%s2 + $0x1a0] sm:$0xff]
      %v352 = vld [vmem:[%s2 + $0x1a8] sm:$0xff]
      %v353 = vld [vmem:[%s2 + $0x1b0] sm:$0xff]
      %v354 = vld [vmem:[%s2 + $0x1b8] sm:$0xff]
      %v355 = vld [vmem:[%s2 + $0x1c0] sm:$0xff]
      %v356 = vld [vmem:[%s2 + $0x1c8] sm:$0xff]
      %v357 = vld [vmem:[%s2 + $0x1d0] sm:$0xff]
      %v358 = vld [vmem:[%s2 + $0x1d8] sm:$0xff]
      %v359 = vld [vmem:[%s2 + $0x1e0] sm:$0xff]
      %v360 = vld [vmem:[%s2 + $0x1e8] sm:$0xff]
      %v361 = vld [vmem:[%s2 + $0x1f0] sm:$0xff]
      %v362 = vld [vmem:[%s2 + $0x1f8] sm:$0xff]
      %v363 = vld [vmem:[%s2 + $0x200] sm:$0xff]
      %v364 = vld [vmem:[%s2 + $0x208] sm:$0xff]
      %v365 = vld [vmem:[%s2 + $0x210] sm:$0xff]
      %v366 = vld [vmem:[%s2 + $0x218] sm:$0xff]
      %v367 = vld [vmem:[%s2 + $0x220] sm:$0xff]
      %v368 = vld [vmem:[%s2 + $0x228] sm:$0xff]
      %v369 = vld [vmem:[%s2 + $0x230] sm:$0xff]
      %v370 = vld [vmem:[%s2 + $0x238] sm:$0xff]
      %v371 = vld [vmem:[%s2 + $0x240] sm:$0xff]
      %v372 = vld [vmem:[%s2 + $0x248] sm:$0xff]
      %v373 = vld [vmem:[%s2 + $0x250] sm:$0xff]
      %v374 = vld [vmem:[%s2 + $0x258] sm:$0xff]
      %v375 = vld [vmem:[%s2 + $0x260] sm:$0xff]
      %v376 = vld [vmem:[%s2 + $0x268] sm:$0xff]
      %v377 = vld [vmem:[%s2 + $0x270] sm:$0xff]
      %v378 = vld [vmem:[%s2 + $0x278] sm:$0xff]
      %v379 = vld [vmem:[%s2 + $0x280] sm:$0xff]
      %v380 = vld [vmem:[%s2 + $0x288] sm:$0xff]
      %v381 = vld [vmem:[%s2 + $0x290] sm:$0xff]
      %v382 = vld [vmem:[%s2 + $0x298] sm:$0xff]
      %v383 = vld [vmem:[%s2 + $0x2a0] sm:$0xff]
      %v384 = vld [vmem:[%s2 + $0x2a8] sm:$0xff]
      %v385 = vld [vmem:[%s2 + $0x2b0] sm:$0xff]
      %v386 = vld [vmem:[%s2 + $0x2b8] sm:$0xff]
      %v387 = vld [vmem:[%s2 + $0x2c0] sm:$0xff]
      %v388 = vld [vmem:[%s2 + $0x2c8] sm:$0xff]
      %v389 = vld [vmem:[%s2 + $0x2d0] sm:$0xff]
      %v390 = vld [vmem:[%s2 + $0x2d8] sm:$0xff]
      %v391 = vld [vmem:[%s2 + $0x2e0] sm:$0xff]
      %v392 = vld [vmem:[%s2 + $0x2e8] sm:$0xff]
      %v393 = vld [vmem:[%s2 + $0x2f0] sm:$0xff]
      %v394 = vld [vmem:[%s2 + $0x2f8] sm:$0xff]
      %v395 = vld [vmem:[%s3] sm:$0x3]
      %v396 = vld [vmem:[%s288] sm:$0xff]
      %v397 = vld [vmem:[%s288 + $0x8] sm:$0xff]
      %v398 = vld [vmem:[%s288 + $0x10] sm:$0xff]
      %v399 = vld [vmem:[%s288 + $0x18] sm:$0x3f]
      %v400 = vld [vmem:[%s288 + $0x20] sm:$0x3f]
      %v401 = vld [vmem:[%s288 + $0x28] sm:$0x3f]
      %v403 = vperm.slane %v395, 0
      %v404 = vperm.slane %v395, 1
      %407 = vmatpush.msra.mxu0 %v329
      %408 = vmatpush.msra.mxu0 %v327
      %409 = vmatpush.msra.mxu0 %v325
      %410 = vmatpush.msra.mxu0 %v323
      %411 = vmatpush.msra.mxu0 %v321
      %412 = vmatpush.msra.mxu0 %v319
      %413 = vmatpush.msra.mxu0 %v317
      %414 = vmatpush.msra.mxu0 %v315
      %415 = vmatpush.msra.mxu0 %v313
      %416 = vmatpush.msra.mxu0 %v311
      %417 = vmatpush.msra.mxu0 %v309
      %418 = vmatpush.msra.mxu0 %v307
      %419 = vmatpush.msra.mxu0 %v305
      %420 = vmatpush.msra.mxu0 %v303
      %421 = vmatpush.msra.mxu0 %v301
      %422 = vmatpush.msra.mxu0 %v299
      %423 = vmatmul.f32.gmra.mxu0 %v396
      %v424 = vpop.f32.mrf.mxu0
      %v425 = vadd.f32 %v403, %v424
      %426 = vmatmul.f32.gmra.mxu0 %v399
      %v427 = vpop.f32.mrf.mxu0
      %v428 = vadd.f32 %v403, %v427
      %429 = vdwg.mxu0
      %430 = vmatpush.msra.mxu0 %v361
      %431 = vmatpush.msra.mxu0 %v359
      %432 = vmatpush.msra.mxu0 %v357
      %433 = vmatpush.msra.mxu0 %v355
      %434 = vmatpush.msra.mxu0 %v353
      %435 = vmatpush.msra.mxu0 %v351
      %436 = vmatpush.msra.mxu0 %v349
      %437 = vmatpush.msra.mxu0 %v347
      %438 = vmatpush.msra.mxu0 %v345
      %439 = vmatpush.msra.mxu0 %v343
      %440 = vmatpush.msra.mxu0 %v341
      %441 = vmatpush.msra.mxu0 %v339
      %442 = vmatpush.msra.mxu0 %v337
      %443 = vmatpush.msra.mxu0 %v335
      %444 = vmatpush.msra.mxu0 %v333
      %445 = vmatpush.msra.mxu0 %v331
      %446 = vmatmul.f32.gmra.mxu0 %v397
      %v447 = vpop.f32.mrf.mxu0
      %v448 = vadd.f32 %v425, %v447
      %449 = vmatmul.f32.gmra.mxu0 %v400
      %v450 = vpop.f32.mrf.mxu0
      %v451 = vadd.f32 %v428, %v450
      %452 = vdwg.mxu0
      %453 = vmatpush.msra.mxu0 %v393
      %454 = vmatpush.msra.mxu0 %v391
      %455 = vmatpush.msra.mxu0 %v389
      %456 = vmatpush.msra.mxu0 %v387
      %457 = vmatpush.msra.mxu0 %v385
      %458 = vmatpush.msra.mxu0 %v383
      %459 = vmatpush.msra.mxu0 %v381
      %460 = vmatpush.msra.mxu0 %v379
      %461 = vmatpush.msra.mxu0 %v377
      %462 = vmatpush.msra.mxu0 %v375
      %463 = vmatpush.msra.mxu0 %v373
      %464 = vmatpush.msra.mxu0 %v371
      %465 = vmatpush.msra.mxu0 %v369
      %466 = vmatpush.msra.mxu0 %v367
      %467 = vmatpush.msra.mxu0 %v365
      %468 = vmatpush.msra.mxu0 %v363
      %469 = vmatmul.f32.gmra.mxu0 %v398
      %v470 = vpop.f32.mrf.mxu0
      %v471 = vadd.f32 %v448, %v470
      %472 = vmatmul.f32.gmra.mxu0 %v401
      %v473 = vpop.f32.mrf.mxu0
      %v474 = vadd.f32 %v451, %v473
      %475 = vdwg.mxu0
      %476 = vmatpush.msra.mxu0 %v330
      %477 = vmatpush.msra.mxu0 %v328
      %478 = vmatpush.msra.mxu0 %v326
      %479 = vmatpush.msra.mxu0 %v324
      %480 = vmatpush.msra.mxu0 %v322
      %481 = vmatpush.msra.mxu0 %v320
      %482 = vmatpush.msra.mxu0 %v318
      %483 = vmatpush.msra.mxu0 %v316
      %484 = vmatpush.msra.mxu0 %v314
      %485 = vmatpush.msra.mxu0 %v312
      %486 = vmatpush.msra.mxu0 %v310
      %487 = vmatpush.msra.mxu0 %v308
      %488 = vmatpush.msra.mxu0 %v306
      %489 = vmatpush.msra.mxu0 %v304
      %490 = vmatpush.msra.mxu0 %v302
      %491 = vmatpush.msra.mxu0 %v300
      %492 = vmatmul.f32.gmra.mxu0 %v396
      %v493 = vpop.f32.mrf.mxu0
      %v494 = vadd.f32 %v404, %v493
      %495 = vmatmul.f32.gmra.mxu0 %v399
      %v496 = vpop.f32.mrf.mxu0
      %v497 = vadd.f32 %v404, %v496
      %498 = vdwg.mxu0
      %499 = vmatpush.msra.mxu0 %v362
      %500 = vmatpush.msra.mxu0 %v360
      %501 = vmatpush.msra.mxu0 %v358
      %502 = vmatpush.msra.mxu0 %v356
      %503 = vmatpush.msra.mxu0 %v354
      %504 = vmatpush.msra.mxu0 %v352
      %505 = vmatpush.msra.mxu0 %v350
      %506 = vmatpush.msra.mxu0 %v348
      %507 = vmatpush.msra.mxu0 %v346
      %508 = vmatpush.msra.mxu0 %v344
      %509 = vmatpush.msra.mxu0 %v342
      %510 = vmatpush.msra.mxu0 %v340
      %511 = vmatpush.msra.mxu0 %v338
      %512 = vmatpush.msra.mxu0 %v336
      %513 = vmatpush.msra.mxu0 %v334
      %514 = vmatpush.msra.mxu0 %v332
      %515 = vmatmul.f32.gmra.mxu0 %v397
      %v516 = vpop.f32.mrf.mxu0
      %v517 = vadd.f32 %v494, %v516
      %518 = vmatmul.f32.gmra.mxu0 %v400
      %v519 = vpop.f32.mrf.mxu0
      %v520 = vadd.f32 %v497, %v519
      %521 = vdwg.mxu0
      %522 = vmatpush.msra.mxu0 %v394
      %523 = vmatpush.msra.mxu0 %v392
      %524 = vmatpush.msra.mxu0 %v390
      %525 = vmatpush.msra.mxu0 %v388
      %526 = vmatpush.msra.mxu0 %v386
      %527 = vmatpush.msra.mxu0 %v384
      %528 = vmatpush.msra.mxu0 %v382
      %529 = vmatpush.msra.mxu0 %v380
      %530 = vmatpush.msra.mxu0 %v378
      %531 = vmatpush.msra.mxu0 %v376
      %532 = vmatpush.msra.mxu0 %v374
      %533 = vmatpush.msra.mxu0 %v372
      %534 = vmatpush.msra.mxu0 %v370
      %535 = vmatpush.msra.mxu0 %v368
      %536 = vmatpush.msra.mxu0 %v366
      %537 = vmatpush.msra.mxu0 %v364
      %538 = vmatmul.f32.gmra.mxu0 %v398
      %v539 = vpop.f32.mrf.mxu0
      %v540 = vadd.f32 %v517, %v539
      %541 = vmatmul.f32.gmra.mxu0 %v401
      %v542 = vpop.f32.mrf.mxu0
      %v543 = vadd.f32 %v520, %v542
      %544 = vdwg.mxu0
      %v545 = vmax.f32 %v471, 0.0
      %v546 = vmax.f32 %v540, 0.0
      %v547 = vmax.f32 %v474, 0.0
      %v548 = vmax.f32 %v543, 0.0
      %v549 = vld [vmem:[%s293] sm:$0xff]
      %v550 = vld [vmem:[%s293 + $0x8] sm:$0xff]
      %v551 = vld [vmem:[%s293 + $0x10] sm:$0xff]
      %v552 = vld [vmem:[%s293 + $0x18] sm:$0x3f]
      %v553 = vld [vmem:[%s293 + $0x20] sm:$0x3f]
      %v554 = vld [vmem:[%s293 + $0x28] sm:$0x3f]
      %555 = vmatpush.msra.mxu0 %v329
      %556 = vmatpush.msra.mxu0 %v327
      %557 = vmatpush.msra.mxu0 %v325
      %558 = vmatpush.msra.mxu0 %v323
      %559 = vmatpush.msra.mxu0 %v321
      %560 = vmatpush.msra.mxu0 %v319
      %561 = vmatpush.msra.mxu0 %v317
      %562 = vmatpush.msra.mxu0 %v315
      %563 = vmatpush.msra.mxu0 %v313
      %564 = vmatpush.msra.mxu0 %v311
      %565 = vmatpush.msra.mxu0 %v309
      %566 = vmatpush.msra.mxu0 %v307
      %567 = vmatpush.msra.mxu0 %v305
      %568 = vmatpush.msra.mxu0 %v303
      %569 = vmatpush.msra.mxu0 %v301
      %570 = vmatpush.msra.mxu0 %v299
      %571 = vmatmul.f32.gmra.mxu0 %v549
      %v572 = vpop.f32.mrf.mxu0
      %v573 = vadd.f32 %v403, %v572
      %574 = vmatmul.f32.gmra.mxu0 %v552
      %v575 = vpop.f32.mrf.mxu0
      %v576 = vadd.f32 %v403, %v575
      %577 = vdwg.mxu0
      %578 = vmatpush.msra.mxu0 %v361
      %579 = vmatpush.msra.mxu0 %v359
      %580 = vmatpush.msra.mxu0 %v357
      %581 = vmatpush.msra.mxu0 %v355
      %582 = vmatpush.msra.mxu0 %v353
      %583 = vmatpush.msra.mxu0 %v351
      %584 = vmatpush.msra.mxu0 %v349
      %585 = vmatpush.msra.mxu0 %v347
      %586 = vmatpush.msra.mxu0 %v345
      %587 = vmatpush.msra.mxu0 %v343
      %588 = vmatpush.msra.mxu0 %v341
      %589 = vmatpush.msra.mxu0 %v339
      %590 = vmatpush.msra.mxu0 %v337
      %591 = vmatpush.msra.mxu0 %v335
      %592 = vmatpush.msra.mxu0 %v333
      %593 = vmatpush.msra.mxu0 %v331
      %594 = vmatmul.f32.gmra.mxu0 %v550
      %v595 = vpop.f32.mrf.mxu0
      %v596 = vadd.f32 %v573, %v595
      %597 = vmatmul.f32.gmra.mxu0 %v553
      %v598 = vpop.f32.mrf.mxu0
      %v599 = vadd.f32 %v576, %v598
      %600 = vdwg.mxu0
      %601 = vmatpush.msra.mxu0 %v393
      %602 = vmatpush.msra.mxu0 %v391
      %603 = vmatpush.msra.mxu0 %v389
      %604 = vmatpush.msra.mxu0 %v387
      %605 = vmatpush.msra.mxu0 %v385
      %606 = vmatpush.msra.mxu0 %v383
      %607 = vmatpush.msra.mxu0 %v381
      %608 = vmatpush.msra.mxu0 %v379
      %609 = vmatpush.msra.mxu0 %v377
      %610 = vmatpush.msra.mxu0 %v375
      %611 = vmatpush.msra.mxu0 %v373
      %612 = vmatpush.msra.mxu0 %v371
      %613 = vmatpush.msra.mxu0 %v369
      %614 = vmatpush.msra.mxu0 %v367
      %615 = vmatpush.msra.mxu0 %v365
      %616 = vmatpush.msra.mxu0 %v363
      %617 = vmatmul.f32.gmra.mxu0 %v551
      %v618 = vpop.f32.mrf.mxu0
      %v619 = vadd.f32 %v596, %v618
      %620 = vmatmul.f32.gmra.mxu0 %v554
      %v621 = vpop.f32.mrf.mxu0
      %v622 = vadd.f32 %v599, %v621
      %623 = vdwg.mxu0
      %624 = vmatpush.msra.mxu0 %v330
      %625 = vmatpush.msra.mxu0 %v328
      %626 = vmatpush.msra.mxu0 %v326
      %627 = vmatpush.msra.mxu0 %v324
      %628 = vmatpush.msra.mxu0 %v322
      %629 = vmatpush.msra.mxu0 %v320
      %630 = vmatpush.msra.mxu0 %v318
      %631 = vmatpush.msra.mxu0 %v316
      %632 = vmatpush.msra.mxu0 %v314
      %633 = vmatpush.msra.mxu0 %v312
      %634 = vmatpush.msra.mxu0 %v310
      %635 = vmatpush.msra.mxu0 %v308
      %636 = vmatpush.msra.mxu0 %v306
      %637 = vmatpush.msra.mxu0 %v304
      %638 = vmatpush.msra.mxu0 %v302
      %639 = vmatpush.msra.mxu0 %v300
      %640 = vmatmul.f32.gmra.mxu0 %v549
      %v641 = vpop.f32.mrf.mxu0
      %v642 = vadd.f32 %v404, %v641
      %643 = vmatmul.f32.gmra.mxu0 %v552
      %v644 = vpop.f32.mrf.mxu0
      %v645 = vadd.f32 %v404, %v644
      %646 = vdwg.mxu0
      %647 = vmatpush.msra.mxu0 %v362
      %648 = vmatpush.msra.mxu0 %v360
      %649 = vmatpush.msra.mxu0 %v358
      %650 = vmatpush.msra.mxu0 %v356
      %651 = vmatpush.msra.mxu0 %v354
      %652 = vmatpush.msra.mxu0 %v352
      %653 = vmatpush.msra.mxu0 %v350
      %654 = vmatpush.msra.mxu0 %v348
      %655 = vmatpush.msra.mxu0 %v346
      %656 = vmatpush.msra.mxu0 %v344
      %657 = vmatpush.msra.mxu0 %v342
      %658 = vmatpush.msra.mxu0 %v340
      %659 = vmatpush.msra.mxu0 %v338
      %660 = vmatpush.msra.mxu0 %v336
      %661 = vmatpush.msra.mxu0 %v334
      %662 = vmatpush.msra.mxu0 %v332
      %663 = vmatmul.f32.gmra.mxu0 %v550
      %v664 = vpop.f32.mrf.mxu0
      %v665 = vadd.f32 %v642, %v664
      %666 = vmatmul.f32.gmra.mxu0 %v553
      %v667 = vpop.f32.mrf.mxu0
      %v668 = vadd.f32 %v645, %v667
      %669 = vdwg.mxu0
      %670 = vmatpush.msra.mxu0 %v394
      %671 = vmatpush.msra.mxu0 %v392
      %672 = vmatpush.msra.mxu0 %v390
      %673 = vmatpush.msra.mxu0 %v388
      %674 = vmatpush.msra.mxu0 %v386
      %675 = vmatpush.msra.mxu0 %v384
      %676 = vmatpush.msra.mxu0 %v382
      %677 = vmatpush.msra.mxu0 %v380
      %678 = vmatpush.msra.mxu0 %v378
      %679 = vmatpush.msra.mxu0 %v376
      %680 = vmatpush.msra.mxu0 %v374
      %681 = vmatpush.msra.mxu0 %v372
      %682 = vmatpush.msra.mxu0 %v370
      %683 = vmatpush.msra.mxu0 %v368
      %684 = vmatpush.msra.mxu0 %v366
      %685 = vmatpush.msra.mxu0 %v364
      %686 = vmatmul.f32.gmra.mxu0 %v551
      %v687 = vpop.f32.mrf.mxu0
      %v688 = vadd.f32 %v665, %v687
      %689 = vmatmul.f32.gmra.mxu0 %v554
      %v690 = vpop.f32.mrf.mxu0
      %v691 = vadd.f32 %v668, %v690
      %692 = vdwg.mxu0
      %v693 = vmax.f32 %v619, 0.0
      %v694 = vmax.f32 %v688, 0.0
      %v695 = vmax.f32 %v622, 0.0
      %v696 = vmax.f32 %v691, 0.0
      %v697 = vmax.f32 %v545, %v693
      %v698 = vmax.f32 %v546, %v694
      %v699 = vmax.f32 %v547, %v695
      %v700 = vmax.f32 %v548, %v696
      %v701 = vld [vmem:[%s4] sm:$0xff]
      %v702 = vld [vmem:[%s4 + $0x8] sm:$0xff]
      %v703 = vld [vmem:[%s4 + $0x10] sm:$0xff]
      %v704 = vld [vmem:[%s4 + $0x18] sm:$0xff]
      %v705 = vld [vmem:[%s4 + $0x20] sm:$0xff]
      %v706 = vld [vmem:[%s4 + $0x28] sm:$0xff]
      %v707 = vld [vmem:[%s4 + $0x30] sm:$0xff]
      %v708 = vld [vmem:[%s4 + $0x38] sm:$0xff]
      %v709 = vld [vmem:[%s4 + $0x40] sm:$0xff]
      %v710 = vld [vmem:[%s4 + $0x48] sm:$0xff]
      %v711 = vld [vmem:[%s4 + $0x50] sm:$0xff]
      %v712 = vld [vmem:[%s4 + $0x58] sm:$0xff]
      %v713 = vld [vmem:[%s4 + $0x60] sm:$0xff]
      %v714 = vld [vmem:[%s4 + $0x68] sm:$0xff]
      %v715 = vld [vmem:[%s4 + $0x70] sm:$0xff]
      %v716 = vld [vmem:[%s4 + $0x78] sm:$0xff]
      %v717 = vld [vmem:[%s4 + $0x80] sm:$0xff]
      %v718 = vld [vmem:[%s4 + $0x88] sm:$0xff]
      %v719 = vld [vmem:[%s4 + $0x90] sm:$0xff]
      %v720 = vld [vmem:[%s4 + $0x98] sm:$0xff]
      %v721 = vld [vmem:[%s4 + $0xa0] sm:$0xff]
      %v722 = vld [vmem:[%s4 + $0xa8] sm:$0xff]
      %v723 = vld [vmem:[%s4 + $0xb0] sm:$0xff]
      %v724 = vld [vmem:[%s4 + $0xb8] sm:$0xff]
      %v725 = vld [vmem:[%s4 + $0xc0] sm:$0xff]
      %v726 = vld [vmem:[%s4 + $0xc8] sm:$0xff]
      %v727 = vld [vmem:[%s4 + $0xd0] sm:$0xff]
      %v728 = vld [vmem:[%s4 + $0xd8] sm:$0xff]
      %v729 = vld [vmem:[%s4 + $0xe0] sm:$0xff]
      %vm730 = vcmask 850944
      %v732 = vsel %vm730, %v698, 0
      %v735 = vsel %vm730, %v700, 0
      %737 = vmatpush.msra.mxu0 %v716
      %738 = vmatpush.msra.mxu0 %v715
      %739 = vmatpush.msra.mxu0 %v714
      %740 = vmatpush.msra.mxu0 %v713
      %741 = vmatpush.msra.mxu0 %v712
      %742 = vmatpush.msra.mxu0 %v711
      %743 = vmatpush.msra.mxu0 %v710
      %744 = vmatpush.msra.mxu0 %v709
      %745 = vmatpush.msra.mxu0 %v708
      %746 = vmatpush.msra.mxu0 %v707
      %747 = vmatpush.msra.mxu0 %v706
      %748 = vmatpush.msra.mxu0 %v705
      %749 = vmatpush.msra.mxu0 %v704
      %750 = vmatpush.msra.mxu0 %v703
      %751 = vmatpush.msra.mxu0 %v702
      %752 = vmatpush.msra.mxu0 %v701
      %753 = vmatmul.f32.gmra.mxu0 %v697
      %v754 = vpop.f32.mrf.mxu0
      %v755 = vadd.f32 0.0, %v754
      %756 = vmatmul.f32.gmra.mxu0 %v699
      %v757 = vpop.f32.mrf.mxu0
      %v758 = vadd.f32 0.0, %v757
      %759 = vdwg.mxu0
      %760 = vmatpush.msra.mxu0 0.0
      %761 = vmatpush.msra.mxu0 0.0
      %762 = vmatpush.msra.mxu0 0.0
      %763 = vmatpush.msra.mxu0 %v729
      %764 = vmatpush.msra.mxu0 %v728
      %765 = vmatpush.msra.mxu0 %v727
      %766 = vmatpush.msra.mxu0 %v726
      %767 = vmatpush.msra.mxu0 %v725
      %768 = vmatpush.msra.mxu0 %v724
      %769 = vmatpush.msra.mxu0 %v723
      %770 = vmatpush.msra.mxu0 %v722
      %771 = vmatpush.msra.mxu0 %v721
      %772 = vmatpush.msra.mxu0 %v720
      %773 = vmatpush.msra.mxu0 %v719
      %774 = vmatpush.msra.mxu0 %v718
      %775 = vmatpush.msra.mxu0 %v717
      %776 = vmatmul.f32.gmra.mxu0 %v732
      %v777 = vpop.f32.mrf.mxu0
      %v778 = vadd.f32 %v755, %v777
      %779 = vmatmul.f32.gmra.mxu0 %v735
      %v780 = vpop.f32.mrf.mxu0
      %v781 = vadd.f32 %v758, %v780
      %782 = vdwg.mxu0
      %s783 = scalar_lea.vmem %s4, 232
      %v784 = vld [vmem:[%s783] sm:$0xff]
      %v785 = vld [vmem:[%s783 + $0x8] sm:$0xff]
      %v786 = vld [vmem:[%s783 + $0x10] sm:$0xff]
      %v787 = vld [vmem:[%s783 + $0x18] sm:$0xff]
      %v788 = vld [vmem:[%s783 + $0x20] sm:$0xff]
      %v789 = vld [vmem:[%s783 + $0x28] sm:$0xff]
      %v790 = vld [vmem:[%s783 + $0x30] sm:$0xff]
      %v791 = vld [vmem:[%s783 + $0x38] sm:$0xff]
      %v792 = vld [vmem:[%s783 + $0x40] sm:$0xff]
      %v793 = vld [vmem:[%s783 + $0x48] sm:$0xff]
      %v794 = vld [vmem:[%s783 + $0x50] sm:$0xff]
      %v795 = vld [vmem:[%s783 + $0x58] sm:$0xff]
      %v796 = vld [vmem:[%s783 + $0x60] sm:$0xff]
      %v797 = vld [vmem:[%s783 + $0x68] sm:$0xff]
      %v798 = vld [vmem:[%s783 + $0x70] sm:$0xff]
      %v799 = vld [vmem:[%s783 + $0x78] sm:$0xff]
      %v800 = vld [vmem:[%s783 + $0x80] sm:$0xff]
      %v801 = vld [vmem:[%s783 + $0x88] sm:$0xff]
      %v802 = vld [vmem:[%s783 + $0x90] sm:$0xff]
      %v803 = vld [vmem:[%s783 + $0x98] sm:$0xff]
      %v804 = vld [vmem:[%s783 + $0xa0] sm:$0xff]
      %v805 = vld [vmem:[%s783 + $0xa8] sm:$0xff]
      %v806 = vld [vmem:[%s783 + $0xb0] sm:$0xff]
      %v807 = vld [vmem:[%s783 + $0xb8] sm:$0xff]
      %v808 = vld [vmem:[%s783 + $0xc0] sm:$0xff]
      %v809 = vld [vmem:[%s783 + $0xc8] sm:$0xff]
      %v810 = vld [vmem:[%s783 + $0xd0] sm:$0xff]
      %v811 = vld [vmem:[%s783 + $0xd8] sm:$0xff]
      %v812 = vld [vmem:[%s783 + $0xe0] sm:$0xff]
      %813 = vmatpush.msra.mxu0 %v799
      %814 = vmatpush.msra.mxu0 %v798
      %815 = vmatpush.msra.mxu0 %v797
      %816 = vmatpush.msra.mxu0 %v796
      %817 = vmatpush.msra.mxu0 %v795
      %818 = vmatpush.msra.mxu0 %v794
      %819 = vmatpush.msra.mxu0 %v793
      %820 = vmatpush.msra.mxu0 %v792
      %821 = vmatpush.msra.mxu0 %v791
      %822 = vmatpush.msra.mxu0 %v790
      %823 = vmatpush.msra.mxu0 %v789
      %824 = vmatpush.msra.mxu0 %v788
      %825 = vmatpush.msra.mxu0 %v787
      %826 = vmatpush.msra.mxu0 %v786
      %827 = vmatpush.msra.mxu0 %v785
      %828 = vmatpush.msra.mxu0 %v784
      %829 = vmatmul.f32.gmra.mxu0 %v697
      %v830 = vpop.f32.mrf.mxu0
      %v831 = vadd.f32 0.0, %v830
      %832 = vmatmul.f32.gmra.mxu0 %v699
      %v833 = vpop.f32.mrf.mxu0
      %v834 = vadd.f32 0.0, %v833
      %835 = vdwg.mxu0
      %836 = vmatpush.msra.mxu0 0.0
      %837 = vmatpush.msra.mxu0 0.0
      %838 = vmatpush.msra.mxu0 0.0
      %839 = vmatpush.msra.mxu0 %v812
      %840 = vmatpush.msra.mxu0 %v811
      %841 = vmatpush.msra.mxu0 %v810
      %842 = vmatpush.msra.mxu0 %v809
      %843 = vmatpush.msra.mxu0 %v808
      %844 = vmatpush.msra.mxu0 %v807
      %845 = vmatpush.msra.mxu0 %v806
      %846 = vmatpush.msra.mxu0 %v805
      %847 = vmatpush.msra.mxu0 %v804
      %848 = vmatpush.msra.mxu0 %v803
      %849 = vmatpush.msra.mxu0 %v802
      %850 = vmatpush.msra.mxu0 %v801
      %851 = vmatpush.msra.mxu0 %v800
      %852 = vmatmul.f32.gmra.mxu0 %v732
      %v853 = vpop.f32.mrf.mxu0
      %v854 = vadd.f32 %v831, %v853
      %855 = vmatmul.f32.gmra.mxu0 %v735
      %v856 = vpop.f32.mrf.mxu0
      %v857 = vadd.f32 %v834, %v856
      %858 = vdwg.mxu0
      %v859 = vmax.f32 %v778, %v854
      %v860 = vmax.f32 %v781, %v857
      %v861 = vld [vmem:[%s5] sm:$0x1]
      %v863 = vperm.slane %v861, 0
      %v865 = vmul.f32 %v859, %v863
      %v866 = vmul.f32 %v860, %v863
      %v867 = vld [vmem:[%s6] sm:$0x1]
      %v869 = vperm.slane %v867, 0
      %v871 = vadd.f32 %v865, %v869
      %v872 = vadd.f32 %v866, %v869
      %873 = vst [vmem:[%s298] sm:$0xff] %v871
      %874 = vst [vmem:[%s298 + $0x8] sm:$0x3f] %v872
      %p875 = scmp.lt.s32.totalorder %s18, 1
      %s876 = scalar_select %p875, %s18, 1
      %s877 = smul.addr %s876, 2
      %s878 = smul.addr %s877, 8
      %s879 = scalar_lea.vmem %s7, %s878
      // Predicated region
      $region49: #{dmsnet_forward.3} parent=47 // pred_check
        %p880 = pneg %p193
      $region50: #{dmsnet_forward.3} parent=47 // pred_check_branch
        %882 = sbr.rel (%p880) target = $region52
      $region51: #{dmsnet_forward.3} parent=47 // pred_region
        _
      $region52: #{dmsnet_forward.3} parent=47 // pred_fallthru
        _
    $region48: #{dmsnet_forward.3} parent=5 // pred_fallthru
      _
    %p883 = scmp.le.s32.totalorder 2, %s13
    // Predicated region
    $region53: #{dmsnet_forward.3} parent=5 // pred_check
      %p884 = pneg %p883
    $region54: #{dmsnet_forward.3} parent=5 // pred_check_branch
      %886 = sbr.rel (%p884) target = $region56
    $region55: #{dmsnet_forward.3} parent=5 // pred_region
      %s887 = ssub.s32 %s13, 2
      // Predicated region
      $region57: #{dmsnet_forward.3} parent=55 // pred_check
        %p888 = pneg %p199
      $region58: #{dmsnet_forward.3} parent=55 // pred_check_branch
        %890 = sbr.rel (%p888) target = $region60
      $region59: #{dmsnet_forward.3} parent=55 // pred_region
        %p891 = scmp.lt.s32.totalorder %s19, 1
        %s892 = scalar_select %p891, %s19, 1
        %s893 = smul.addr %s892, 2
        %s894 = smul.addr %s893, 8
        %s895 = scalar_lea.vmem %s7, %s894
      $region60: #{dmsnet_forward.3} parent=55 // pred_fallthru
        _
    $region56: #{dmsnet_forward.3} parent=5 // pred_fallthru
      _
  $region6: #{dmsnet_forward.3} parent=0 // loop_footer
    %s17 = sadd.s32 1, %s13
  $region7: #{dmsnet_forward.3} parent=0 // loop_footer_branch
    %12 = sbr.rel target = $region3
  $region8: #{dmsnet_forward.3} parent=0 // loop_exit
    _

// kernel: tile.48
$region0: #{tile.48}
  #allocation0 [shape = 's32[1]{0}', space=sflag, size = 0x4, scoped, tag = 'scoped memory for tile.48']
  %s0 = inlined_call_operand.vmem [shape: f32[16], index: 0, kind: input, shape index: {}]
  %s1 = inlined_call_operand.vmem [shape: f32[11,16], index: 1, kind: output, shape index: {}]
  // Predicated region
  $region2: #{tile.48} parent=0 // pred_check
    _
  $region3: #{tile.48} parent=0 // pred_check_branch
    %3 = sbr.rel (0) target = $region5
  $region4: #{tile.48} parent=0 // pred_region
    _
  $region5: #{tile.48} parent=0 // pred_fallthru
    _
  %v4 = vld [vmem:[%s0] ss:$0 sm:$0xff]
  %5 = vst [vmem:[%s1] sm:$0xff] %v4
  %s6 = scalar_lea.vmem %s1, 8
  %7 = vst [vmem:[%s6] sm:$0xff] %v4

// kernel: tile.49
$region0: #{tile.49}
  %s0 = inlined_call_operand.vmem [shape: f32[11,16], index: 0, kind: input, shape index: {}]
  %s1 = inlined_call_operand.vmem [shape: f32[1,176], index: 1, kind: output, shape index: {}]
  $region1: #{tile.49} parent=0
    #allocation0 [shape = 'u8[8192]{0}', space=vmem, size = 0x2000, scoped, tag = 'scoped mem for output reshape']
    %s2 = smov 3
    %v3 = vld [vmem:[%s0] ss:$8 sm:%s2]
    %vm4 = vcmask 130048
    %5 = vst.msk [vmem:[#allocation0] ss:$8 sm:$0x3] %vm4, %v3
    %s6 = scalar_lea.vmem %s0, 7
    %v7 = vld [vmem:[%s6] sm:$0x1]
    %8 = vrot.lane.b32.xlu0 %v7, 112
    %v9 = vpop.permute.xlu0 %8
    %vm10 = vcmask 1048448
    %11 = vst.msk [vmem:[#allocation0] sm:$0x1] %vm10, %v9
    %s12 = scalar_lea.vmem %s0, 6
    %v13 = vld [vmem:[%s12] sm:$0x1]
    %14 = vrot.lane.b32.xlu0 %v13, 96
    %v15 = vpop.permute.xlu0 %14
    %vm16 = vcmask 917248
    %17 = vst.msk [vmem:[#allocation0] sm:$0x1] %vm16, %v15
    %s18 = scalar_lea.vmem %s0, 5
    %v19 = vld [vmem:[%s18] sm:$0x1]
    %20 = vrot.lane.b32.xlu0 %v19, 80
    %v21 = vpop.permute.xlu0 %20
    %vm22 = vcmask 786048
    %23 = vst.msk [vmem:[#allocation0] sm:$0x1] %vm22, %v21
    %s24 = scalar_lea.vmem %s0, 4
    %v25 = vld [vmem:[%s24] sm:$0x1]
    %26 = vrot.lane.b32.xlu0 %v25, 64
    %v27 = vpop.permute.xlu0 %26
    %vm28 = vcmask 654848
    %29 = vst.msk [vmem:[#allocation0] sm:$0x1] %vm28, %v27
    %s30 = scalar_lea.vmem %s0, 3
    %v31 = vld [vmem:[%s30] sm:$0x1]
    %32 = vrot.lane.b32.xlu0 %v31, 48
    %v33 = vpop.permute.xlu0 %32
    %vm34 = vcmask 523648
    %35 = vst.msk [vmem:[#allocation0] sm:$0x1] %vm34, %v33
    %s36 = scalar_lea.vmem %s0, 2
    %s37 = smov 3
    %v38 = vld [vmem:[%s36] ss:$8 sm:%s37]
    %39 = vrot.lane.b32.xlu0 %v38, 32
    %v40 = vpop.permute.xlu0 %39
    %vm41 = vcmask 392448
    %42 = vst.msk [vmem:[#allocation0] ss:$8 sm:$0x3] %vm41, %v40
    %s43 = scalar_lea.vmem %s0, 1
    %s44 = smov 3
    %v45 = vld [vmem:[%s43] ss:$8 sm:%s44]
    %46 = vrot.lane.b32.xlu0 %v45, 16
    %v47 = vpop.permute.xlu0 %46
    %vm48 = vcmask 261248
    %49 = vst.msk [vmem:[#allocation0] ss:$8 sm:$0x3] %vm48, %v47
    %s51 = ssub.s32 2, 1
    %v52 = vld [vmem:[#allocation0] sm:%s51]
    %s54 = ssub.s32 2, 1
    %55 = vst [vmem:[%s1] sm:%s54] %v52
    %s56 = scalar_lea.vmem [#allocation0], 8
    %v57 = vld [vmem:[%s56] sm:%s51]
    %s59 = ssub.s32 2, 1
    %s60 = scalar_lea.vmem %s1, 1
    %61 = vst [vmem:[%s60] sm:%s59] %v57

// kernel: dmsnet_forward.4
$region0: #{dmsnet_forward.4}
  #allocation0 [shape = 'u32[]', space=smem, size = 0x4, offset = 0x4, fixed_abs, tag = 'smem constant byte address 0x4 - core index']
  #allocation1 [shape = 'u32[72,128]{1,0:T(1,128)}', space=vmem, size = 0x9000, scoped, tag = 'internal scratch']
  %s0 = inlined_call_operand.vmem [shape: f32[2,5,448], index: 0, kind: input, shape index: {}]
  %s1 = inlined_call_operand.vmem [shape: f32[2,5,448], index: 1, kind: input, shape index: {}]
  %s2 = inlined_call_operand.vmem [shape: f32[448,176], index: 2, kind: input, shape index: {}]
  %s3 = inlined_call_operand.vmem [shape: f32[1,176], index: 3, kind: input, shape index: {}]
  %s4 = inlined_call_operand.vmem [shape: f32[2,176,128], index: 4, kind: input, shape index: {}]
  %s5 = inlined_call_operand.vmem [shape: f32[1,128], index: 5, kind: input, shape index: {}]
  %s6 = inlined_call_operand.vmem [shape: f32[1,128], index: 6, kind: input, shape index: {}]
  %s7 = inlined_call_operand.vmem [shape: f32[2,5,128], index: 7, kind: output, shape index: {}]
  %s8 = sld [smem:[#allocation0]]
  $region61: #{dmsnet_forward.4} parent=0
    _
  %s10 = ssub.s32 1, %s8
  %s11 = scalar_select 0, %s10, %s8
  loop: start=0, step=1, limit=4
  $region2: #{dmsnet_forward.4} parent=0 // loop_pre_header
    _
  $region3: #{dmsnet_forward.4} parent=0 // loop_header
    %s13 = sphi 0, %s17
    %p14 = scmp.ge.s32.totalorder %s13, 4
    %s23 = sphi 0, %s25
    %s26 = sphi 0, %s23
    %s27 = sphi 0, %s26
    %s43 = sphi 0, %s27
    %s49 = sphi 0, %s51
    %s52 = sphi 0, %s49
    %s53 = sphi 0, %s52
    %s69 = sphi 0, %s53
    %s73 = sphi 0, %s73
    %s75 = sphi 0, %s73
    %s76 = sphi 0, %s75
    %s90 = sphi 0, %s76
    %s94 = sphi 0, %s94
    %s96 = sphi 0, %s94
    %s97 = sphi 0, %s96
    %s111 = sphi 0, %s97
    %s115 = sphi 0, %s115
    %s117 = sphi 0, %s115
    %s118 = sphi 0, %s117
    %s132 = sphi 0, %s118
    %s136 = sphi 0, %s136
    %s138 = sphi 0, %s136
    %s139 = sphi 0, %s138
    %s153 = sphi 0, %s139
    %s157 = sphi 0, %s157
    %s159 = sphi 0, %s157
    %s160 = sphi 0, %s159
    %s174 = sphi 0, %s160
    %s180 = sphi 0, %s182
    %s183 = sphi 0, %s180
    %s184 = sphi 0, %s183
    %s200 = sphi 0, %s184
  $region4: #{dmsnet_forward.4} parent=0 // loop_header_branch
    %16 = sbr.rel (%p14) target = $region8
  $region5: #{dmsnet_forward.4} parent=0 // loop_body
    %s18 = ssub.s32 %s13, 1
    %s19 = ssub.s32 %s13, 2
    %s20 = sadd.s32 %s13, 1
    %s21 = ssub.s32 %s13, %s20
    %p22 = scmp.eq.s32.totalorder %s21, 0
    %s24 = sadd.s32 %s23, 1
    %s25 = scalar_select %p22, %s23, %s24
    %p28 = pneg %p22
    %p29 = scmp.eq.s32.totalorder %s13, 1
    %p30 = por %p28, %p29
    %p31 = scmp.ne.s32.totalorder %s23, %s26
    %p32 = scmp.eq.s32.totalorder %s13, 0
    %p33 = por %p31, %p32
    %p34 = scmp.ne.s32.totalorder %s23, %s26
    %p35 = scmp.eq.s32.totalorder %s18, 1
    %p36 = por %p34, %p35
    %p37 = scmp.ne.s32.totalorder %s26, %s27
    %p38 = scmp.eq.s32.totalorder %s18, 0
    %p39 = por %p37, %p38
    %p40 = scmp.ne.s32.totalorder %s26, %s27
    %p41 = scmp.eq.s32.totalorder %s19, 1
    %p42 = por %p40, %p41
    %p44 = scmp.ne.s32.totalorder %s27, %s43
    %p45 = scmp.eq.s32.totalorder %s19, 0
    %p46 = por %p44, %p45
    %s47 = ssub.s32 %s13, %s20
    %p48 = scmp.eq.s32.totalorder %s47, 0
    %s50 = sadd.s32 %s49, 1
    %s51 = scalar_select %p48, %s49, %s50
    %p54 = pneg %p48
    %p55 = scmp.eq.s32.totalorder %s13, 1
    %p56 = por %p54, %p55
    %p57 = scmp.ne.s32.totalorder %s49, %s52
    %p58 = scmp.eq.s32.totalorder %s13, 0
    %p59 = por %p57, %p58
    %p60 = scmp.ne.s32.totalorder %s49, %s52
    %p61 = scmp.eq.s32.totalorder %s18, 1
    %p62 = por %p60, %p61
    %p63 = scmp.ne.s32.totalorder %s52, %s53
    %p64 = scmp.eq.s32.totalorder %s18, 0
    %p65 = por %p63, %p64
    %p66 = scmp.ne.s32.totalorder %s52, %s53
    %p67 = scmp.eq.s32.totalorder %s19, 1
    %p68 = por %p66, %p67
    %p70 = scmp.ne.s32.totalorder %s53, %s69
    %p71 = scmp.eq.s32.totalorder %s19, 0
    %p72 = por %p70, %p71
    %s74 = sadd.s32 %s73, 1
    %p77 = scmp.eq.s32.totalorder %s13, 1
    %p78 = scmp.ne.s32.totalorder %s73, %s75
    %p79 = scmp.eq.s32.totalorder %s13, 0
    %p80 = por %p78, %p79
    %p81 = scmp.ne.s32.totalorder %s73, %s75
    %p82 = scmp.eq.s32.totalorder %s18, 1
    %p83 = por %p81, %p82
    %p84 = scmp.ne.s32.totalorder %s75, %s76
    %p85 = scmp.eq.s32.totalorder %s18, 0
    %p86 = por %p84, %p85
    %p87 = scmp.ne.s32.totalorder %s75, %s76
    %p88 = scmp.eq.s32.totalorder %s19, 1
    %p89 = por %p87, %p88
    %p91 = scmp.ne.s32.totalorder %s76, %s90
    %p92 = scmp.eq.s32.totalorder %s19, 0
    %p93 = por %p91, %p92
    %s95 = sadd.s32 %s94, 1
    %p98 = scmp.eq.s32.totalorder %s13, 1
    %p99 = scmp.ne.s32.totalorder %s94, %s96
    %p100 = scmp.eq.s32.totalorder %s13, 0
    %p101 = por %p99, %p100
    %p102 = scmp.ne.s32.totalorder %s94, %s96
    %p103 = scmp.eq.s32.totalorder %s18, 1
    %p104 = por %p102, %p103
    %p105 = scmp.ne.s32.totalorder %s96, %s97
    %p106 = scmp.eq.s32.totalorder %s18, 0
    %p107 = por %p105, %p106
    %p108 = scmp.ne.s32.totalorder %s96, %s97
    %p109 = scmp.eq.s32.totalorder %s19, 1
    %p110 = por %p108, %p109
    %p112 = scmp.ne.s32.totalorder %s97, %s111
    %p113 = scmp.eq.s32.totalorder %s19, 0
    %p114 = por %p112, %p113
    %s116 = sadd.s32 %s115, 1
    %p119 = scmp.eq.s32.totalorder %s13, 1
    %p120 = scmp.ne.s32.totalorder %s115, %s117
    %p121 = scmp.eq.s32.totalorder %s13, 0
    %p122 = por %p120, %p121
    %p123 = scmp.ne.s32.totalorder %s115, %s117
    %p124 = scmp.eq.s32.totalorder %s18, 1
    %p125 = por %p123, %p124
    %p126 = scmp.ne.s32.totalorder %s117, %s118
    %p127 = scmp.eq.s32.totalorder %s18, 0
    %p128 = por %p126, %p127
    %p129 = scmp.ne.s32.totalorder %s117, %s118
    %p130 = scmp.eq.s32.totalorder %s19, 1
    %p131 = por %p129, %p130
    %p133 = scmp.ne.s32.totalorder %s118, %s132
    %p134 = scmp.eq.s32.totalorder %s19, 0
    %p135 = por %p133, %p134
    %s137 = sadd.s32 %s136, 1
    %p140 = scmp.eq.s32.totalorder %s13, 1
    %p141 = scmp.ne.s32.totalorder %s136, %s138
    %p142 = scmp.eq.s32.totalorder %s13, 0
    %p143 = por %p141, %p142
    %p144 = scmp.ne.s32.totalorder %s136, %s138
    %p145 = scmp.eq.s32.totalorder %s18, 1
    %p146 = por %p144, %p145
    %p147 = scmp.ne.s32.totalorder %s138, %s139
    %p148 = scmp.eq.s32.totalorder %s18, 0
    %p149 = por %p147, %p148
    %p150 = scmp.ne.s32.totalorder %s138, %s139
    %p151 = scmp.eq.s32.totalorder %s19, 1
    %p152 = por %p150, %p151
    %p154 = scmp.ne.s32.totalorder %s139, %s153
    %p155 = scmp.eq.s32.totalorder %s19, 0
    %p156 = por %p154, %p155
    %s158 = sadd.s32 %s157, 1
    %p161 = scmp.eq.s32.totalorder %s13, 1
    %p162 = scmp.ne.s32.totalorder %s157, %s159
    %p163 = scmp.eq.s32.totalorder %s13, 0
    %p164 = por %p162, %p163
    %p165 = scmp.ne.s32.totalorder %s157, %s159
    %p166 = scmp.eq.s32.totalorder %s18, 1
    %p167 = por %p165, %p166
    %p168 = scmp.ne.s32.totalorder %s159, %s160
    %p169 = scmp.eq.s32.totalorder %s18, 0
    %p170 = por %p168, %p169
    %p171 = scmp.ne.s32.totalorder %s159, %s160
    %p172 = scmp.eq.s32.totalorder %s19, 1
    %p173 = por %p171, %p172
    %p175 = scmp.ne.s32.totalorder %s160, %s174
    %p176 = scmp.eq.s32.totalorder %s19, 0
    %p177 = por %p175, %p176
    %s178 = ssub.s32 %s13, %s20
    %p179 = scmp.eq.s32.totalorder %s178, 0
    %s181 = sadd.s32 %s180, 1
    %s182 = scalar_select %p179, %s180, %s181
    %p185 = pneg %p179
    %p186 = scmp.eq.s32.totalorder %s13, 1
    %p187 = por %p185, %p186
    %p188 = scmp.ne.s32.totalorder %s180, %s183
    %p189 = scmp.eq.s32.totalorder %s13, 0
    %p190 = por %p188, %p189
    %p191 = scmp.ne.s32.totalorder %s180, %s183
    %p192 = scmp.eq.s32.totalorder %s18, 1
    %p193 = por %p191, %p192
    %p194 = scmp.ne.s32.totalorder %s183, %s184
    %p195 = scmp.eq.s32.totalorder %s18, 0
    %p196 = por %p194, %p195
    %p197 = scmp.ne.s32.totalorder %s183, %s184
    %p198 = scmp.eq.s32.totalorder %s19, 1
    %p199 = por %p197, %p198
    %p201 = scmp.ne.s32.totalorder %s184, %s200
    %p202 = scmp.eq.s32.totalorder %s19, 0
    %p203 = por %p201, %p202
    %p204 = scmp.le.s32.totalorder 1, %s13
    %p205 = scmp.lt.s32.totalorder %s13, 3
    %p206 = pnand %p204, %p205
    %p207 = pneg %p206
    // Predicated region
    $region9: #{dmsnet_forward.4} parent=5 // pred_check
      _
    $region10: #{dmsnet_forward.4} parent=5 // pred_check_branch
      %209 = sbr.rel (%p206) target = $region12
    $region11: #{dmsnet_forward.4} parent=5 // pred_region
      %s210 = ssub.s32 %s13, 1
      // Predicated region
      $region13: #{dmsnet_forward.4} parent=11 // pred_check
        %p211 = pneg %p86
      $region14: #{dmsnet_forward.4} parent=11 // pred_check_branch
        %213 = sbr.rel (%p211) target = $region16
      $region15: #{dmsnet_forward.4} parent=11 // pred_region
        _
      $region16: #{dmsnet_forward.4} parent=11 // pred_fallthru
        _
      // Predicated region
      $region17: #{dmsnet_forward.4} parent=11 // pred_check
        %p214 = pneg %p107
      $region18: #{dmsnet_forward.4} parent=11 // pred_check_branch
        %216 = sbr.rel (%p214) target = $region20
      $region19: #{dmsnet_forward.4} parent=11 // pred_region
        _
      $region20: #{dmsnet_forward.4} parent=11 // pred_fallthru
        _
      // Predicated region
      $region21: #{dmsnet_forward.4} parent=11 // pred_check
        %p217 = pneg %p128
      $region22: #{dmsnet_forward.4} parent=11 // pred_check_branch
        %219 = sbr.rel (%p217) target = $region24
      $region23: #{dmsnet_forward.4} parent=11 // pred_region
        _
      $region24: #{dmsnet_forward.4} parent=11 // pred_fallthru
        _
      // Predicated region
      $region25: #{dmsnet_forward.4} parent=11 // pred_check
        %p220 = pneg %p149
      $region26: #{dmsnet_forward.4} parent=11 // pred_check_branch
        %222 = sbr.rel (%p220) target = $region28
      $region27: #{dmsnet_forward.4} parent=11 // pred_region
        _
      $region28: #{dmsnet_forward.4} parent=11 // pred_fallthru
        _
      // Predicated region
      $region29: #{dmsnet_forward.4} parent=11 // pred_check
        %p223 = pneg %p170
      $region30: #{dmsnet_forward.4} parent=11 // pred_check_branch
        %225 = sbr.rel (%p223) target = $region32
      $region31: #{dmsnet_forward.4} parent=11 // pred_region
        _
      $region32: #{dmsnet_forward.4} parent=11 // pred_fallthru
        _
    $region12: #{dmsnet_forward.4} parent=5 // pred_fallthru
      _
    %p226 = scmp.lt.s32.totalorder %s13, 2
    // Predicated region
    $region33: #{dmsnet_forward.4} parent=5 // pred_check
      %p227 = pneg %p226
    $region34: #{dmsnet_forward.4} parent=5 // pred_check_branch
      %229 = sbr.rel (%p227) target = $region36
    $region35: #{dmsnet_forward.4} parent=5 // pred_region
      // Predicated region
      $region37: #{dmsnet_forward.4} parent=35 // pred_check
        %p230 = pneg %p33
      $region38: #{dmsnet_forward.4} parent=35 // pred_check_branch
        %232 = sbr.rel (%p230) target = $region40
      $region39: #{dmsnet_forward.4} parent=35 // pred_region
        %p233 = scmp.lt.s32.totalorder %s13, 1
        %s234 = scalar_select %p233, %s13, 1
        %s235 = smul.addr %s234, 4
        %s236 = smul.addr %s235, 8
        %s237 = scalar_lea.vmem %s0, %s236
      $region40: #{dmsnet_forward.4} parent=35 // pred_fallthru
        _
      // Predicated region
      $region41: #{dmsnet_forward.4} parent=35 // pred_check
        %p238 = pneg %p59
      $region42: #{dmsnet_forward.4} parent=35 // pred_check_branch
        %240 = sbr.rel (%p238) target = $region44
      $region43: #{dmsnet_forward.4} parent=35 // pred_region
        %p241 = scmp.lt.s32.totalorder %s13, 1
        %s242 = scalar_select %p241, %s13, 1
        %s243 = smul.addr %s242, 4
        %s244 = smul.addr %s243, 8
        %s245 = scalar_lea.vmem %s1, %s244
      $region44: #{dmsnet_forward.4} parent=35 // pred_fallthru
        _
    $region36: #{dmsnet_forward.4} parent=5 // pred_fallthru
      _
    %p246 = scmp.le.s32.totalorder 1, %s13
    %p247 = scmp.lt.s32.totalorder %s13, 3
    %p248 = pnand %p246, %p247
    %p249 = pneg %p248
    // Predicated region
    $region45: #{dmsnet_forward.4} parent=5 // pred_check
      _
    $region46: #{dmsnet_forward.4} parent=5 // pred_check_branch
      %251 = sbr.rel (%p248) target = $region48
    $region47: #{dmsnet_forward.4} parent=5 // pred_region
      %s252 = ssub.s32 %s13, 1
      %p253 = scmp.lt.s32.totalorder %s18, 1
      %s254 = scalar_select %p253, %s18, 1
      %s255 = smul.addr %s254, 4
      %s256 = smul.addr %s255, 8
      %s257 = scalar_lea.vmem %s0, %s256
      %p258 = pneg %p39
      %p259 = pneg %p36
      %p260 = scmp.lt.s32.totalorder %s18, 1
      %s261 = scalar_select %p260, %s18, 1
      %s262 = smul.addr %s261, 4
      %s263 = smul.addr %s262, 8
      %s264 = scalar_lea.vmem %s1, %s263
      %p265 = pneg %p65
      %p266 = pneg %p62
      %p267 = pneg %p86
      %p268 = pneg %p83
      %p269 = pneg %p107
      %p270 = pneg %p104
      %p271 = pneg %p128
      %p272 = pneg %p125
      %p273 = pneg %p149
      %p274 = pneg %p146
      %p275 = pneg %p170
      %p276 = pneg %p167
      %p277 = pneg %p196
      %p278 = pneg %p193
      %p279 = scmp.lt.s32.totalorder %s18, 1
      %s280 = scalar_select %p279, %s18, 1
      %s281 = smul.addr %s280, 8
      %s282 = scalar_lea.vmem %s7, %s281
      %p283 = scmp.lt.s32.totalorder %s18, 1
      %s284 = scalar_select %p283, %s18, 1
      %s285 = smul.addr %s284, 4
      %s286 = smul.addr %s285, 8
      %s287 = scalar_lea.vmem %s0, %s286
      %p288 = scmp.lt.s32.totalorder %s18, 1
      %s289 = scalar_select %p288, %s18, 1
      %s290 = smul.addr %s289, 4
      %s291 = smul.addr %s290, 8
      %s292 = scalar_lea.vmem %s1, %s291
      %p293 = scmp.lt.s32.totalorder %s18, 1
      %s294 = scalar_select %p293, %s18, 1
      %s295 = smul.addr %s294, 8
      %s296 = scalar_lea.vmem %s7, %s295
      %v297 = vld [vmem:[%s2] sm:$0xff]
      %v298 = vld [vmem:[%s2 + $0x8] sm:$0xff]
      %v299 = vld [vmem:[%s2 + $0x10] sm:$0xff]
      %v300 = vld [vmem:[%s2 + $0x18] sm:$0xff]
      %v301 = vld [vmem:[%s2 + $0x20] sm:$0xff]
      %v302 = vld [vmem:[%s2 + $0x28] sm:$0xff]
      %v303 = vld [vmem:[%s2 + $0x30] sm:$0xff]
      %v304 = vld [vmem:[%s2 + $0x38] sm:$0xff]
      %v305 = vld [vmem:[%s2 + $0x40] sm:$0xff]
      %v306 = vld [vmem:[%s2 + $0x48] sm:$0xff]
      %v307 = vld [vmem:[%s2 + $0x50] sm:$0xff]
      %v308 = vld [vmem:[%s2 + $0x58] sm:$0xff]
      %v309 = vld [vmem:[%s2 + $0x60] sm:$0xff]
      %v310 = vld [vmem:[%s2 + $0x68] sm:$0xff]
      %v311 = vld [vmem:[%s2 + $0x70] sm:$0xff]
      %v312 = vld [vmem:[%s2 + $0x78] sm:$0xff]
      %v313 = vld [vmem:[%s2 + $0x80] sm:$0xff]
      %v314 = vld [vmem:[%s2 + $0x88] sm:$0xff]
      %v315 = vld [vmem:[%s2 + $0x90] sm:$0xff]
      %v316 = vld [vmem:[%s2 + $0x98] sm:$0xff]
      %v317 = vld [vmem:[%s2 + $0xa0] sm:$0xff]
      %v318 = vld [vmem:[%s2 + $0xa8] sm:$0xff]
      %v319 = vld [vmem:[%s2 + $0xb0] sm:$0xff]
      %v320 = vld [vmem:[%s2 + $0xb8] sm:$0xff]
      %v321 = vld [vmem:[%s2 + $0xc0] sm:$0xff]
      %v322 = vld [vmem:[%s2 + $0xc8] sm:$0xff]
      %v323 = vld [vmem:[%s2 + $0xd0] sm:$0xff]
      %v324 = vld [vmem:[%s2 + $0xd8] sm:$0xff]
      %v325 = vld [vmem:[%s2 + $0xe0] sm:$0xff]
      %v326 = vld [vmem:[%s2 + $0xe8] sm:$0xff]
      %v327 = vld [vmem:[%s2 + $0xf0] sm:$0xff]
      %v328 = vld [vmem:[%s2 + $0xf8] sm:$0xff]
      %v329 = vld [vmem:[%s2 + $0x100] sm:$0xff]
      %v330 = vld [vmem:[%s2 + $0x108] sm:$0xff]
      %v331 = vld [vmem:[%s2 + $0x110] sm:$0xff]
      %v332 = vld [vmem:[%s2 + $0x118] sm:$0xff]
      %v333 = vld [vmem:[%s2 + $0x120] sm:$0xff]
      %v334 = vld [vmem:[%s2 + $0x128] sm:$0xff]
      %v335 = vld [vmem:[%s2 + $0x130] sm:$0xff]
      %v336 = vld [vmem:[%s2 + $0x138] sm:$0xff]
      %v337 = vld [vmem:[%s2 + $0x140] sm:$0xff]
      %v338 = vld [vmem:[%s2 + $0x148] sm:$0xff]
      %v339 = vld [vmem:[%s2 + $0x150] sm:$0xff]
      %v340 = vld [vmem:[%s2 + $0x158] sm:$0xff]
      %v341 = vld [vmem:[%s2 + $0x160] sm:$0xff]
      %v342 = vld [vmem:[%s2 + $0x168] sm:$0xff]
      %v343 = vld [vmem:[%s2 + $0x170] sm:$0xff]
      %v344 = vld [vmem:[%s2 + $0x178] sm:$0xff]
      %v345 = vld [vmem:[%s2 + $0x180] sm:$0xff]
      %v346 = vld [vmem:[%s2 + $0x188] sm:$0xff]
      %v347 = vld [vmem:[%s2 + $0x190] sm:$0xff]
      %v348 = vld [vmem:[%s2 + $0x198] sm:$0xff]
      %v349 = vld [vmem:[%s2 + $0x1a0] sm:$0xff]
      %v350 = vld [vmem:[%s2 + $0x1a8] sm:$0xff]
      %v351 = vld [vmem:[%s2 + $0x1b0] sm:$0xff]
      %v352 = vld [vmem:[%s2 + $0x1b8] sm:$0xff]
      %v353 = vld [vmem:[%s2 + $0x1c0] sm:$0xff]
      %v354 = vld [vmem:[%s2 + $0x1c8] sm:$0xff]
      %v355 = vld [vmem:[%s2 + $0x1d0] sm:$0xff]
      %v356 = vld [vmem:[%s2 + $0x1d8] sm:$0xff]
      %v357 = vld [vmem:[%s2 + $0x1e0] sm:$0xff]
      %v358 = vld [vmem:[%s2 + $0x1e8] sm:$0xff]
      %v359 = vld [vmem:[%s2 + $0x1f0] sm:$0xff]
      %v360 = vld [vmem:[%s2 + $0x1f8] sm:$0xff]
      %v361 = vld [vmem:[%s2 + $0x200] sm:$0xff]
      %v362 = vld [vmem:[%s2 + $0x208] sm:$0xff]
      %v363 = vld [vmem:[%s2 + $0x210] sm:$0xff]
      %v364 = vld [vmem:[%s2 + $0x218] sm:$0xff]
      %v365 = vld [vmem:[%s2 + $0x220] sm:$0xff]
      %v366 = vld [vmem:[%s2 + $0x228] sm:$0xff]
      %v367 = vld [vmem:[%s2 + $0x230] sm:$0xff]
      %v368 = vld [vmem:[%s2 + $0x238] sm:$0xff]
      %v369 = vld [vmem:[%s2 + $0x240] sm:$0xff]
      %v370 = vld [vmem:[%s2 + $0x248] sm:$0xff]
      %v371 = vld [vmem:[%s2 + $0x250] sm:$0xff]
      %v372 = vld [vmem:[%s2 + $0x258] sm:$0xff]
      %v373 = vld [vmem:[%s2 + $0x260] sm:$0xff]
      %v374 = vld [vmem:[%s2 + $0x268] sm:$0xff]
      %v375 = vld [vmem:[%s2 + $0x270] sm:$0xff]
      %v376 = vld [vmem:[%s2 + $0x278] sm:$0xff]
      %v377 = vld [vmem:[%s2 + $0x280] sm:$0xff]
      %v378 = vld [vmem:[%s2 + $0x288] sm:$0xff]
      %v379 = vld [vmem:[%s2 + $0x290] sm:$0xff]
      %v380 = vld [vmem:[%s2 + $0x298] sm:$0xff]
      %v381 = vld [vmem:[%s2 + $0x2a0] sm:$0xff]
      %v382 = vld [vmem:[%s2 + $0x2a8] sm:$0xff]
      %v383 = vld [vmem:[%s2 + $0x2b0] sm:$0xff]
      %v384 = vld [vmem:[%s2 + $0x2b8] sm:$0xff]
      %v385 = vld [vmem:[%s2 + $0x2c0] sm:$0xff]
      %v386 = vld [vmem:[%s2 + $0x2c8] sm:$0xff]
      %v387 = vld [vmem:[%s2 + $0x2d0] sm:$0xff]
      %v388 = vld [vmem:[%s2 + $0x2d8] sm:$0xff]
      %v389 = vld [vmem:[%s2 + $0x2e0] sm:$0xff]
      %v390 = vld [vmem:[%s2 + $0x2e8] sm:$0xff]
      %v391 = vld [vmem:[%s2 + $0x2f0] sm:$0xff]
      %v392 = vld [vmem:[%s2 + $0x2f8] sm:$0xff]
      %v393 = vld [vmem:[%s2 + $0x300] sm:$0xff]
      %v394 = vld [vmem:[%s2 + $0x308] sm:$0xff]
      %v395 = vld [vmem:[%s2 + $0x310] sm:$0xff]
      %v396 = vld [vmem:[%s2 + $0x318] sm:$0xff]
      %v397 = vld [vmem:[%s2 + $0x320] sm:$0xff]
      %v398 = vld [vmem:[%s2 + $0x328] sm:$0xff]
      %v399 = vld [vmem:[%s2 + $0x330] sm:$0xff]
      %v400 = vld [vmem:[%s2 + $0x338] sm:$0xff]
      %v401 = vld [vmem:[%s2 + $0x340] sm:$0xff]
      %v402 = vld [vmem:[%s2 + $0x348] sm:$0xff]
      %v403 = vld [vmem:[%s2 + $0x350] sm:$0xff]
      %v404 = vld [vmem:[%s2 + $0x358] sm:$0xff]
      %v405 = vld [vmem:[%s2 + $0x360] sm:$0xff]
      %v406 = vld [vmem:[%s2 + $0x368] sm:$0xff]
      %v407 = vld [vmem:[%s2 + $0x370] sm:$0xff]
      %v408 = vld [vmem:[%s2 + $0x378] sm:$0xff]
      %v409 = vld [vmem:[%s3] sm:$0x3]
      %v410 = vld [vmem:[%s287] sm:$0x1f]
      %v411 = vld [vmem:[%s287 + $0x8] sm:$0x1f]
      %v412 = vld [vmem:[%s287 + $0x10] sm:$0x1f]
      %v413 = vld [vmem:[%s287 + $0x18] sm:$0x1f]
      %v415 = vperm.slane %v409, 0
      %v416 = vperm.slane %v409, 1
      %vm419 = vcmask 523264
      %v421 = vsel %vm419, %v413, 0
      %423 = vmatpush.msra.mxu0 %v327
      %424 = vmatpush.msra.mxu0 %v325
      %425 = vmatpush.msra.mxu0 %v323
      %426 = vmatpush.msra.mxu0 %v321
      %427 = vmatpush.msra.mxu0 %v319
      %428 = vmatpush.msra.mxu0 %v317
      %429 = vmatpush.msra.mxu0 %v315
      %430 = vmatpush.msra.mxu0 %v313
      %431 = vmatpush.msra.mxu0 %v311
      %432 = vmatpush.msra.mxu0 %v309
      %433 = vmatpush.msra.mxu0 %v307
      %434 = vmatpush.msra.mxu0 %v305
      %435 = vmatpush.msra.mxu0 %v303
      %436 = vmatpush.msra.mxu0 %v301
      %437 = vmatpush.msra.mxu0 %v299
      %438 = vmatpush.msra.mxu0 %v297
      %439 = vmatmul.f32.gmra.mxu0 %v410
      %v440 = vpop.f32.mrf.mxu0
      %v441 = vadd.f32 %v415, %v440
      %442 = vdwg.mxu0
      %443 = vmatpush.msra.mxu0 %v359
      %444 = vmatpush.msra.mxu0 %v357
      %445 = vmatpush.msra.mxu0 %v355
      %446 = vmatpush.msra.mxu0 %v353
      %447 = vmatpush.msra.mxu0 %v351
      %448 = vmatpush.msra.mxu0 %v349
      %449 = vmatpush.msra.mxu0 %v347
      %450 = vmatpush.msra.mxu0 %v345
      %451 = vmatpush.msra.mxu0 %v343
      %452 = vmatpush.msra.mxu0 %v341
      %453 = vmatpush.msra.mxu0 %v339
      %454 = vmatpush.msra.mxu0 %v337
      %455 = vmatpush.msra.mxu0 %v335
      %456 = vmatpush.msra.mxu0 %v333
      %457 = vmatpush.msra.mxu0 %v331
      %458 = vmatpush.msra.mxu0 %v329
      %459 = vmatmul.f32.gmra.mxu0 %v411
      %v460 = vpop.f32.mrf.mxu0
      %v461 = vadd.f32 %v441, %v460
      %462 = vdwg.mxu0
      %463 = vmatpush.msra.mxu0 %v391
      %464 = vmatpush.msra.mxu0 %v389
      %465 = vmatpush.msra.mxu0 %v387
      %466 = vmatpush.msra.mxu0 %v385
      %467 = vmatpush.msra.mxu0 %v383
      %468 = vmatpush.msra.mxu0 %v381
      %469 = vmatpush.msra.mxu0 %v379
      %470 = vmatpush.msra.mxu0 %v377
      %471 = vmatpush.msra.mxu0 %v375
      %472 = vmatpush.msra.mxu0 %v373
      %473 = vmatpush.msra.mxu0 %v371
      %474 = vmatpush.msra.mxu0 %v369
      %475 = vmatpush.msra.mxu0 %v367
      %476 = vmatpush.msra.mxu0 %v365
      %477 = vmatpush.msra.mxu0 %v363
      %478 = vmatpush.msra.mxu0 %v361
      %479 = vmatmul.f32.gmra.mxu0 %v412
      %v480 = vpop.f32.mrf.mxu0
      %v481 = vadd.f32 %v461, %v480
      %482 = vdwg.mxu0
      %483 = vmatpush.msra.mxu0 0.0
      %484 = vmatpush.msra.mxu0 0.0
      %485 = vmatpush.msra.mxu0 0.0
      %486 = vmatpush.msra.mxu0 0.0
      %487 = vmatpush.msra.mxu0 0.0
      %488 = vmatpush.msra.mxu0 0.0
      %489 = vmatpush.msra.mxu0 0.0
      %490 = vmatpush.msra.mxu0 0.0
      %491 = vmatpush.msra.mxu0 %v407
      %492 = vmatpush.msra.mxu0 %v405
      %493 = vmatpush.msra.mxu0 %v403
      %494 = vmatpush.msra.mxu0 %v401
      %495 = vmatpush.msra.mxu0 %v399
      %496 = vmatpush.msra.mxu0 %v397
      %497 = vmatpush.msra.mxu0 %v395
      %498 = vmatpush.msra.mxu0 %v393
      %499 = vmatmul.f32.gmra.mxu0 %v421
      %v500 = vpop.f32.mrf.mxu0
      %v501 = vadd.f32 %v481, %v500
      %502 = vdwg.mxu0
      %503 = vmatpush.msra.mxu0 %v328
      %504 = vmatpush.msra.mxu0 %v326
      %505 = vmatpush.msra.mxu0 %v324
      %506 = vmatpush.msra.mxu0 %v322
      %507 = vmatpush.msra.mxu0 %v320
      %508 = vmatpush.msra.mxu0 %v318
      %509 = vmatpush.msra.mxu0 %v316
      %510 = vmatpush.msra.mxu0 %v314
      %511 = vmatpush.msra.mxu0 %v312
      %512 = vmatpush.msra.mxu0 %v310
      %513 = vmatpush.msra.mxu0 %v308
      %514 = vmatpush.msra.mxu0 %v306
      %515 = vmatpush.msra.mxu0 %v304
      %516 = vmatpush.msra.mxu0 %v302
      %517 = vmatpush.msra.mxu0 %v300
      %518 = vmatpush.msra.mxu0 %v298
      %519 = vmatmul.f32.gmra.mxu0 %v410
      %v520 = vpop.f32.mrf.mxu0
      %v521 = vadd.f32 %v416, %v520
      %522 = vdwg.mxu0
      %523 = vmatpush.msra.mxu0 %v360
      %524 = vmatpush.msra.mxu0 %v358
      %525 = vmatpush.msra.mxu0 %v356
      %526 = vmatpush.msra.mxu0 %v354
      %527 = vmatpush.msra.mxu0 %v352
      %528 = vmatpush.msra.mxu0 %v350
      %529 = vmatpush.msra.mxu0 %v348
      %530 = vmatpush.msra.mxu0 %v346
      %531 = vmatpush.msra.mxu0 %v344
      %532 = vmatpush.msra.mxu0 %v342
      %533 = vmatpush.msra.mxu0 %v340
      %534 = vmatpush.msra.mxu0 %v338
      %535 = vmatpush.msra.mxu0 %v336
      %536 = vmatpush.msra.mxu0 %v334
      %537 = vmatpush.msra.mxu0 %v332
      %538 = vmatpush.msra.mxu0 %v330
      %539 = vmatmul.f32.gmra.mxu0 %v411
      %v540 = vpop.f32.mrf.mxu0
      %v541 = vadd.f32 %v521, %v540
      %542 = vdwg.mxu0
      %543 = vmatpush.msra.mxu0 %v392
      %544 = vmatpush.msra.mxu0 %v390
      %545 = vmatpush.msra.mxu0 %v388
      %546 = vmatpush.msra.mxu0 %v386
      %547 = vmatpush.msra.mxu0 %v384
      %548 = vmatpush.msra.mxu0 %v382
      %549 = vmatpush.msra.mxu0 %v380
      %550 = vmatpush.msra.mxu0 %v378
      %551 = vmatpush.msra.mxu0 %v376
      %552 = vmatpush.msra.mxu0 %v374
      %553 = vmatpush.msra.mxu0 %v372
      %554 = vmatpush.msra.mxu0 %v370
      %555 = vmatpush.msra.mxu0 %v368
      %556 = vmatpush.msra.mxu0 %v366
      %557 = vmatpush.msra.mxu0 %v364
      %558 = vmatpush.msra.mxu0 %v362
      %559 = vmatmul.f32.gmra.mxu0 %v412
      %v560 = vpop.f32.mrf.mxu0
      %v561 = vadd.f32 %v541, %v560
      %562 = vdwg.mxu0
      %563 = vmatpush.msra.mxu0 0.0
      %564 = vmatpush.msra.mxu0 0.0
      %565 = vmatpush.msra.mxu0 0.0
      %566 = vmatpush.msra.mxu0 0.0
      %567 = vmatpush.msra.mxu0 0.0
      %568 = vmatpush.msra.mxu0 0.0
      %569 = vmatpush.msra.mxu0 0.0
      %570 = vmatpush.msra.mxu0 0.0
      %571 = vmatpush.msra.mxu0 %v408
      %572 = vmatpush.msra.mxu0 %v406
      %573 = vmatpush.msra.mxu0 %v404
      %574 = vmatpush.msra.mxu0 %v402
      %575 = vmatpush.msra.mxu0 %v400
      %576 = vmatpush.msra.mxu0 %v398
      %577 = vmatpush.msra.mxu0 %v396
      %578 = vmatpush.msra.mxu0 %v394
      %579 = vmatmul.f32.gmra.mxu0 %v421
      %v580 = vpop.f32.mrf.mxu0
      %v581 = vadd.f32 %v561, %v580
      %582 = vdwg.mxu0
      %v583 = vmax.f32 %v501, 0.0
      %v584 = vmax.f32 %v581, 0.0
      %v585 = vld [vmem:[%s292] sm:$0x1f]
      %v586 = vld [vmem:[%s292 + $0x8] sm:$0x1f]
      %v587 = vld [vmem:[%s292 + $0x10] sm:$0x1f]
      %v588 = vld [vmem:[%s292 + $0x18] sm:$0x1f]
      %v590 = vsel %vm419, %v588, 0
      %592 = vmatpush.msra.mxu0 %v327
      %593 = vmatpush.msra.mxu0 %v325
      %594 = vmatpush.msra.mxu0 %v323
      %595 = vmatpush.msra.mxu0 %v321
      %596 = vmatpush.msra.mxu0 %v319
      %597 = vmatpush.msra.mxu0 %v317
      %598 = vmatpush.msra.mxu0 %v315
      %599 = vmatpush.msra.mxu0 %v313
      %600 = vmatpush.msra.mxu0 %v311
      %601 = vmatpush.msra.mxu0 %v309
      %602 = vmatpush.msra.mxu0 %v307
      %603 = vmatpush.msra.mxu0 %v305
      %604 = vmatpush.msra.mxu0 %v303
      %605 = vmatpush.msra.mxu0 %v301
      %606 = vmatpush.msra.mxu0 %v299
      %607 = vmatpush.msra.mxu0 %v297
      %608 = vmatmul.f32.gmra.mxu0 %v585
      %v609 = vpop.f32.mrf.mxu0
      %v610 = vadd.f32 %v415, %v609
      %611 = vdwg.mxu0
      %612 = vmatpush.msra.mxu0 %v359
      %613 = vmatpush.msra.mxu0 %v357
      %614 = vmatpush.msra.mxu0 %v355
      %615 = vmatpush.msra.mxu0 %v353
      %616 = vmatpush.msra.mxu0 %v351
      %617 = vmatpush.msra.mxu0 %v349
      %618 = vmatpush.msra.mxu0 %v347
      %619 = vmatpush.msra.mxu0 %v345
      %620 = vmatpush.msra.mxu0 %v343
      %621 = vmatpush.msra.mxu0 %v341
      %622 = vmatpush.msra.mxu0 %v339
      %623 = vmatpush.msra.mxu0 %v337
      %624 = vmatpush.msra.mxu0 %v335
      %625 = vmatpush.msra.mxu0 %v333
      %626 = vmatpush.msra.mxu0 %v331
      %627 = vmatpush.msra.mxu0 %v329
      %628 = vmatmul.f32.gmra.mxu0 %v586
      %v629 = vpop.f32.mrf.mxu0
      %v630 = vadd.f32 %v610, %v629
      %631 = vdwg.mxu0
      %632 = vmatpush.msra.mxu0 %v391
      %633 = vmatpush.msra.mxu0 %v389
      %634 = vmatpush.msra.mxu0 %v387
      %635 = vmatpush.msra.mxu0 %v385
      %636 = vmatpush.msra.mxu0 %v383
      %637 = vmatpush.msra.mxu0 %v381
      %638 = vmatpush.msra.mxu0 %v379
      %639 = vmatpush.msra.mxu0 %v377
      %640 = vmatpush.msra.mxu0 %v375
      %641 = vmatpush.msra.mxu0 %v373
      %642 = vmatpush.msra.mxu0 %v371
      %643 = vmatpush.msra.mxu0 %v369
      %644 = vmatpush.msra.mxu0 %v367
      %645 = vmatpush.msra.mxu0 %v365
      %646 = vmatpush.msra.mxu0 %v363
      %647 = vmatpush.msra.mxu0 %v361
      %648 = vmatmul.f32.gmra.mxu0 %v587
      %v649 = vpop.f32.mrf.mxu0
      %v650 = vadd.f32 %v630, %v649
      %651 = vdwg.mxu0
      %652 = vmatpush.msra.mxu0 0.0
      %653 = vmatpush.msra.mxu0 0.0
      %654 = vmatpush.msra.mxu0 0.0
      %655 = vmatpush.msra.mxu0 0.0
      %656 = vmatpush.msra.mxu0 0.0
      %657 = vmatpush.msra.mxu0 0.0
      %658 = vmatpush.msra.mxu0 0.0
      %659 = vmatpush.msra.mxu0 0.0
      %660 = vmatpush.msra.mxu0 %v407
      %661 = vmatpush.msra.mxu0 %v405
      %662 = vmatpush.msra.mxu0 %v403
      %663 = vmatpush.msra.mxu0 %v401
      %664 = vmatpush.msra.mxu0 %v399
      %665 = vmatpush.msra.mxu0 %v397
      %666 = vmatpush.msra.mxu0 %v395
      %667 = vmatpush.msra.mxu0 %v393
      %668 = vmatmul.f32.gmra.mxu0 %v590
      %v669 = vpop.f32.mrf.mxu0
      %v670 = vadd.f32 %v650, %v669
      %671 = vdwg.mxu0
      %672 = vmatpush.msra.mxu0 %v328
      %673 = vmatpush.msra.mxu0 %v326
      %674 = vmatpush.msra.mxu0 %v324
      %675 = vmatpush.msra.mxu0 %v322
      %676 = vmatpush.msra.mxu0 %v320
      %677 = vmatpush.msra.mxu0 %v318
      %678 = vmatpush.msra.mxu0 %v316
      %679 = vmatpush.msra.mxu0 %v314
      %680 = vmatpush.msra.mxu0 %v312
      %681 = vmatpush.msra.mxu0 %v310
      %682 = vmatpush.msra.mxu0 %v308
      %683 = vmatpush.msra.mxu0 %v306
      %684 = vmatpush.msra.mxu0 %v304
      %685 = vmatpush.msra.mxu0 %v302
      %686 = vmatpush.msra.mxu0 %v300
      %687 = vmatpush.msra.mxu0 %v298
      %688 = vmatmul.f32.gmra.mxu0 %v585
      %v689 = vpop.f32.mrf.mxu0
      %v690 = vadd.f32 %v416, %v689
      %691 = vdwg.mxu0
      %692 = vmatpush.msra.mxu0 %v360
      %693 = vmatpush.msra.mxu0 %v358
      %694 = vmatpush.msra.mxu0 %v356
      %695 = vmatpush.msra.mxu0 %v354
      %696 = vmatpush.msra.mxu0 %v352
      %697 = vmatpush.msra.mxu0 %v350
      %698 = vmatpush.msra.mxu0 %v348
      %699 = vmatpush.msra.mxu0 %v346
      %700 = vmatpush.msra.mxu0 %v344
      %701 = vmatpush.msra.mxu0 %v342
      %702 = vmatpush.msra.mxu0 %v340
      %703 = vmatpush.msra.mxu0 %v338
      %704 = vmatpush.msra.mxu0 %v336
      %705 = vmatpush.msra.mxu0 %v334
      %706 = vmatpush.msra.mxu0 %v332
      %707 = vmatpush.msra.mxu0 %v330
      %708 = vmatmul.f32.gmra.mxu0 %v586
      %v709 = vpop.f32.mrf.mxu0
      %v710 = vadd.f32 %v690, %v709
      %711 = vdwg.mxu0
      %712 = vmatpush.msra.mxu0 %v392
      %713 = vmatpush.msra.mxu0 %v390
      %714 = vmatpush.msra.mxu0 %v388
      %715 = vmatpush.msra.mxu0 %v386
      %716 = vmatpush.msra.mxu0 %v384
      %717 = vmatpush.msra.mxu0 %v382
      %718 = vmatpush.msra.mxu0 %v380
      %719 = vmatpush.msra.mxu0 %v378
      %720 = vmatpush.msra.mxu0 %v376
      %721 = vmatpush.msra.mxu0 %v374
      %722 = vmatpush.msra.mxu0 %v372
      %723 = vmatpush.msra.mxu0 %v370
      %724 = vmatpush.msra.mxu0 %v368
      %725 = vmatpush.msra.mxu0 %v366
      %726 = vmatpush.msra.mxu0 %v364
      %727 = vmatpush.msra.mxu0 %v362
      %728 = vmatmul.f32.gmra.mxu0 %v587
      %v729 = vpop.f32.mrf.mxu0
      %v730 = vadd.f32 %v710, %v729
      %731 = vdwg.mxu0
      %732 = vmatpush.msra.mxu0 0.0
      %733 = vmatpush.msra.mxu0 0.0
      %734 = vmatpush.msra.mxu0 0.0
      %735 = vmatpush.msra.mxu0 0.0
      %736 = vmatpush.msra.mxu0 0.0
      %737 = vmatpush.msra.mxu0 0.0
      %738 = vmatpush.msra.mxu0 0.0
      %739 = vmatpush.msra.mxu0 0.0
      %740 = vmatpush.msra.mxu0 %v408
      %741 = vmatpush.msra.mxu0 %v406
      %742 = vmatpush.msra.mxu0 %v404
      %743 = vmatpush.msra.mxu0 %v402
      %744 = vmatpush.msra.mxu0 %v400
      %745 = vmatpush.msra.mxu0 %v398
      %746 = vmatpush.msra.mxu0 %v396
      %747 = vmatpush.msra.mxu0 %v394
      %748 = vmatmul.f32.gmra.mxu0 %v590
      %v749 = vpop.f32.mrf.mxu0
      %v750 = vadd.f32 %v730, %v749
      %751 = vdwg.mxu0
      %v752 = vmax.f32 %v670, 0.0
      %v753 = vmax.f32 %v750, 0.0
      %v754 = vmax.f32 %v583, %v752
      %v755 = vmax.f32 %v584, %v753
      %v756 = vld [vmem:[%s4] sm:$0xff]
      %v757 = vld [vmem:[%s4 + $0x8] sm:$0xff]
      %v758 = vld [vmem:[%s4 + $0x10] sm:$0xff]
      %v759 = vld [vmem:[%s4 + $0x18] sm:$0xff]
      %v760 = vld [vmem:[%s4 + $0x20] sm:$0xff]
      %v761 = vld [vmem:[%s4 + $0x28] sm:$0xff]
      %v762 = vld [vmem:[%s4 + $0x30] sm:$0xff]
      %v763 = vld [vmem:[%s4 + $0x38] sm:$0xff]
      %v764 = vld [vmem:[%s4 + $0x40] sm:$0xff]
      %v765 = vld [vmem:[%s4 + $0x48] sm:$0xff]
      %v766 = vld [vmem:[%s4 + $0x50] sm:$0xff]
      %v767 = vld [vmem:[%s4 + $0x58] sm:$0xff]
      %v768 = vld [vmem:[%s4 + $0x60] sm:$0xff]
      %v769 = vld [vmem:[%s4 + $0x68] sm:$0xff]
      %v770 = vld [vmem:[%s4 + $0x70] sm:$0xff]
      %v771 = vld [vmem:[%s4 + $0x78] sm:$0xff]
      %v772 = vld [vmem:[%s4 + $0x80] sm:$0xff]
      %v773 = vld [vmem:[%s4 + $0x88] sm:$0xff]
      %v774 = vld [vmem:[%s4 + $0x90] sm:$0xff]
      %v775 = vld [vmem:[%s4 + $0x98] sm:$0xff]
      %v776 = vld [vmem:[%s4 + $0xa0] sm:$0xff]
      %v777 = vld [vmem:[%s4 + $0xa8] sm:$0xff]
      %vm778 = vcmask 392192
      %v780 = vsel %vm778, %v755, 0
      %782 = vmatpush.msra.mxu0 %v771
      %783 = vmatpush.msra.mxu0 %v770
      %784 = vmatpush.msra.mxu0 %v769
      %785 = vmatpush.msra.mxu0 %v768
      %786 = vmatpush.msra.mxu0 %v767
      %787 = vmatpush.msra.mxu0 %v766
      %788 = vmatpush.msra.mxu0 %v765
      %789 = vmatpush.msra.mxu0 %v764
      %790 = vmatpush.msra.mxu0 %v763
      %791 = vmatpush.msra.mxu0 %v762
      %792 = vmatpush.msra.mxu0 %v761
      %793 = vmatpush.msra.mxu0 %v760
      %794 = vmatpush.msra.mxu0 %v759
      %795 = vmatpush.msra.mxu0 %v758
      %796 = vmatpush.msra.mxu0 %v757
      %797 = vmatpush.msra.mxu0 %v756
      %798 = vmatmul.f32.gmra.mxu0 %v754
      %v799 = vpop.f32.mrf.mxu0
      %v800 = vadd.f32 0.0, %v799
      %801 = vdwg.mxu0
      %802 = vmatpush.msra.mxu0 0.0
      %803 = vmatpush.msra.mxu0 0.0
      %804 = vmatpush.msra.mxu0 0.0
      %805 = vmatpush.msra.mxu0 0.0
      %806 = vmatpush.msra.mxu0 0.0
      %807 = vmatpush.msra.mxu0 0.0
      %808 = vmatpush.msra.mxu0 0.0
      %809 = vmatpush.msra.mxu0 0.0
      %810 = vmatpush.msra.mxu0 0.0
      %811 = vmatpush.msra.mxu0 0.0
      %812 = vmatpush.msra.mxu0 %v777
      %813 = vmatpush.msra.mxu0 %v776
      %814 = vmatpush.msra.mxu0 %v775
      %815 = vmatpush.msra.mxu0 %v774
      %816 = vmatpush.msra.mxu0 %v773
      %817 = vmatpush.msra.mxu0 %v772
      %818 = vmatmul.f32.gmra.mxu0 %v780
      %v819 = vpop.f32.mrf.mxu0
      %v820 = vadd.f32 %v800, %v819
      %821 = vdwg.mxu0
      %s822 = scalar_lea.vmem %s4, 176
      %v823 = vld [vmem:[%s822] sm:$0xff]
      %v824 = vld [vmem:[%s822 + $0x8] sm:$0xff]
      %v825 = vld [vmem:[%s822 + $0x10] sm:$0xff]
      %v826 = vld [vmem:[%s822 + $0x18] sm:$0xff]
      %v827 = vld [vmem:[%s822 + $0x20] sm:$0xff]
      %v828 = vld [vmem:[%s822 + $0x28] sm:$0xff]
      %v829 = vld [vmem:[%s822 + $0x30] sm:$0xff]
      %v830 = vld [vmem:[%s822 + $0x38] sm:$0xff]
      %v831 = vld [vmem:[%s822 + $0x40] sm:$0xff]
      %v832 = vld [vmem:[%s822 + $0x48] sm:$0xff]
      %v833 = vld [vmem:[%s822 + $0x50] sm:$0xff]
      %v834 = vld [vmem:[%s822 + $0x58] sm:$0xff]
      %v835 = vld [vmem:[%s822 + $0x60] sm:$0xff]
      %v836 = vld [vmem:[%s822 + $0x68] sm:$0xff]
      %v837 = vld [vmem:[%s822 + $0x70] sm:$0xff]
      %v838 = vld [vmem:[%s822 + $0x78] sm:$0xff]
      %v839 = vld [vmem:[%s822 + $0x80] sm:$0xff]
      %v840 = vld [vmem:[%s822 + $0x88] sm:$0xff]
      %v841 = vld [vmem:[%s822 + $0x90] sm:$0xff]
      %v842 = vld [vmem:[%s822 + $0x98] sm:$0xff]
      %v843 = vld [vmem:[%s822 + $0xa0] sm:$0xff]
      %v844 = vld [vmem:[%s822 + $0xa8] sm:$0xff]
      %845 = vmatpush.msra.mxu0 %v838
      %846 = vmatpush.msra.mxu0 %v837
      %847 = vmatpush.msra.mxu0 %v836
      %848 = vmatpush.msra.mxu0 %v835
      %849 = vmatpush.msra.mxu0 %v834
      %850 = vmatpush.msra.mxu0 %v833
      %851 = vmatpush.msra.mxu0 %v832
      %852 = vmatpush.msra.mxu0 %v831
      %853 = vmatpush.msra.mxu0 %v830
      %854 = vmatpush.msra.mxu0 %v829
      %855 = vmatpush.msra.mxu0 %v828
      %856 = vmatpush.msra.mxu0 %v827
      %857 = vmatpush.msra.mxu0 %v826
      %858 = vmatpush.msra.mxu0 %v825
      %859 = vmatpush.msra.mxu0 %v824
      %860 = vmatpush.msra.mxu0 %v823
      %861 = vmatmul.f32.gmra.mxu0 %v754
      %v862 = vpop.f32.mrf.mxu0
      %v863 = vadd.f32 0.0, %v862
      %864 = vdwg.mxu0
      %865 = vmatpush.msra.mxu0 0.0
      %866 = vmatpush.msra.mxu0 0.0
      %867 = vmatpush.msra.mxu0 0.0
      %868 = vmatpush.msra.mxu0 0.0
      %869 = vmatpush.msra.mxu0 0.0
      %870 = vmatpush.msra.mxu0 0.0
      %871 = vmatpush.msra.mxu0 0.0
      %872 = vmatpush.msra.mxu0 0.0
      %873 = vmatpush.msra.mxu0 0.0
      %874 = vmatpush.msra.mxu0 0.0
      %875 = vmatpush.msra.mxu0 %v844
      %876 = vmatpush.msra.mxu0 %v843
      %877 = vmatpush.msra.mxu0 %v842
      %878 = vmatpush.msra.mxu0 %v841
      %879 = vmatpush.msra.mxu0 %v840
      %880 = vmatpush.msra.mxu0 %v839
      %881 = vmatmul.f32.gmra.mxu0 %v780
      %v882 = vpop.f32.mrf.mxu0
      %v883 = vadd.f32 %v863, %v882
      %884 = vdwg.mxu0
      %v885 = vmax.f32 %v820, %v883
      %v886 = vld [vmem:[%s5] sm:$0x1]
      %v888 = vperm.slane %v886, 0
      %v890 = vmul.f32 %v885, %v888
      %v891 = vld [vmem:[%s6] sm:$0x1]
      %v893 = vperm.slane %v891, 0
      %v895 = vadd.f32 %v890, %v893
      %896 = vst [vmem:[%s296] sm:$0x1f] %v895
      %p897 = scmp.lt.s32.totalorder %s18, 1
      %s898 = scalar_select %p897, %s18, 1
      %s899 = smul.addr %s898, 8
      %s900 = scalar_lea.vmem %s7, %s899
      // Predicated region
      $region49: #{dmsnet_forward.4} parent=47 // pred_check
        %p901 = pneg %p193
      $region50: #{dmsnet_forward.4} parent=47 // pred_check_branch
        %903 = sbr.rel (%p901) target = $region52
      $region51: #{dmsnet_forward.4} parent=47 // pred_region
        _
      $region52: #{dmsnet_forward.4} parent=47 // pred_fallthru
        _
    $region48: #{dmsnet_forward.4} parent=5 // pred_fallthru
      _
    %p904 = scmp.le.s32.totalorder 2, %s13
    // Predicated region
    $region53: #{dmsnet_forward.4} parent=5 // pred_check
      %p905 = pneg %p904
    $region54: #{dmsnet_forward.4} parent=5 // pred_check_branch
      %907 = sbr.rel (%p905) target = $region56
    $region55: #{dmsnet_forward.4} parent=5 // pred_region
      %s908 = ssub.s32 %s13, 2
      // Predicated region
      $region57: #{dmsnet_forward.4} parent=55 // pred_check
        %p909 = pneg %p199
      $region58: #{dmsnet_forward.4} parent=55 // pred_check_branch
        %911 = sbr.rel (%p909) target = $region60
      $region59: #{dmsnet_forward.4} parent=55 // pred_region
        %p912 = scmp.lt.s32.totalorder %s19, 1
        %s913 = scalar_select %p912, %s19, 1
        %s914 = smul.addr %s913, 8
        %s915 = scalar_lea.vmem %s7, %s914
      $region60: #{dmsnet_forward.4} parent=55 // pred_fallthru
        _
    $region56: #{dmsnet_forward.4} parent=5 // pred_fallthru
      _
  $region6: #{dmsnet_forward.4} parent=0 // loop_footer
    %s17 = sadd.s32 1, %s13
  $region7: #{dmsnet_forward.4} parent=0 // loop_footer_branch
    %12 = sbr.rel target = $region3
  $region8: #{dmsnet_forward.4} parent=0 // loop_exit
    _

// kernel: dmsnet_forward.5
$region0: #{dmsnet_forward.5}
  #allocation0 [shape = 'u32[]', space=smem, size = 0x4, offset = 0x4, fixed_abs, tag = 'smem constant byte address 0x4 - core index']
  #allocation1 [shape = 'u32[72,128]{1,0:T(1,128)}', space=vmem, size = 0x9000, scoped, tag = 'internal scratch']
  #allocation2 [shape = 'f32[8,512]{1,0:T(8,128)}', space=vmem, size = 0x4000, scoped, tag = 'scratch operand']
  %s0 = inlined_call_operand.vmem [shape: f32[8,400], index: 0, kind: input, shape index: {}]
  %s1 = inlined_call_operand.vmem [shape: f32[400,512], index: 1, kind: input, shape index: {}]
  %s2 = inlined_call_operand.vmem [shape: f32[1,512], index: 2, kind: input, shape index: {}]
  %s3 = inlined_call_operand.vmem [shape: f32[512,256], index: 3, kind: input, shape index: {}]
  %s4 = inlined_call_operand.vmem [shape: f32[1,256], index: 4, kind: input, shape index: {}]
  %s5 = inlined_call_operand.vmem [shape: f32[256,128], index: 5, kind: input, shape index: {}]
  %s6 = inlined_call_operand.vmem [shape: f32[1,128], index: 6, kind: input, shape index: {}]
  %s7 = inlined_call_operand.vmem [shape: f32[8,128], index: 7, kind: output, shape index: {}]
  %s8 = sld [smem:[#allocation0]]
  $region46: #{dmsnet_forward.5} parent=0
    _
  %s10 = ssub.s32 1, %s8
  %s11 = scalar_select 0, %s10, %s8
  // Predicated region
  $region2: #{dmsnet_forward.5} parent=0 // pred_check
    _
  $region3: #{dmsnet_forward.5} parent=0 // pred_check_branch
    %13 = sbr.rel (0) target = $region5
  $region4: #{dmsnet_forward.5} parent=0 // pred_region
    _
  $region5: #{dmsnet_forward.5} parent=0 // pred_fallthru
    _
  // Predicated region
  $region6: #{dmsnet_forward.5} parent=0 // pred_check
    _
  $region7: #{dmsnet_forward.5} parent=0 // pred_check_branch
    %15 = sbr.rel (0) target = $region9
  $region8: #{dmsnet_forward.5} parent=0 // pred_region
    _
  $region9: #{dmsnet_forward.5} parent=0 // pred_fallthru
    _
  // Predicated region
  $region10: #{dmsnet_forward.5} parent=0 // pred_check
    _
  $region11: #{dmsnet_forward.5} parent=0 // pred_check_branch
    %17 = sbr.rel (0) target = $region13
  $region12: #{dmsnet_forward.5} parent=0 // pred_region
    _
  $region13: #{dmsnet_forward.5} parent=0 // pred_fallthru
    _
  // Predicated region
  $region14: #{dmsnet_forward.5} parent=0 // pred_check
    _
  $region15: #{dmsnet_forward.5} parent=0 // pred_check_branch
    %19 = sbr.rel (0) target = $region17
  $region16: #{dmsnet_forward.5} parent=0 // pred_region
    _
  $region17: #{dmsnet_forward.5} parent=0 // pred_fallthru
    _
  // Predicated region
  $region18: #{dmsnet_forward.5} parent=0 // pred_check
    _
  $region19: #{dmsnet_forward.5} parent=0 // pred_check_branch
    %21 = sbr.rel (0) target = $region21
  $region20: #{dmsnet_forward.5} parent=0 // pred_region
    _
  $region21: #{dmsnet_forward.5} parent=0 // pred_fallthru
    _
  // Predicated region
  $region22: #{dmsnet_forward.5} parent=0 // pred_check
    _
  $region23: #{dmsnet_forward.5} parent=0 // pred_check_branch
    %23 = sbr.rel (0) target = $region25
  $region24: #{dmsnet_forward.5} parent=0 // pred_region
    _
  $region25: #{dmsnet_forward.5} parent=0 // pred_fallthru
    _
  // Predicated region
  $region26: #{dmsnet_forward.5} parent=0 // pred_check
    _
  $region27: #{dmsnet_forward.5} parent=0 // pred_check_branch
    %25 = sbr.rel (0) target = $region29
  $region28: #{dmsnet_forward.5} parent=0 // pred_region
    _
  $region29: #{dmsnet_forward.5} parent=0 // pred_fallthru
    _
  %p26 = scmp.eq.s32.totalorder 0, 0
  // Predicated region
  $region30: #{dmsnet_forward.5} parent=0 // pred_check
    %p27 = pneg %p26
  $region31: #{dmsnet_forward.5} parent=0 // pred_check_branch
    %29 = sbr.rel (%p27) target = $region33
  $region32: #{dmsnet_forward.5} parent=0 // pred_region
    %30 = vst [vmem:[#allocation2] sm:$0xff] 0.0
    %31 = vst [vmem:[#allocation2 + $0x8] sm:$0xff] 0.0
    %32 = vst [vmem:[#allocation2 + $0x10] sm:$0xff] 0.0
    %33 = vst [vmem:[#allocation2 + $0x18] sm:$0xff] 0.0
  $region33: #{dmsnet_forward.5} parent=0 // pred_fallthru
    _
  %v34 = vld [vmem:[#allocation2] sm:$0xff]
  %v35 = vld [vmem:[#allocation2 + $0x8] sm:$0xff]
  %v36 = vld [vmem:[#allocation2 + $0x10] sm:$0xff]
  %v37 = vld [vmem:[#allocation2 + $0x18] sm:$0xff]
  %v38 = vld [vmem:[%s0] sm:$0xff]
  %v39 = vld [vmem:[%s0 + $0x8] sm:$0xff]
  %v40 = vld [vmem:[%s0 + $0x10] sm:$0xff]
  %v41 = vld [vmem:[%s0 + $0x18] sm:$0xff]
  %v42 = vld [vmem:[%s1] sm:$0xff]
  %v43 = vld [vmem:[%s1 + $0x8] sm:$0xff]
  %v44 = vld [vmem:[%s1 + $0x10] sm:$0xff]
  %v45 = vld [vmem:[%s1 + $0x18] sm:$0xff]
  %v46 = vld [vmem:[%s1 + $0x20] sm:$0xff]
  %v47 = vld [vmem:[%s1 + $0x28] sm:$0xff]
  %v48 = vld [vmem:[%s1 + $0x30] sm:$0xff]
  %v49 = vld [vmem:[%s1 + $0x38] sm:$0xff]
  %v50 = vld [vmem:[%s1 + $0x40] sm:$0xff]
  %v51 = vld [vmem:[%s1 + $0x48] sm:$0xff]
  %v52 = vld [vmem:[%s1 + $0x50] sm:$0xff]
  %v53 = vld [vmem:[%s1 + $0x58] sm:$0xff]
  %v54 = vld [vmem:[%s1 + $0x60] sm:$0xff]
  %v55 = vld [vmem:[%s1 + $0x68] sm:$0xff]
  %v56 = vld [vmem:[%s1 + $0x70] sm:$0xff]
  %v57 = vld [vmem:[%s1 + $0x78] sm:$0xff]
  %v58 = vld [vmem:[%s1 + $0x80] sm:$0xff]
  %v59 = vld [vmem:[%s1 + $0x88] sm:$0xff]
  %v60 = vld [vmem:[%s1 + $0x90] sm:$0xff]
  %v61 = vld [vmem:[%s1 + $0x98] sm:$0xff]
  %v62 = vld [vmem:[%s1 + $0xa0] sm:$0xff]
  %v63 = vld [vmem:[%s1 + $0xa8] sm:$0xff]
  %v64 = vld [vmem:[%s1 + $0xb0] sm:$0xff]
  %v65 = vld [vmem:[%s1 + $0xb8] sm:$0xff]
  %v66 = vld [vmem:[%s1 + $0xc0] sm:$0xff]
  %v67 = vld [vmem:[%s1 + $0xc8] sm:$0xff]
  %v68 = vld [vmem:[%s1 + $0xd0] sm:$0xff]
  %v69 = vld [vmem:[%s1 + $0xd8] sm:$0xff]
  %v70 = vld [vmem:[%s1 + $0xe0] sm:$0xff]
  %v71 = vld [vmem:[%s1 + $0xe8] sm:$0xff]
  %v72 = vld [vmem:[%s1 + $0xf0] sm:$0xff]
  %v73 = vld [vmem:[%s1 + $0xf8] sm:$0xff]
  %v74 = vld [vmem:[%s1 + $0x100] sm:$0xff]
  %v75 = vld [vmem:[%s1 + $0x108] sm:$0xff]
  %v76 = vld [vmem:[%s1 + $0x110] sm:$0xff]
  %v77 = vld [vmem:[%s1 + $0x118] sm:$0xff]
  %v78 = vld [vmem:[%s1 + $0x120] sm:$0xff]
  %v79 = vld [vmem:[%s1 + $0x128] sm:$0xff]
  %v80 = vld [vmem:[%s1 + $0x130] sm:$0xff]
  %v81 = vld [vmem:[%s1 + $0x138] sm:$0xff]
  %v82 = vld [vmem:[%s1 + $0x140] sm:$0xff]
  %v83 = vld [vmem:[%s1 + $0x148] sm:$0xff]
  %v84 = vld [vmem:[%s1 + $0x150] sm:$0xff]
  %v85 = vld [vmem:[%s1 + $0x158] sm:$0xff]
  %v86 = vld [vmem:[%s1 + $0x160] sm:$0xff]
  %v87 = vld [vmem:[%s1 + $0x168] sm:$0xff]
  %v88 = vld [vmem:[%s1 + $0x170] sm:$0xff]
  %v89 = vld [vmem:[%s1 + $0x178] sm:$0xff]
  %v90 = vld [vmem:[%s1 + $0x180] sm:$0xff]
  %v91 = vld [vmem:[%s1 + $0x188] sm:$0xff]
  %v92 = vld [vmem:[%s1 + $0x190] sm:$0xff]
  %v93 = vld [vmem:[%s1 + $0x198] sm:$0xff]
  %v94 = vld [vmem:[%s1 + $0x1a0] sm:$0xff]
  %v95 = vld [vmem:[%s1 + $0x1a8] sm:$0xff]
  %v96 = vld [vmem:[%s1 + $0x1b0] sm:$0xff]
  %v97 = vld [vmem:[%s1 + $0x1b8] sm:$0xff]
  %v98 = vld [vmem:[%s1 + $0x1c0] sm:$0xff]
  %v99 = vld [vmem:[%s1 + $0x1c8] sm:$0xff]
  %v100 = vld [vmem:[%s1 + $0x1d0] sm:$0xff]
  %v101 = vld [vmem:[%s1 + $0x1d8] sm:$0xff]
  %v102 = vld [vmem:[%s1 + $0x1e0] sm:$0xff]
  %v103 = vld [vmem:[%s1 + $0x1e8] sm:$0xff]
  %v104 = vld [vmem:[%s1 + $0x1f0] sm:$0xff]
  %v105 = vld [vmem:[%s1 + $0x1f8] sm:$0xff]
  %v106 = vld [vmem:[%s1 + $0x200] sm:$0xff]
  %v107 = vld [vmem:[%s1 + $0x208] sm:$0xff]
  %v108 = vld [vmem:[%s1 + $0x210] sm:$0xff]
  %v109 = vld [vmem:[%s1 + $0x218] sm:$0xff]
  %v110 = vld [vmem:[%s1 + $0x220] sm:$0xff]
  %v111 = vld [vmem:[%s1 + $0x228] sm:$0xff]
  %v112 = vld [vmem:[%s1 + $0x230] sm:$0xff]
  %v113 = vld [vmem:[%s1 + $0x238] sm:$0xff]
  %v114 = vld [vmem:[%s1 + $0x240] sm:$0xff]
  %v115 = vld [vmem:[%s1 + $0x248] sm:$0xff]
  %v116 = vld [vmem:[%s1 + $0x250] sm:$0xff]
  %v117 = vld [vmem:[%s1 + $0x258] sm:$0xff]
  %v118 = vld [vmem:[%s1 + $0x260] sm:$0xff]
  %v119 = vld [vmem:[%s1 + $0x268] sm:$0xff]
  %v120 = vld [vmem:[%s1 + $0x270] sm:$0xff]
  %v121 = vld [vmem:[%s1 + $0x278] sm:$0xff]
  %v122 = vld [vmem:[%s1 + $0x280] sm:$0xff]
  %v123 = vld [vmem:[%s1 + $0x288] sm:$0xff]
  %v124 = vld [vmem:[%s1 + $0x290] sm:$0xff]
  %v125 = vld [vmem:[%s1 + $0x298] sm:$0xff]
  %v126 = vld [vmem:[%s1 + $0x2a0] sm:$0xff]
  %v127 = vld [vmem:[%s1 + $0x2a8] sm:$0xff]
  %v128 = vld [vmem:[%s1 + $0x2b0] sm:$0xff]
  %v129 = vld [vmem:[%s1 + $0x2b8] sm:$0xff]
  %v130 = vld [vmem:[%s1 + $0x2c0] sm:$0xff]
  %v131 = vld [vmem:[%s1 + $0x2c8] sm:$0xff]
  %v132 = vld [vmem:[%s1 + $0x2d0] sm:$0xff]
  %v133 = vld [vmem:[%s1 + $0x2d8] sm:$0xff]
  %v134 = vld [vmem:[%s1 + $0x2e0] sm:$0xff]
  %v135 = vld [vmem:[%s1 + $0x2e8] sm:$0xff]
  %v136 = vld [vmem:[%s1 + $0x2f0] sm:$0xff]
  %v137 = vld [vmem:[%s1 + $0x2f8] sm:$0xff]
  %v138 = vld [vmem:[%s1 + $0x300] sm:$0xff]
  %v139 = vld [vmem:[%s1 + $0x308] sm:$0xff]
  %v140 = vld [vmem:[%s1 + $0x310] sm:$0xff]
  %v141 = vld [vmem:[%s1 + $0x318] sm:$0xff]
  %v142 = vld [vmem:[%s1 + $0x320] sm:$0xff]
  %v143 = vld [vmem:[%s1 + $0x328] sm:$0xff]
  %v144 = vld [vmem:[%s1 + $0x330] sm:$0xff]
  %v145 = vld [vmem:[%s1 + $0x338] sm:$0xff]
  %v146 = vld [vmem:[%s1 + $0x340] sm:$0xff]
  %v147 = vld [vmem:[%s1 + $0x348] sm:$0xff]
  %v148 = vld [vmem:[%s1 + $0x350] sm:$0xff]
  %v149 = vld [vmem:[%s1 + $0x358] sm:$0xff]
  %v150 = vld [vmem:[%s1 + $0x360] sm:$0xff]
  %v151 = vld [vmem:[%s1 + $0x368] sm:$0xff]
  %v152 = vld [vmem:[%s1 + $0x370] sm:$0xff]
  %v153 = vld [vmem:[%s1 + $0x378] sm:$0xff]
  %v154 = vld [vmem:[%s1 + $0x380] sm:$0xff]
  %v155 = vld [vmem:[%s1 + $0x388] sm:$0xff]
  %v156 = vld [vmem:[%s1 + $0x390] sm:$0xff]
  %v157 = vld [vmem:[%s1 + $0x398] sm:$0xff]
  %v158 = vld [vmem:[%s1 + $0x3a0] sm:$0xff]
  %v159 = vld [vmem:[%s1 + $0x3a8] sm:$0xff]
  %v160 = vld [vmem:[%s1 + $0x3b0] sm:$0xff]
  %v161 = vld [vmem:[%s1 + $0x3b8] sm:$0xff]
  %v162 = vld [vmem:[%s1 + $0x3c0] sm:$0xff]
  %v163 = vld [vmem:[%s1 + $0x3c8] sm:$0xff]
  %v164 = vld [vmem:[%s1 + $0x3d0] sm:$0xff]
  %v165 = vld [vmem:[%s1 + $0x3d8] sm:$0xff]
  %v166 = vld [vmem:[%s1 + $0x3e0] sm:$0xff]
  %v167 = vld [vmem:[%s1 + $0x3e8] sm:$0xff]
  %v168 = vld [vmem:[%s1 + $0x3f0] sm:$0xff]
  %v169 = vld [vmem:[%s1 + $0x3f8] sm:$0xff]
  %v170 = vld [vmem:[%s1 + $0x400] sm:$0xff]
  %v171 = vld [vmem:[%s1 + $0x408] sm:$0xff]
  %v172 = vld [vmem:[%s1 + $0x410] sm:$0xff]
  %v173 = vld [vmem:[%s1 + $0x418] sm:$0xff]
  %v174 = vld [vmem:[%s1 + $0x420] sm:$0xff]
  %v175 = vld [vmem:[%s1 + $0x428] sm:$0xff]
  %v176 = vld [vmem:[%s1 + $0x430] sm:$0xff]
  %v177 = vld [vmem:[%s1 + $0x438] sm:$0xff]
  %v178 = vld [vmem:[%s1 + $0x440] sm:$0xff]
  %v179 = vld [vmem:[%s1 + $0x448] sm:$0xff]
  %v180 = vld [vmem:[%s1 + $0x450] sm:$0xff]
  %v181 = vld [vmem:[%s1 + $0x458] sm:$0xff]
  %v182 = vld [vmem:[%s1 + $0x460] sm:$0xff]
  %v183 = vld [vmem:[%s1 + $0x468] sm:$0xff]
  %v184 = vld [vmem:[%s1 + $0x470] sm:$0xff]
  %v185 = vld [vmem:[%s1 + $0x478] sm:$0xff]
  %v186 = vld [vmem:[%s1 + $0x480] sm:$0xff]
  %v187 = vld [vmem:[%s1 + $0x488] sm:$0xff]
  %v188 = vld [vmem:[%s1 + $0x490] sm:$0xff]
  %v189 = vld [vmem:[%s1 + $0x498] sm:$0xff]
  %v190 = vld [vmem:[%s1 + $0x4a0] sm:$0xff]
  %v191 = vld [vmem:[%s1 + $0x4a8] sm:$0xff]
  %v192 = vld [vmem:[%s1 + $0x4b0] sm:$0xff]
  %v193 = vld [vmem:[%s1 + $0x4b8] sm:$0xff]
  %v194 = vld [vmem:[%s1 + $0x4c0] sm:$0xff]
  %v195 = vld [vmem:[%s1 + $0x4c8] sm:$0xff]
  %v196 = vld [vmem:[%s1 + $0x4d0] sm:$0xff]
  %v197 = vld [vmem:[%s1 + $0x4d8] sm:$0xff]
  %v198 = vld [vmem:[%s1 + $0x4e0] sm:$0xff]
  %v199 = vld [vmem:[%s1 + $0x4e8] sm:$0xff]
  %v200 = vld [vmem:[%s1 + $0x4f0] sm:$0xff]
  %v201 = vld [vmem:[%s1 + $0x4f8] sm:$0xff]
  %v202 = vld [vmem:[%s1 + $0x500] sm:$0xff]
  %v203 = vld [vmem:[%s1 + $0x508] sm:$0xff]
  %v204 = vld [vmem:[%s1 + $0x510] sm:$0xff]
  %v205 = vld [vmem:[%s1 + $0x518] sm:$0xff]
  %v206 = vld [vmem:[%s1 + $0x520] sm:$0xff]
  %v207 = vld [vmem:[%s1 + $0x528] sm:$0xff]
  %v208 = vld [vmem:[%s1 + $0x530] sm:$0xff]
  %v209 = vld [vmem:[%s1 + $0x538] sm:$0xff]
  %v210 = vld [vmem:[%s1 + $0x540] sm:$0xff]
  %v211 = vld [vmem:[%s1 + $0x548] sm:$0xff]
  %v212 = vld [vmem:[%s1 + $0x550] sm:$0xff]
  %v213 = vld [vmem:[%s1 + $0x558] sm:$0xff]
  %v214 = vld [vmem:[%s1 + $0x560] sm:$0xff]
  %v215 = vld [vmem:[%s1 + $0x568] sm:$0xff]
  %v216 = vld [vmem:[%s1 + $0x570] sm:$0xff]
  %v217 = vld [vmem:[%s1 + $0x578] sm:$0xff]
  %v218 = vld [vmem:[%s1 + $0x580] sm:$0xff]
  %v219 = vld [vmem:[%s1 + $0x588] sm:$0xff]
  %v220 = vld [vmem:[%s1 + $0x590] sm:$0xff]
  %v221 = vld [vmem:[%s1 + $0x598] sm:$0xff]
  %v222 = vld [vmem:[%s1 + $0x5a0] sm:$0xff]
  %v223 = vld [vmem:[%s1 + $0x5a8] sm:$0xff]
  %v224 = vld [vmem:[%s1 + $0x5b0] sm:$0xff]
  %v225 = vld [vmem:[%s1 + $0x5b8] sm:$0xff]
  %v226 = vld [vmem:[%s1 + $0x5c0] sm:$0xff]
  %v227 = vld [vmem:[%s1 + $0x5c8] sm:$0xff]
  %v228 = vld [vmem:[%s1 + $0x5d0] sm:$0xff]
  %v229 = vld [vmem:[%s1 + $0x5d8] sm:$0xff]
  %v230 = vld [vmem:[%s1 + $0x5e0] sm:$0xff]
  %v231 = vld [vmem:[%s1 + $0x5e8] sm:$0xff]
  %v232 = vld [vmem:[%s1 + $0x5f0] sm:$0xff]
  %v233 = vld [vmem:[%s1 + $0x5f8] sm:$0xff]
  %v234 = vld [vmem:[%s1 + $0x600] sm:$0xff]
  %v235 = vld [vmem:[%s1 + $0x608] sm:$0xff]
  %v236 = vld [vmem:[%s1 + $0x610] sm:$0xff]
  %v237 = vld [vmem:[%s1 + $0x618] sm:$0xff]
  %v238 = vld [vmem:[%s1 + $0x620] sm:$0xff]
  %v239 = vld [vmem:[%s1 + $0x628] sm:$0xff]
  %v240 = vld [vmem:[%s1 + $0x630] sm:$0xff]
  %v241 = vld [vmem:[%s1 + $0x638] sm:$0xff]
  %vm242 = vcmask 130048
  %v244 = vsel %vm242, %v41, 0
  %246 = vmatpush.msra.mxu0 %v102
  %247 = vmatpush.msra.mxu0 %v98
  %248 = vmatpush.msra.mxu0 %v94
  %249 = vmatpush.msra.mxu0 %v90
  %250 = vmatpush.msra.mxu0 %v86
  %251 = vmatpush.msra.mxu0 %v82
  %252 = vmatpush.msra.mxu0 %v78
  %253 = vmatpush.msra.mxu0 %v74
  %254 = vmatpush.msra.mxu0 %v70
  %255 = vmatpush.msra.mxu0 %v66
  %256 = vmatpush.msra.mxu0 %v62
  %257 = vmatpush.msra.mxu0 %v58
  %258 = vmatpush.msra.mxu0 %v54
  %259 = vmatpush.msra.mxu0 %v50
  %260 = vmatpush.msra.mxu0 %v46
  %261 = vmatpush.msra.mxu0 %v42
  %262 = vmatmul.f32.gmra.mxu0 %v38
  %v263 = vpop.f32.mrf.mxu0
  %v264 = vadd.f32 0.0, %v263
  %265 = vdwg.mxu0
  %266 = vmatpush.msra.mxu0 %v166
  %267 = vmatpush.msra.mxu0 %v162
  %268 = vmatpush.msra.mxu0 %v158
  %269 = vmatpush.msra.mxu0 %v154
  %270 = vmatpush.msra.mxu0 %v150
  %271 = vmatpush.msra.mxu0 %v146
  %272 = vmatpush.msra.mxu0 %v142
  %273 = vmatpush.msra.mxu0 %v138
  %274 = vmatpush.msra.mxu0 %v134
  %275 = vmatpush.msra.mxu0 %v130
  %276 = vmatpush.msra.mxu0 %v126
  %277 = vmatpush.msra.mxu0 %v122
  %278 = vmatpush.msra.mxu0 %v118
  %279 = vmatpush.msra.mxu0 %v114
  %280 = vmatpush.msra.mxu0 %v110
  %281 = vmatpush.msra.mxu0 %v106
  %282 = vmatmul.f32.gmra.mxu0 %v39
  %v283 = vpop.f32.mrf.mxu0
  %v284 = vadd.f32 %v264, %v283
  %285 = vdwg.mxu0
  %286 = vmatpush.msra.mxu0 %v230
  %287 = vmatpush.msra.mxu0 %v226
  %288 = vmatpush.msra.mxu0 %v222
  %289 = vmatpush.msra.mxu0 %v218
  %290 = vmatpush.msra.mxu0 %v214
  %291 = vmatpush.msra.mxu0 %v210
  %292 = vmatpush.msra.mxu0 %v206
  %293 = vmatpush.msra.mxu0 %v202
  %294 = vmatpush.msra.mxu0 %v198
  %295 = vmatpush.msra.mxu0 %v194
  %296 = vmatpush.msra.mxu0 %v190
  %297 = vmatpush.msra.mxu0 %v186
  %298 = vmatpush.msra.mxu0 %v182
  %299 = vmatpush.msra.mxu0 %v178
  %300 = vmatpush.msra.mxu0 %v174
  %301 = vmatpush.msra.mxu0 %v170
  %302 = vmatmul.f32.gmra.mxu0 %v40
  %v303 = vpop.f32.mrf.mxu0
  %v304 = vadd.f32 %v284, %v303
  %305 = vdwg.mxu0
  %306 = vmatpush.msra.mxu0 0.0
  %307 = vmatpush.msra.mxu0 0.0
  %308 = vmatpush.msra.mxu0 0.0
  %309 = vmatpush.msra.mxu0 0.0
  %310 = vmatpush.msra.mxu0 0.0
  %311 = vmatpush.msra.mxu0 0.0
  %312 = vmatpush.msra.mxu0 0.0
  %313 = vmatpush.msra.mxu0 0.0
  %314 = vmatpush.msra.mxu0 0.0
  %315 = vmatpush.msra.mxu0 0.0
  %316 = vmatpush.msra.mxu0 0.0
  %317 = vmatpush.msra.mxu0 0.0
  %318 = vmatpush.msra.mxu0 0.0
  %319 = vmatpush.msra.mxu0 0.0
  %320 = vmatpush.msra.mxu0 %v238
  %321 = vmatpush.msra.mxu0 %v234
  %322 = vmatmul.f32.gmra.mxu0 %v244
  %v323 = vpop.f32.mrf.mxu0
  %v324 = vadd.f32 %v304, %v323
  %325 = vdwg.mxu0
  %326 = vmatpush.msra.mxu0 %v103
  %327 = vmatpush.msra.mxu0 %v99
  %328 = vmatpush.msra.mxu0 %v95
  %329 = vmatpush.msra.mxu0 %v91
  %330 = vmatpush.msra.mxu0 %v87
  %331 = vmatpush.msra.mxu0 %v83
  %332 = vmatpush.msra.mxu0 %v79
  %333 = vmatpush.msra.mxu0 %v75
  %334 = vmatpush.msra.mxu0 %v71
  %335 = vmatpush.msra.mxu0 %v67
  %336 = vmatpush.msra.mxu0 %v63
  %337 = vmatpush.msra.mxu0 %v59
  %338 = vmatpush.msra.mxu0 %v55
  %339 = vmatpush.msra.mxu0 %v51
  %340 = vmatpush.msra.mxu0 %v47
  %341 = vmatpush.msra.mxu0 %v43
  %342 = vmatmul.f32.gmra.mxu0 %v38
  %v343 = vpop.f32.mrf.mxu0
  %v344 = vadd.f32 0.0, %v343
  %345 = vdwg.mxu0
  %346 = vmatpush.msra.mxu0 %v167
  %347 = vmatpush.msra.mxu0 %v163
  %348 = vmatpush.msra.mxu0 %v159
  %349 = vmatpush.msra.mxu0 %v155
  %350 = vmatpush.msra.mxu0 %v151
  %351 = vmatpush.msra.mxu0 %v147
  %352 = vmatpush.msra.mxu0 %v143
  %353 = vmatpush.msra.mxu0 %v139
  %354 = vmatpush.msra.mxu0 %v135
  %355 = vmatpush.msra.mxu0 %v131
  %356 = vmatpush.msra.mxu0 %v127
  %357 = vmatpush.msra.mxu0 %v123
  %358 = vmatpush.msra.mxu0 %v119
  %359 = vmatpush.msra.mxu0 %v115
  %360 = vmatpush.msra.mxu0 %v111
  %361 = vmatpush.msra.mxu0 %v107
  %362 = vmatmul.f32.gmra.mxu0 %v39
  %v363 = vpop.f32.mrf.mxu0
  %v364 = vadd.f32 %v344, %v363
  %365 = vdwg.mxu0
  %366 = vmatpush.msra.mxu0 %v231
  %367 = vmatpush.msra.mxu0 %v227
  %368 = vmatpush.msra.mxu0 %v223
  %369 = vmatpush.msra.mxu0 %v219
  %370 = vmatpush.msra.mxu0 %v215
  %371 = vmatpush.msra.mxu0 %v211
  %372 = vmatpush.msra.mxu0 %v207
  %373 = vmatpush.msra.mxu0 %v203
  %374 = vmatpush.msra.mxu0 %v199
  %375 = vmatpush.msra.mxu0 %v195
  %376 = vmatpush.msra.mxu0 %v191
  %377 = vmatpush.msra.mxu0 %v187
  %378 = vmatpush.msra.mxu0 %v183
  %379 = vmatpush.msra.mxu0 %v179
  %380 = vmatpush.msra.mxu0 %v175
  %381 = vmatpush.msra.mxu0 %v171
  %382 = vmatmul.f32.gmra.mxu0 %v40
  %v383 = vpop.f32.mrf.mxu0
  %v384 = vadd.f32 %v364, %v383
  %385 = vdwg.mxu0
  %386 = vmatpush.msra.mxu0 0.0
  %387 = vmatpush.msra.mxu0 0.0
  %388 = vmatpush.msra.mxu0 0.0
  %389 = vmatpush.msra.mxu0 0.0
  %390 = vmatpush.msra.mxu0 0.0
  %391 = vmatpush.msra.mxu0 0.0
  %392 = vmatpush.msra.mxu0 0.0
  %393 = vmatpush.msra.mxu0 0.0
  %394 = vmatpush.msra.mxu0 0.0
  %395 = vmatpush.msra.mxu0 0.0
  %396 = vmatpush.msra.mxu0 0.0
  %397 = vmatpush.msra.mxu0 0.0
  %398 = vmatpush.msra.mxu0 0.0
  %399 = vmatpush.msra.mxu0 0.0
  %400 = vmatpush.msra.mxu0 %v239
  %401 = vmatpush.msra.mxu0 %v235
  %402 = vmatmul.f32.gmra.mxu0 %v244
  %v403 = vpop.f32.mrf.mxu0
  %v404 = vadd.f32 %v384, %v403
  %405 = vdwg.mxu0
  %406 = vmatpush.msra.mxu0 %v104
  %407 = vmatpush.msra.mxu0 %v100
  %408 = vmatpush.msra.mxu0 %v96
  %409 = vmatpush.msra.mxu0 %v92
  %410 = vmatpush.msra.mxu0 %v88
  %411 = vmatpush.msra.mxu0 %v84
  %412 = vmatpush.msra.mxu0 %v80
  %413 = vmatpush.msra.mxu0 %v76
  %414 = vmatpush.msra.mxu0 %v72
  %415 = vmatpush.msra.mxu0 %v68
  %416 = vmatpush.msra.mxu0 %v64
  %417 = vmatpush.msra.mxu0 %v60
  %418 = vmatpush.msra.mxu0 %v56
  %419 = vmatpush.msra.mxu0 %v52
  %420 = vmatpush.msra.mxu0 %v48
  %421 = vmatpush.msra.mxu0 %v44
  %422 = vmatmul.f32.gmra.mxu0 %v38
  %v423 = vpop.f32.mrf.mxu0
  %v424 = vadd.f32 0.0, %v423
  %425 = vdwg.mxu0
  %426 = vmatpush.msra.mxu0 %v168
  %427 = vmatpush.msra.mxu0 %v164
  %428 = vmatpush.msra.mxu0 %v160
  %429 = vmatpush.msra.mxu0 %v156
  %430 = vmatpush.msra.mxu0 %v152
  %431 = vmatpush.msra.mxu0 %v148
  %432 = vmatpush.msra.mxu0 %v144
  %433 = vmatpush.msra.mxu0 %v140
  %434 = vmatpush.msra.mxu0 %v136
  %435 = vmatpush.msra.mxu0 %v132
  %436 = vmatpush.msra.mxu0 %v128
  %437 = vmatpush.msra.mxu0 %v124
  %438 = vmatpush.msra.mxu0 %v120
  %439 = vmatpush.msra.mxu0 %v116
  %440 = vmatpush.msra.mxu0 %v112
  %441 = vmatpush.msra.mxu0 %v108
  %442 = vmatmul.f32.gmra.mxu0 %v39
  %v443 = vpop.f32.mrf.mxu0
  %v444 = vadd.f32 %v424, %v443
  %445 = vdwg.mxu0
  %446 = vmatpush.msra.mxu0 %v232
  %447 = vmatpush.msra.mxu0 %v228
  %448 = vmatpush.msra.mxu0 %v224
  %449 = vmatpush.msra.mxu0 %v220
  %450 = vmatpush.msra.mxu0 %v216
  %451 = vmatpush.msra.mxu0 %v212
  %452 = vmatpush.msra.mxu0 %v208
  %453 = vmatpush.msra.mxu0 %v204
  %454 = vmatpush.msra.mxu0 %v200
  %455 = vmatpush.msra.mxu0 %v196
  %456 = vmatpush.msra.mxu0 %v192
  %457 = vmatpush.msra.mxu0 %v188
  %458 = vmatpush.msra.mxu0 %v184
  %459 = vmatpush.msra.mxu0 %v180
  %460 = vmatpush.msra.mxu0 %v176
  %461 = vmatpush.msra.mxu0 %v172
  %462 = vmatmul.f32.gmra.mxu0 %v40
  %v463 = vpop.f32.mrf.mxu0
  %v464 = vadd.f32 %v444, %v463
  %465 = vdwg.mxu0
  %466 = vmatpush.msra.mxu0 0.0
  %467 = vmatpush.msra.mxu0 0.0
  %468 = vmatpush.msra.mxu0 0.0
  %469 = vmatpush.msra.mxu0 0.0
  %470 = vmatpush.msra.mxu0 0.0
  %471 = vmatpush.msra.mxu0 0.0
  %472 = vmatpush.msra.mxu0 0.0
  %473 = vmatpush.msra.mxu0 0.0
  %474 = vmatpush.msra.mxu0 0.0
  %475 = vmatpush.msra.mxu0 0.0
  %476 = vmatpush.msra.mxu0 0.0
  %477 = vmatpush.msra.mxu0 0.0
  %478 = vmatpush.msra.mxu0 0.0
  %479 = vmatpush.msra.mxu0 0.0
  %480 = vmatpush.msra.mxu0 %v240
  %481 = vmatpush.msra.mxu0 %v236
  %482 = vmatmul.f32.gmra.mxu0 %v244
  %v483 = vpop.f32.mrf.mxu0
  %v484 = vadd.f32 %v464, %v483
  %485 = vdwg.mxu0
  %486 = vmatpush.msra.mxu0 %v105
  %487 = vmatpush.msra.mxu0 %v101
  %488 = vmatpush.msra.mxu0 %v97
  %489 = vmatpush.msra.mxu0 %v93
  %490 = vmatpush.msra.mxu0 %v89
  %491 = vmatpush.msra.mxu0 %v85
  %492 = vmatpush.msra.mxu0 %v81
  %493 = vmatpush.msra.mxu0 %v77
  %494 = vmatpush.msra.mxu0 %v73
  %495 = vmatpush.msra.mxu0 %v69
  %496 = vmatpush.msra.mxu0 %v65
  %497 = vmatpush.msra.mxu0 %v61
  %498 = vmatpush.msra.mxu0 %v57
  %499 = vmatpush.msra.mxu0 %v53
  %500 = vmatpush.msra.mxu0 %v49
  %501 = vmatpush.msra.mxu0 %v45
  %502 = vmatmul.f32.gmra.mxu0 %v38
  %v503 = vpop.f32.mrf.mxu0
  %v504 = vadd.f32 0.0, %v503
  %505 = vdwg.mxu0
  %506 = vmatpush.msra.mxu0 %v169
  %507 = vmatpush.msra.mxu0 %v165
  %508 = vmatpush.msra.mxu0 %v161
  %509 = vmatpush.msra.mxu0 %v157
  %510 = vmatpush.msra.mxu0 %v153
  %511 = vmatpush.msra.mxu0 %v149
  %512 = vmatpush.msra.mxu0 %v145
  %513 = vmatpush.msra.mxu0 %v141
  %514 = vmatpush.msra.mxu0 %v137
  %515 = vmatpush.msra.mxu0 %v133
  %516 = vmatpush.msra.mxu0 %v129
  %517 = vmatpush.msra.mxu0 %v125
  %518 = vmatpush.msra.mxu0 %v121
  %519 = vmatpush.msra.mxu0 %v117
  %520 = vmatpush.msra.mxu0 %v113
  %521 = vmatpush.msra.mxu0 %v109
  %522 = vmatmul.f32.gmra.mxu0 %v39
  %v523 = vpop.f32.mrf.mxu0
  %v524 = vadd.f32 %v504, %v523
  %525 = vdwg.mxu0
  %526 = vmatpush.msra.mxu0 %v233
  %527 = vmatpush.msra.mxu0 %v229
  %528 = vmatpush.msra.mxu0 %v225
  %529 = vmatpush.msra.mxu0 %v221
  %530 = vmatpush.msra.mxu0 %v217
  %531 = vmatpush.msra.mxu0 %v213
  %532 = vmatpush.msra.mxu0 %v209
  %533 = vmatpush.msra.mxu0 %v205
  %534 = vmatpush.msra.mxu0 %v201
  %535 = vmatpush.msra.mxu0 %v197
  %536 = vmatpush.msra.mxu0 %v193
  %537 = vmatpush.msra.mxu0 %v189
  %538 = vmatpush.msra.mxu0 %v185
  %539 = vmatpush.msra.mxu0 %v181
  %540 = vmatpush.msra.mxu0 %v177
  %541 = vmatpush.msra.mxu0 %v173
  %542 = vmatmul.f32.gmra.mxu0 %v40
  %v543 = vpop.f32.mrf.mxu0
  %v544 = vadd.f32 %v524, %v543
  %545 = vdwg.mxu0
  %546 = vmatpush.msra.mxu0 0.0
  %547 = vmatpush.msra.mxu0 0.0
  %548 = vmatpush.msra.mxu0 0.0
  %549 = vmatpush.msra.mxu0 0.0
  %550 = vmatpush.msra.mxu0 0.0
  %551 = vmatpush.msra.mxu0 0.0
  %552 = vmatpush.msra.mxu0 0.0
  %553 = vmatpush.msra.mxu0 0.0
  %554 = vmatpush.msra.mxu0 0.0
  %555 = vmatpush.msra.mxu0 0.0
  %556 = vmatpush.msra.mxu0 0.0
  %557 = vmatpush.msra.mxu0 0.0
  %558 = vmatpush.msra.mxu0 0.0
  %559 = vmatpush.msra.mxu0 0.0
  %560 = vmatpush.msra.mxu0 %v241
  %561 = vmatpush.msra.mxu0 %v237
  %562 = vmatmul.f32.gmra.mxu0 %v244
  %v563 = vpop.f32.mrf.mxu0
  %v564 = vadd.f32 %v544, %v563
  %565 = vdwg.mxu0
  %v566 = vadd.f32 %v34, %v324
  %v567 = vadd.f32 %v35, %v404
  %v568 = vadd.f32 %v36, %v484
  %v569 = vadd.f32 %v37, %v564
  %570 = vst [vmem:[#allocation2] sm:$0xff] %v566
  %571 = vst [vmem:[#allocation2 + $0x8] sm:$0xff] %v567
  %572 = vst [vmem:[#allocation2 + $0x10] sm:$0xff] %v568
  %573 = vst [vmem:[#allocation2 + $0x18] sm:$0xff] %v569
  // Predicated region
  $region34: #{dmsnet_forward.5} parent=0 // pred_check
    %p574 = pneg %p26
  $region35: #{dmsnet_forward.5} parent=0 // pred_check_branch
    %576 = sbr.rel (%p574) target = $region37
  $region36: #{dmsnet_forward.5} parent=0 // pred_region
    %v577 = vld [vmem:[#allocation2] sm:$0xff]
    %v578 = vld [vmem:[#allocation2 + $0x8] sm:$0xff]
    %v579 = vld [vmem:[#allocation2 + $0x10] sm:$0xff]
    %v580 = vld [vmem:[#allocation2 + $0x18] sm:$0xff]
    %v581 = vld [vmem:[%s2] sm:$0xf]
    %v583 = vperm.slane %v581, 0
    %v584 = vperm.slane %v581, 1
    %v585 = vperm.slane %v581, 2
    %v586 = vperm.slane %v581, 3
    %v591 = vadd.f32 %v577, %v583
    %v592 = vadd.f32 %v578, %v584
    %v593 = vadd.f32 %v579, %v585
    %v594 = vadd.f32 %v580, %v586
    %v595 = vmax.f32 %v591, 0.0
    %v596 = vmax.f32 %v592, 0.0
    %v597 = vmax.f32 %v593, 0.0
    %v598 = vmax.f32 %v594, 0.0
    %v599 = vld [vmem:[%s3] sm:$0xff]
    %v600 = vld [vmem:[%s3 + $0x8] sm:$0xff]
    %v601 = vld [vmem:[%s3 + $0x10] sm:$0xff]
    %v602 = vld [vmem:[%s3 + $0x18] sm:$0xff]
    %v603 = vld [vmem:[%s3 + $0x20] sm:$0xff]
    %v604 = vld [vmem:[%s3 + $0x28] sm:$0xff]
    %v605 = vld [vmem:[%s3 + $0x30] sm:$0xff]
    %v606 = vld [vmem:[%s3 + $0x38] sm:$0xff]
    %v607 = vld [vmem:[%s3 + $0x40] sm:$0xff]
    %v608 = vld [vmem:[%s3 + $0x48] sm:$0xff]
    %v609 = vld [vmem:[%s3 + $0x50] sm:$0xff]
    %v610 = vld [vmem:[%s3 + $0x58] sm:$0xff]
    %v611 = vld [vmem:[%s3 + $0x60] sm:$0xff]
    %v612 = vld [vmem:[%s3 + $0x68] sm:$0xff]
    %v613 = vld [vmem:[%s3 + $0x70] sm:$0xff]
    %v614 = vld [vmem:[%s3 + $0x78] sm:$0xff]
    %v615 = vld [vmem:[%s3 + $0x80] sm:$0xff]
    %v616 = vld [vmem:[%s3 + $0x88] sm:$0xff]
    %v617 = vld [vmem:[%s3 + $0x90] sm:$0xff]
    %v618 = vld [vmem:[%s3 + $0x98] sm:$0xff]
    %v619 = vld [vmem:[%s3 + $0xa0] sm:$0xff]
    %v620 = vld [vmem:[%s3 + $0xa8] sm:$0xff]
    %v621 = vld [vmem:[%s3 + $0xb0] sm:$0xff]
    %v622 = vld [vmem:[%s3 + $0xb8] sm:$0xff]
    %v623 = vld [vmem:[%s3 + $0xc0] sm:$0xff]
    %v624 = vld [vmem:[%s3 + $0xc8] sm:$0xff]
    %v625 = vld [vmem:[%s3 + $0xd0] sm:$0xff]
    %v626 = vld [vmem:[%s3 + $0xd8] sm:$0xff]
    %v627 = vld [vmem:[%s3 + $0xe0] sm:$0xff]
    %v628 = vld [vmem:[%s3 + $0xe8] sm:$0xff]
    %v629 = vld [vmem:[%s3 + $0xf0] sm:$0xff]
    %v630 = vld [vmem:[%s3 + $0xf8] sm:$0xff]
    %v631 = vld [vmem:[%s3 + $0x100] sm:$0xff]
    %v632 = vld [vmem:[%s3 + $0x108] sm:$0xff]
    %v633 = vld [vmem:[%s3 + $0x110] sm:$0xff]
    %v634 = vld [vmem:[%s3 + $0x118] sm:$0xff]
    %v635 = vld [vmem:[%s3 + $0x120] sm:$0xff]
    %v636 = vld [vmem:[%s3 + $0x128] sm:$0xff]
    %v637 = vld [vmem:[%s3 + $0x130] sm:$0xff]
    %v638 = vld [vmem:[%s3 + $0x138] sm:$0xff]
    %v639 = vld [vmem:[%s3 + $0x140] sm:$0xff]
    %v640 = vld [vmem:[%s3 + $0x148] sm:$0xff]
    %v641 = vld [vmem:[%s3 + $0x150] sm:$0xff]
    %v642 = vld [vmem:[%s3 + $0x158] sm:$0xff]
    %v643 = vld [vmem:[%s3 + $0x160] sm:$0xff]
    %v644 = vld [vmem:[%s3 + $0x168] sm:$0xff]
    %v645 = vld [vmem:[%s3 + $0x170] sm:$0xff]
    %v646 = vld [vmem:[%s3 + $0x178] sm:$0xff]
    %v647 = vld [vmem:[%s3 + $0x180] sm:$0xff]
    %v648 = vld [vmem:[%s3 + $0x188] sm:$0xff]
    %v649 = vld [vmem:[%s3 + $0x190] sm:$0xff]
    %v650 = vld [vmem:[%s3 + $0x198] sm:$0xff]
    %v651 = vld [vmem:[%s3 + $0x1a0] sm:$0xff]
    %v652 = vld [vmem:[%s3 + $0x1a8] sm:$0xff]
    %v653 = vld [vmem:[%s3 + $0x1b0] sm:$0xff]
    %v654 = vld [vmem:[%s3 + $0x1b8] sm:$0xff]
    %v655 = vld [vmem:[%s3 + $0x1c0] sm:$0xff]
    %v656 = vld [vmem:[%s3 + $0x1c8] sm:$0xff]
    %v657 = vld [vmem:[%s3 + $0x1d0] sm:$0xff]
    %v658 = vld [vmem:[%s3 + $0x1d8] sm:$0xff]
    %v659 = vld [vmem:[%s3 + $0x1e0] sm:$0xff]
    %v660 = vld [vmem:[%s3 + $0x1e8] sm:$0xff]
    %v661 = vld [vmem:[%s3 + $0x1f0] sm:$0xff]
    %v662 = vld [vmem:[%s3 + $0x1f8] sm:$0xff]
    %v663 = vld [vmem:[%s3 + $0x200] sm:$0xff]
    %v664 = vld [vmem:[%s3 + $0x208] sm:$0xff]
    %v665 = vld [vmem:[%s3 + $0x210] sm:$0xff]
    %v666 = vld [vmem:[%s3 + $0x218] sm:$0xff]
    %v667 = vld [vmem:[%s3 + $0x220] sm:$0xff]
    %v668 = vld [vmem:[%s3 + $0x228] sm:$0xff]
    %v669 = vld [vmem:[%s3 + $0x230] sm:$0xff]
    %v670 = vld [vmem:[%s3 + $0x238] sm:$0xff]
    %v671 = vld [vmem:[%s3 + $0x240] sm:$0xff]
    %v672 = vld [vmem:[%s3 + $0x248] sm:$0xff]
    %v673 = vld [vmem:[%s3 + $0x250] sm:$0xff]
    %v674 = vld [vmem:[%s3 + $0x258] sm:$0xff]
    %v675 = vld [vmem:[%s3 + $0x260] sm:$0xff]
    %v676 = vld [vmem:[%s3 + $0x268] sm:$0xff]
    %v677 = vld [vmem:[%s3 + $0x270] sm:$0xff]
    %v678 = vld [vmem:[%s3 + $0x278] sm:$0xff]
    %v679 = vld [vmem:[%s3 + $0x280] sm:$0xff]
    %v680 = vld [vmem:[%s3 + $0x288] sm:$0xff]
    %v681 = vld [vmem:[%s3 + $0x290] sm:$0xff]
    %v682 = vld [vmem:[%s3 + $0x298] sm:$0xff]
    %v683 = vld [vmem:[%s3 + $0x2a0] sm:$0xff]
    %v684 = vld [vmem:[%s3 + $0x2a8] sm:$0xff]
    %v685 = vld [vmem:[%s3 + $0x2b0] sm:$0xff]
    %v686 = vld [vmem:[%s3 + $0x2b8] sm:$0xff]
    %v687 = vld [vmem:[%s3 + $0x2c0] sm:$0xff]
    %v688 = vld [vmem:[%s3 + $0x2c8] sm:$0xff]
    %v689 = vld [vmem:[%s3 + $0x2d0] sm:$0xff]
    %v690 = vld [vmem:[%s3 + $0x2d8] sm:$0xff]
    %v691 = vld [vmem:[%s3 + $0x2e0] sm:$0xff]
    %v692 = vld [vmem:[%s3 + $0x2e8] sm:$0xff]
    %v693 = vld [vmem:[%s3 + $0x2f0] sm:$0xff]
    %v694 = vld [vmem:[%s3 + $0x2f8] sm:$0xff]
    %v695 = vld [vmem:[%s3 + $0x300] sm:$0xff]
    %v696 = vld [vmem:[%s3 + $0x308] sm:$0xff]
    %v697 = vld [vmem:[%s3 + $0x310] sm:$0xff]
    %v698 = vld [vmem:[%s3 + $0x318] sm:$0xff]
    %v699 = vld [vmem:[%s3 + $0x320] sm:$0xff]
    %v700 = vld [vmem:[%s3 + $0x328] sm:$0xff]
    %v701 = vld [vmem:[%s3 + $0x330] sm:$0xff]
    %v702 = vld [vmem:[%s3 + $0x338] sm:$0xff]
    %v703 = vld [vmem:[%s3 + $0x340] sm:$0xff]
    %v704 = vld [vmem:[%s3 + $0x348] sm:$0xff]
    %v705 = vld [vmem:[%s3 + $0x350] sm:$0xff]
    %v706 = vld [vmem:[%s3 + $0x358] sm:$0xff]
    %v707 = vld [vmem:[%s3 + $0x360] sm:$0xff]
    %v708 = vld [vmem:[%s3 + $0x368] sm:$0xff]
    %v709 = vld [vmem:[%s3 + $0x370] sm:$0xff]
    %v710 = vld [vmem:[%s3 + $0x378] sm:$0xff]
    %v711 = vld [vmem:[%s3 + $0x380] sm:$0xff]
    %v712 = vld [vmem:[%s3 + $0x388] sm:$0xff]
    %v713 = vld [vmem:[%s3 + $0x390] sm:$0xff]
    %v714 = vld [vmem:[%s3 + $0x398] sm:$0xff]
    %v715 = vld [vmem:[%s3 + $0x3a0] sm:$0xff]
    %v716 = vld [vmem:[%s3 + $0x3a8] sm:$0xff]
    %v717 = vld [vmem:[%s3 + $0x3b0] sm:$0xff]
    %v718 = vld [vmem:[%s3 + $0x3b8] sm:$0xff]
    %v719 = vld [vmem:[%s3 + $0x3c0] sm:$0xff]
    %v720 = vld [vmem:[%s3 + $0x3c8] sm:$0xff]
    %v721 = vld [vmem:[%s3 + $0x3d0] sm:$0xff]
    %v722 = vld [vmem:[%s3 + $0x3d8] sm:$0xff]
    %v723 = vld [vmem:[%s3 + $0x3e0] sm:$0xff]
    %v724 = vld [vmem:[%s3 + $0x3e8] sm:$0xff]
    %v725 = vld [vmem:[%s3 + $0x3f0] sm:$0xff]
    %v726 = vld [vmem:[%s3 + $0x3f8] sm:$0xff]
    %v727 = vld [vmem:[%s4] sm:$0x3]
    %v729 = vperm.slane %v727, 0
    %v730 = vperm.slane %v727, 1
    %733 = vmatpush.msra.mxu0 %v629
    %734 = vmatpush.msra.mxu0 %v627
    %735 = vmatpush.msra.mxu0 %v625
    %736 = vmatpush.msra.mxu0 %v623
    %737 = vmatpush.msra.mxu0 %v621
    %738 = vmatpush.msra.mxu0 %v619
    %739 = vmatpush.msra.mxu0 %v617
    %740 = vmatpush.msra.mxu0 %v615
    %741 = vmatpush.msra.mxu0 %v613
    %742 = vmatpush.msra.mxu0 %v611
    %743 = vmatpush.msra.mxu0 %v609
    %744 = vmatpush.msra.mxu0 %v607
    %745 = vmatpush.msra.mxu0 %v605
    %746 = vmatpush.msra.mxu0 %v603
    %747 = vmatpush.msra.mxu0 %v601
    %748 = vmatpush.msra.mxu0 %v599
    %749 = vmatmul.f32.gmra.mxu0 %v595
    %v750 = vpop.f32.mrf.mxu0
    %v751 = vadd.f32 %v729, %v750
    %752 = vdwg.mxu0
    %753 = vmatpush.msra.mxu0 %v661
    %754 = vmatpush.msra.mxu0 %v659
    %755 = vmatpush.msra.mxu0 %v657
    %756 = vmatpush.msra.mxu0 %v655
    %757 = vmatpush.msra.mxu0 %v653
    %758 = vmatpush.msra.mxu0 %v651
    %759 = vmatpush.msra.mxu0 %v649
    %760 = vmatpush.msra.mxu0 %v647
    %761 = vmatpush.msra.mxu0 %v645
    %762 = vmatpush.msra.mxu0 %v643
    %763 = vmatpush.msra.mxu0 %v641
    %764 = vmatpush.msra.mxu0 %v639
    %765 = vmatpush.msra.mxu0 %v637
    %766 = vmatpush.msra.mxu0 %v635
    %767 = vmatpush.msra.mxu0 %v633
    %768 = vmatpush.msra.mxu0 %v631
    %769 = vmatmul.f32.gmra.mxu0 %v596
    %v770 = vpop.f32.mrf.mxu0
    %v771 = vadd.f32 %v751, %v770
    %772 = vdwg.mxu0
    %773 = vmatpush.msra.mxu0 %v693
    %774 = vmatpush.msra.mxu0 %v691
    %775 = vmatpush.msra.mxu0 %v689
    %776 = vmatpush.msra.mxu0 %v687
    %777 = vmatpush.msra.mxu0 %v685
    %778 = vmatpush.msra.mxu0 %v683
    %779 = vmatpush.msra.mxu0 %v681
    %780 = vmatpush.msra.mxu0 %v679
    %781 = vmatpush.msra.mxu0 %v677
    %782 = vmatpush.msra.mxu0 %v675
    %783 = vmatpush.msra.mxu0 %v673
    %784 = vmatpush.msra.mxu0 %v671
    %785 = vmatpush.msra.mxu0 %v669
    %786 = vmatpush.msra.mxu0 %v667
    %787 = vmatpush.msra.mxu0 %v665
    %788 = vmatpush.msra.mxu0 %v663
    %789 = vmatmul.f32.gmra.mxu0 %v597
    %v790 = vpop.f32.mrf.mxu0
    %v791 = vadd.f32 %v771, %v790
    %792 = vdwg.mxu0
    %793 = vmatpush.msra.mxu0 %v725
    %794 = vmatpush.msra.mxu0 %v723
    %795 = vmatpush.msra.mxu0 %v721
    %796 = vmatpush.msra.mxu0 %v719
    %797 = vmatpush.msra.mxu0 %v717
    %798 = vmatpush.msra.mxu0 %v715
    %799 = vmatpush.msra.mxu0 %v713
    %800 = vmatpush.msra.mxu0 %v711
    %801 = vmatpush.msra.mxu0 %v709
    %802 = vmatpush.msra.mxu0 %v707
    %803 = vmatpush.msra.mxu0 %v705
    %804 = vmatpush.msra.mxu0 %v703
    %805 = vmatpush.msra.mxu0 %v701
    %806 = vmatpush.msra.mxu0 %v699
    %807 = vmatpush.msra.mxu0 %v697
    %808 = vmatpush.msra.mxu0 %v695
    %809 = vmatmul.f32.gmra.mxu0 %v598
    %v810 = vpop.f32.mrf.mxu0
    %v811 = vadd.f32 %v791, %v810
    %812 = vdwg.mxu0
    %813 = vmatpush.msra.mxu0 %v630
    %814 = vmatpush.msra.mxu0 %v628
    %815 = vmatpush.msra.mxu0 %v626
    %816 = vmatpush.msra.mxu0 %v624
    %817 = vmatpush.msra.mxu0 %v622
    %818 = vmatpush.msra.mxu0 %v620
    %819 = vmatpush.msra.mxu0 %v618
    %820 = vmatpush.msra.mxu0 %v616
    %821 = vmatpush.msra.mxu0 %v614
    %822 = vmatpush.msra.mxu0 %v612
    %823 = vmatpush.msra.mxu0 %v610
    %824 = vmatpush.msra.mxu0 %v608
    %825 = vmatpush.msra.mxu0 %v606
    %826 = vmatpush.msra.mxu0 %v604
    %827 = vmatpush.msra.mxu0 %v602
    %828 = vmatpush.msra.mxu0 %v600
    %829 = vmatmul.f32.gmra.mxu0 %v595
    %v830 = vpop.f32.mrf.mxu0
    %v831 = vadd.f32 %v730, %v830
    %832 = vdwg.mxu0
    %833 = vmatpush.msra.mxu0 %v662
    %834 = vmatpush.msra.mxu0 %v660
    %835 = vmatpush.msra.mxu0 %v658
    %836 = vmatpush.msra.mxu0 %v656
    %837 = vmatpush.msra.mxu0 %v654
    %838 = vmatpush.msra.mxu0 %v652
    %839 = vmatpush.msra.mxu0 %v650
    %840 = vmatpush.msra.mxu0 %v648
    %841 = vmatpush.msra.mxu0 %v646
    %842 = vmatpush.msra.mxu0 %v644
    %843 = vmatpush.msra.mxu0 %v642
    %844 = vmatpush.msra.mxu0 %v640
    %845 = vmatpush.msra.mxu0 %v638
    %846 = vmatpush.msra.mxu0 %v636
    %847 = vmatpush.msra.mxu0 %v634
    %848 = vmatpush.msra.mxu0 %v632
    %849 = vmatmul.f32.gmra.mxu0 %v596
    %v850 = vpop.f32.mrf.mxu0
    %v851 = vadd.f32 %v831, %v850
    %852 = vdwg.mxu0
    %853 = vmatpush.msra.mxu0 %v694
    %854 = vmatpush.msra.mxu0 %v692
    %855 = vmatpush.msra.mxu0 %v690
    %856 = vmatpush.msra.mxu0 %v688
    %857 = vmatpush.msra.mxu0 %v686
    %858 = vmatpush.msra.mxu0 %v684
    %859 = vmatpush.msra.mxu0 %v682
    %860 = vmatpush.msra.mxu0 %v680
    %861 = vmatpush.msra.mxu0 %v678
    %862 = vmatpush.msra.mxu0 %v676
    %863 = vmatpush.msra.mxu0 %v674
    %864 = vmatpush.msra.mxu0 %v672
    %865 = vmatpush.msra.mxu0 %v670
    %866 = vmatpush.msra.mxu0 %v668
    %867 = vmatpush.msra.mxu0 %v666
    %868 = vmatpush.msra.mxu0 %v664
    %869 = vmatmul.f32.gmra.mxu0 %v597
    %v870 = vpop.f32.mrf.mxu0
    %v871 = vadd.f32 %v851, %v870
    %872 = vdwg.mxu0
    %873 = vmatpush.msra.mxu0 %v726
    %874 = vmatpush.msra.mxu0 %v724
    %875 = vmatpush.msra.mxu0 %v722
    %876 = vmatpush.msra.mxu0 %v720
    %877 = vmatpush.msra.mxu0 %v718
    %878 = vmatpush.msra.mxu0 %v716
    %879 = vmatpush.msra.mxu0 %v714
    %880 = vmatpush.msra.mxu0 %v712
    %881 = vmatpush.msra.mxu0 %v710
    %882 = vmatpush.msra.mxu0 %v708
    %883 = vmatpush.msra.mxu0 %v706
    %884 = vmatpush.msra.mxu0 %v704
    %885 = vmatpush.msra.mxu0 %v702
    %886 = vmatpush.msra.mxu0 %v700
    %887 = vmatpush.msra.mxu0 %v698
    %888 = vmatpush.msra.mxu0 %v696
    %889 = vmatmul.f32.gmra.mxu0 %v598
    %v890 = vpop.f32.mrf.mxu0
    %v891 = vadd.f32 %v871, %v890
    %892 = vdwg.mxu0
    %v893 = vmax.f32 %v811, 0.0
    %v894 = vmax.f32 %v891, 0.0
    %v895 = vld [vmem:[%s5] sm:$0xff]
    %v896 = vld [vmem:[%s5 + $0x8] sm:$0xff]
    %v897 = vld [vmem:[%s5 + $0x10] sm:$0xff]
    %v898 = vld [vmem:[%s5 + $0x18] sm:$0xff]
    %v899 = vld [vmem:[%s5 + $0x20] sm:$0xff]
    %v900 = vld [vmem:[%s5 + $0x28] sm:$0xff]
    %v901 = vld [vmem:[%s5 + $0x30] sm:$0xff]
    %v902 = vld [vmem:[%s5 + $0x38] sm:$0xff]
    %v903 = vld [vmem:[%s5 + $0x40] sm:$0xff]
    %v904 = vld [vmem:[%s5 + $0x48] sm:$0xff]
    %v905 = vld [vmem:[%s5 + $0x50] sm:$0xff]
    %v906 = vld [vmem:[%s5 + $0x58] sm:$0xff]
    %v907 = vld [vmem:[%s5 + $0x60] sm:$0xff]
    %v908 = vld [vmem:[%s5 + $0x68] sm:$0xff]
    %v909 = vld [vmem:[%s5 + $0x70] sm:$0xff]
    %v910 = vld [vmem:[%s5 + $0x78] sm:$0xff]
    %v911 = vld [vmem:[%s5 + $0x80] sm:$0xff]
    %v912 = vld [vmem:[%s5 + $0x88] sm:$0xff]
    %v913 = vld [vmem:[%s5 + $0x90] sm:$0xff]
    %v914 = vld [vmem:[%s5 + $0x98] sm:$0xff]
    %v915 = vld [vmem:[%s5 + $0xa0] sm:$0xff]
    %v916 = vld [vmem:[%s5 + $0xa8] sm:$0xff]
    %v917 = vld [vmem:[%s5 + $0xb0] sm:$0xff]
    %v918 = vld [vmem:[%s5 + $0xb8] sm:$0xff]
    %v919 = vld [vmem:[%s5 + $0xc0] sm:$0xff]
    %v920 = vld [vmem:[%s5 + $0xc8] sm:$0xff]
    %v921 = vld [vmem:[%s5 + $0xd0] sm:$0xff]
    %v922 = vld [vmem:[%s5 + $0xd8] sm:$0xff]
    %v923 = vld [vmem:[%s5 + $0xe0] sm:$0xff]
    %v924 = vld [vmem:[%s5 + $0xe8] sm:$0xff]
    %v925 = vld [vmem:[%s5 + $0xf0] sm:$0xff]
    %v926 = vld [vmem:[%s5 + $0xf8] sm:$0xff]
    %v927 = vld [vmem:[%s6] sm:$0x1]
    %v929 = vperm.slane %v927, 0
    %931 = vmatpush.msra.mxu0 %v910
    %932 = vmatpush.msra.mxu0 %v909
    %933 = vmatpush.msra.mxu0 %v908
    %934 = vmatpush.msra.mxu0 %v907
    %935 = vmatpush.msra.mxu0 %v906
    %936 = vmatpush.msra.mxu0 %v905
    %937 = vmatpush.msra.mxu0 %v904
    %938 = vmatpush.msra.mxu0 %v903
    %939 = vmatpush.msra.mxu0 %v902
    %940 = vmatpush.msra.mxu0 %v901
    %941 = vmatpush.msra.mxu0 %v900
    %942 = vmatpush.msra.mxu0 %v899
    %943 = vmatpush.msra.mxu0 %v898
    %944 = vmatpush.msra.mxu0 %v897
    %945 = vmatpush.msra.mxu0 %v896
    %946 = vmatpush.msra.mxu0 %v895
    %947 = vmatmul.f32.gmra.mxu0 %v893
    %v948 = vpop.f32.mrf.mxu0
    %v949 = vadd.f32 %v929, %v948
    %950 = vdwg.mxu0
    %951 = vmatpush.msra.mxu0 %v926
    %952 = vmatpush.msra.mxu0 %v925
    %953 = vmatpush.msra.mxu0 %v924
    %954 = vmatpush.msra.mxu0 %v923
    %955 = vmatpush.msra.mxu0 %v922
    %956 = vmatpush.msra.mxu0 %v921
    %957 = vmatpush.msra.mxu0 %v920
    %958 = vmatpush.msra.mxu0 %v919
    %959 = vmatpush.msra.mxu0 %v918
    %960 = vmatpush.msra.mxu0 %v917
    %961 = vmatpush.msra.mxu0 %v916
    %962 = vmatpush.msra.mxu0 %v915
    %963 = vmatpush.msra.mxu0 %v914
    %964 = vmatpush.msra.mxu0 %v913
    %965 = vmatpush.msra.mxu0 %v912
    %966 = vmatpush.msra.mxu0 %v911
    %967 = vmatmul.f32.gmra.mxu0 %v894
    %v968 = vpop.f32.mrf.mxu0
    %v969 = vadd.f32 %v949, %v968
    %970 = vdwg.mxu0
    %971 = vmax.xlane.f32.xlu0 %v969
    %v972 = vpop.xlane.xlu0 %971
    %v973 = vsub.f32 %v969, %v972
    %v974 = vmul.f32 %v973, 1.442695
    %v975 = vpow.pop %v974
    %976 = vadd.xlane.f32.xlu0 %v975
    %v977 = vpop.xlane.xlu0 %976
    %v978 = vrcp.pop %v977
    %v979 = vmul.f32 %v975, %v978
    %980 = vst [vmem:[%s7] sm:$0xff] %v979
  $region37: #{dmsnet_forward.5} parent=0 // pred_fallthru
    _
  // Predicated region
  $region38: #{dmsnet_forward.5} parent=0 // pred_check
    _
  $region39: #{dmsnet_forward.5} parent=0 // pred_check_branch
    %982 = sbr.rel (0) target = $region41
  $region40: #{dmsnet_forward.5} parent=0 // pred_region
    _
  $region41: #{dmsnet_forward.5} parent=0 // pred_fallthru
    _
  // Predicated region
  $region42: #{dmsnet_forward.5} parent=0 // pred_check
    _
  $region43: #{dmsnet_forward.5} parent=0 // pred_check_branch
    %984 = sbr.rel (0) target = $region45
  $region44: #{dmsnet_forward.5} parent=0 // pred_region
    _
  $region45: #{dmsnet_forward.5} parent=0 // pred_fallthru
    _

</llo_original>
